<compile_context>
chip_gen: v7x
topology: tpu7x:2x2x1
jax: 0.10.0
libtpu: 0.0.40
codegen_flags: <defaults>
</compile_context>

<pallas_src>
import functools
import math

import jax
import jax.numpy as jnp
from jax import lax
from jax.experimental import pallas as pl
from jax.experimental.pallas import tpu as pltpu  # noqa: F401  (TPU backend)

# ---------------- configuration (small, consistent with the module) ----------
INPUT_DIM = 10
COND_DIM = 12
HIDDEN_DIM = 32
OUTPUT_DIM = 10
NUM_LAYERS = 2
NUM_HEADS = 4
MLP_RATIO = 4.0
TIME_EMBED_DIM = 32
ROPE_MAX_SEQ = 16
BATCH = 2
SEQ = 8
HEAD_DIM = HIDDEN_DIM // NUM_HEADS
MLP_DIM = int(HIDDEN_DIM * MLP_RATIO)
OUT_PAD = 128  # lane-dense output slab width


# ---------------- small math helpers (usable both in- and out-of-kernel) -----
def _silu(x):
    return x * jax.nn.sigmoid(x)


def _gelu_tanh(x):
    # GELU(approximate='tanh')
    return 0.5 * x * (1.0 + jnp.tanh(0.7978845608028654 * (x + 0.044715 * x * x * x)))


def _mish(x):
    # numerically-stable softplus (avoids jax.nn.softplus inside the kernel)
    sp = jnp.maximum(x, 0.0) + jnp.log(1.0 + jnp.exp(-jnp.abs(x)))
    return x * jnp.tanh(sp)


def _ln_noaffine(x, eps):
    mu = jnp.mean(x, axis=-1, keepdims=True)
    var = jnp.mean((x - mu) ** 2, axis=-1, keepdims=True)
    return (x - mu) * lax.rsqrt(var + eps)


def _group_ln(x, gmat, eps):
    # per-head-group LayerNorm via a group-averaging matmul: (x @ gmat)[r, c]
    # is the mean of x[r, :] over the head group that lane c belongs to.
    f32 = jnp.float32
    m = jnp.dot(x, gmat, preferred_element_type=f32)
    msq = jnp.dot(x * x, gmat, preferred_element_type=f32)
    var = msq - m * m
    return (x - m) * lax.rsqrt(var + eps)


def sinusoidal_pos_emb(t, dim):
    half = dim // 2
    scale = math.log(10000.0) / (half - 1)
    freqs = jnp.exp(jnp.arange(half, dtype=jnp.float32) * -scale)
    arg = t[:, None] * freqs[None, :]
    return jnp.concatenate([jnp.sin(arg), jnp.cos(arg)], axis=-1)


# ---------------- the fused Pallas kernel -------------------------------------
def _fused_dit_kernel(
    # activations / host-prepared constants
    x_ref, sint_ref, cond_ref, sel_ref, cosf_ref, sinf_ref,
    gmat_ref, pswap_ref, bbias_ref, hmask_ref,
    # embedding weights
    w_in_ref, b_in_ref, w_t1_ref, b_t1_ref, w_t2_ref, b_t2_ref, w_c_ref, b_c_ref,
    # per-layer block weights (stacked on axis 0)
    w_ada_ref, b_ada_ref, w_qkv_ref, b_qkv_ref,
    qg_ref, qb_ref, kg_ref, kb_ref,
    w_proj_ref, b_proj_ref, w1_ref, b1_ref, w2_ref, b2_ref,
    # head
    ln_g_ref, ln_b_ref, w_out_ref, b_out_ref,
    # output
    out_ref,
    *, num_layers, num_heads, head_dim,
):
    f32 = jnp.float32
    D = num_heads * head_dim
    inv_sqrt = 1.0 / math.sqrt(head_dim)

    gmat = gmat_ref[...]
    pswap = pswap_ref[...]
    cosf = cosf_ref[...]
    sinf = sinf_ref[...]
    bbias = bbias_ref[...]

    # ---- embeddings: input_proj / time-embed MLP / cond_embed ----
    h = jnp.dot(x_ref[...], w_in_ref[...], preferred_element_type=f32) + b_in_ref[...]
    temb = _mish(
        jnp.dot(sint_ref[...], w_t1_ref[...], preferred_element_type=f32) + b_t1_ref[...]
    )
    temb = jnp.dot(temb, w_t2_ref[...], preferred_element_type=f32) + b_t2_ref[...]
    c = jnp.dot(cond_ref[...], w_c_ref[...], preferred_element_type=f32) + b_c_ref[...]

    # a = SiLU(SiLU(t + c)) (the module applies SiLU twice), expanded from
    # [B, D] to [B*S, D] rows with a 0/1 selection matmul (no in-kernel
    # reshapes / broadcasts across the batch axis).
    a_rows = jnp.dot(sel_ref[...], _silu(_silu(temb + c)), preferred_element_type=f32)

    for l in range(num_layers):
        # adaLN features: one full-width [B*S, D] @ [D, 6D] matmul.
        feats = jnp.dot(a_rows, w_ada_ref[l], preferred_element_type=f32) + b_ada_ref[l]
        gamma1 = feats[:, 0 * D:1 * D]
        gamma2 = feats[:, 1 * D:2 * D]
        scale1 = feats[:, 2 * D:3 * D]
        scale2 = feats[:, 3 * D:4 * D]
        shift1 = feats[:, 4 * D:5 * D]
        shift2 = feats[:, 5 * D:6 * D]

        # ----- self-attention branch -----
        mod1 = _ln_noaffine(h, 1e-6) * (1.0 + scale1) + shift1
        qkv = jnp.dot(mod1, w_qkv_ref[l], preferred_element_type=f32) + b_qkv_ref[l]
        q = qkv[:, 0:D]
        k = qkv[:, D:2 * D]
        v = qkv[:, 2 * D:3 * D]

        # qk-LayerNorm over each head's 8 lanes (full-width, matmul stats).
        qn = _group_ln(q, gmat, 1e-5) * qg_ref[l] + qb_ref[l]
        kn = _group_ln(k, gmat, 1e-5) * kg_ref[l] + kb_ref[l]

        # RoPE, full-width: weights are pre-permuted to [even | odd] halves
        # per head, cos/sin carry the sign, pswap swaps the two halves.
        qr = qn * cosf + jnp.dot(qn, pswap, preferred_element_type=f32) * sinf
        kr = kn * cosf + jnp.dot(kn, pswap, preferred_element_type=f32) * sinf

        # Attention: per-head scores over all batch rows at once; a -1e30
        # additive mask keeps batch elements independent.
        dn = (((1,), (1,)), ((), ()))  # contract lane dims: q @ k^T
        ctx = jnp.zeros(v.shape, f32)
        for hh in range(num_heads):
            colmask = hmask_ref[hh]  # [1, D]: 1.0 on this head's lanes
            s = lax.dot_general(qr * colmask, kr, dn, preferred_element_type=f32)
            s = s * inv_sqrt + bbias
            s = s - jnp.max(s, axis=-1, keepdims=True)
            p = jnp.exp(s)
            p = p * pl.reciprocal(jnp.sum(p, axis=-1, keepdims=True), approx=True)
            ctx = ctx + jnp.dot(p, v * colmask, preferred_element_type=f32)

        attn = jnp.dot(ctx, w_proj_ref[l], preferred_element_type=f32) + b_proj_ref[l]
        h = h + gamma1 * attn

        # ----- MLP branch -----
        mod2 = _ln_noaffine(h, 1e-6) * (1.0 + scale2) + shift2
        hid = _gelu_tanh(
            jnp.dot(mod2, w1_ref[l], preferred_element_type=f32) + b1_ref[l]
        )
        h = h + gamma2 * (jnp.dot(hid, w2_ref[l], preferred_element_type=f32) + b2_ref[l])

    # ----- final LayerNorm (affine, eps=1e-5) + out_proj (padded to 128 lanes)
    hn = _ln_noaffine(h, 1e-5) * ln_g_ref[...] + ln_b_ref[...]
    out_ref[...] = (
        jnp.dot(hn, w_out_ref[...], preferred_element_type=f32) + b_out_ref[...]
    )


# ---------------- parameter construction -------------------------------------
def init_params(key):
    # Deterministic synthetic init. PyTorch zero-inits the ada_ln Linear
    # (identity blocks at init); we use small random values so the whole
    # kernel path is numerically exercised. Shapes match __init__.
    D, hd, Dh, ted = HIDDEN_DIM, HEAD_DIM, MLP_DIM, TIME_EMBED_DIM
    keys = iter(jax.random.split(key, 64))

    def w(shape, scale=0.05):
        return (scale * jax.random.normal(next(keys), shape)).astype(jnp.float32)

    params = dict(
        w_in=w((INPUT_DIM, D)), b_in=w((D,)),
        w_t1=w((ted, 4 * ted)), b_t1=w((4 * ted,)),
        w_t2=w((4 * ted, D)), b_t2=w((D,)),
        w_c=w((COND_DIM, D)), b_c=w((D,)),
        ln_g=1.0 + w((D,)), ln_b=w((D,)),
        w_out=w((D, OUTPUT_DIM)), b_out=w((OUTPUT_DIM,)),
        blocks=[],
    )
    for _ in range(NUM_LAYERS):
        params["blocks"].append(dict(
            w_qkv=w((D, 3 * D)), b_qkv=w((3 * D,)),
            qn_g=1.0 + w((hd,)), qn_b=w((hd,)),
            kn_g=1.0 + w((hd,)), kn_b=w((hd,)),
            w_proj=w((D, D)), b_proj=w((D,)),
            w_ada=w((D, 6 * D)), b_ada=w((6 * D,)),
            w1=w((D, Dh)), b1=w((Dh,)),
            w2=w((Dh, D)), b2=w((D,)),
        ))
    return params


def prepare_inference_params(params, batch, seq):
    """One-time host-side re-layout of the PyTorch-layout weights into the
    layout the fused kernel consumes (permuted q/k columns, stacked layers,
    RoPE cache, constant group/permutation/mask matrices, padded head)."""
    D, H, hd, L = HIDDEN_DIM, NUM_HEADS, HEAD_DIM, NUM_LAYERS
    hd2 = hd // 2
    BS = batch * seq
    f32 = jnp.float32

    # within-head column permutation: even rotation-pair elements first, odd second
    perm = jnp.concatenate([jnp.arange(0, hd, 2), jnp.arange(1, hd, 2)])
    col_perm = (jnp.arange(H)[:, None] * hd + perm[None, :]).reshape(-1)

    blocks = params["blocks"]
    stack = lambda fn: jnp.stack([fn(bp) for bp in blocks])

    def qkv_w(bp):
        w = bp["w_qkv"]
        return jnp.concatenate(
            [w[:, 0:D][:, col_perm], w[:, D:2 * D][:, col_perm], w[:, 2 * D:3 * D]],
            axis=1,
        )

    def qkv_b(bp):
        b = bp["b_qkv"]
        return jnp.concatenate(
            [b[0:D][col_perm], b[D:2 * D][col_perm], b[2 * D:3 * D]]
        )[None, :]

    # RoPE cache: theta over the FULL model dim, sliced per head (torchtune
    # RoPE quirk), laid out as [even half | odd half] per head and expanded to
    # one row per (batch, position).
    theta = 1.0 / (10000.0 ** (jnp.arange(0, D, 2, dtype=f32) / D))  # [D//2]
    ang = (jnp.arange(seq, dtype=f32)[:, None] * theta[None, :]).reshape(seq, H, hd2)
    cosf = jnp.tile(
        jnp.concatenate([jnp.cos(ang), jnp.cos(ang)], axis=-1).reshape(seq, D),
        (batch, 1),
    )
    sinf = jnp.tile(
        jnp.concatenate([-jnp.sin(ang), jnp.sin(ang)], axis=-1).reshape(seq, D),
        (batch, 1),
    )

    lane = jnp.arange(D)
    # group-averaging matrix for per-head LayerNorm statistics
    gmat = ((lane[:, None] // hd) == (lane[None, :] // hd)).astype(f32) / hd
    # permutation matrix swapping the even/odd halves within each head
    swap_idx = jnp.where(lane % hd < hd2, lane + hd2, lane - hd2)
    pswap = (lane[:, None] == swap_idx[None, :]).astype(f32)
    # per-head lane masks [H, 1, D]
    head_mask = (jnp.arange(H)[:, None, None] == (lane[None, None, :] // hd)).astype(f32)

    rows = jnp.arange(BS) // seq
    # [B*S, B] 0/1 matrix broadcasting per-batch vectors to token rows
    sel = (rows[:, None] == jnp.arange(batch)[None, :]).astype(f32)
    # additive attention bias blocking cross-batch attention
    batch_bias = jnp.where(rows[:, None] == rows[None, :], 0.0, -1e30).astype(f32)

    # out_proj padded to a lane-dense 128-wide slab (host slices the first 10)
    w_out = jnp.zeros((D, OUT_PAD), f32).at[:, :OUTPUT_DIM].set(params["w_out"])
    b_out = jnp.zeros((1, OUT_PAD), f32).at[0, :OUTPUT_DIM].set(params["b_out"])

    return dict(
        sel=sel, cosf=cosf, sinf=sinf, gmat=gmat, pswap=pswap,
        batch_bias=batch_bias, head_mask=head_mask,
        w_in=params["w_in"], b_in=params["b_in"][None, :],
        w_t1=params["w_t1"], b_t1=params["b_t1"][None, :],
        w_t2=params["w_t2"], b_t2=params["b_t2"][None, :],
        w_c=params["w_c"], b_c=params["b_c"][None, :],
        w_ada=stack(lambda bp: bp["w_ada"]),
        b_ada=stack(lambda bp: bp["b_ada"][None, :]),
        w_qkv=stack(qkv_w), b_qkv=stack(qkv_b),
        qg=stack(lambda bp: jnp.tile(bp["qn_g"][perm], H)[None, :]),
        qb=stack(lambda bp: jnp.tile(bp["qn_b"][perm], H)[None, :]),
        kg=stack(lambda bp: jnp.tile(bp["kn_g"][perm], H)[None, :]),
        kb=stack(lambda bp: jnp.tile(bp["kn_b"][perm], H)[None, :]),
        w_proj=stack(lambda bp: bp["w_proj"]),
        b_proj=stack(lambda bp: bp["b_proj"][None, :]),
        w1=stack(lambda bp: bp["w1"]), b1=stack(lambda bp: bp["b1"][None, :]),
        w2=stack(lambda bp: bp["w2"]), b2=stack(lambda bp: bp["b2"][None, :]),
        ln_g=params["ln_g"][None, :], ln_b=params["ln_b"][None, :],
        w_out=w_out, b_out=b_out,
    )


# ---------------- full forward (single fused Pallas call) ---------------------
@jax.jit
def diffusion_transformer_forward(kp, x, t, condition):
    B, S, _ = x.shape
    x_flat = x.reshape(B * S, INPUT_DIM)
    sin_t = sinusoidal_pos_emb(t, TIME_EMBED_DIM)  # host-side trig featurization

    kernel = functools.partial(
        _fused_dit_kernel,
        num_layers=NUM_LAYERS, num_heads=NUM_HEADS, head_dim=HEAD_DIM,
    )
    out_pad = pl.pallas_call(
        kernel,
        out_shape=jax.ShapeDtypeStruct((B * S, OUT_PAD), jnp.float32),
    )(
        x_flat, sin_t, condition,
        kp["sel"], kp["cosf"], kp["sinf"], kp["gmat"], kp["pswap"],
        kp["batch_bias"], kp["head_mask"],
        kp["w_in"], kp["b_in"], kp["w_t1"], kp["b_t1"],
        kp["w_t2"], kp["b_t2"], kp["w_c"], kp["b_c"],
        kp["w_ada"], kp["b_ada"], kp["w_qkv"], kp["b_qkv"],
        kp["qg"], kp["qb"], kp["kg"], kp["kb"],
        kp["w_proj"], kp["b_proj"], kp["w1"], kp["b1"], kp["w2"], kp["b2"],
        kp["ln_g"], kp["ln_b"], kp["w_out"], kp["b_out"],
    )
    return out_pad[:, :OUTPUT_DIM].reshape(B, S, OUTPUT_DIM)


# ---------------- pure-JAX reference (mirrors the PyTorch math) ---------------
def ref_forward(params, x, t, condition):
    B, S, _ = x.shape
    D, H, hd = HIDDEN_DIM, NUM_HEADS, HEAD_DIM
    hd2 = hd // 2

    h = x @ params["w_in"] + params["b_in"]
    temb = sinusoidal_pos_emb(t, TIME_EMBED_DIM)
    temb = _mish(temb @ params["w_t1"] + params["b_t1"])
    temb = temb @ params["w_t2"] + params["b_t2"]
    c = condition @ params["w_c"] + params["b_c"]
    tc = temb + c

    theta = 1.0 / (10000.0 ** (jnp.arange(0, D, 2, dtype=jnp.float32) / D))
    th = theta.reshape(H, hd2)
    pos = jnp.arange(S, dtype=jnp.float32)
    ang = pos[None, :, None] * th[:, None, :]
    cos = jnp.cos(ang)[None]  # [1, H, S, hd2]
    sin = jnp.sin(ang)[None]

    def rope(q):  # [B, H, S, hd]
        qe, qo = q[..., 0::2], q[..., 1::2]
        re = qe * cos - qo * sin
        ro = qo * cos + qe * sin
        return jnp.stack([re, ro], axis=-1).reshape(q.shape)

    def ln(v, eps):
        mu = jnp.mean(v, -1, keepdims=True)
        var = jnp.mean((v - mu) ** 2, -1, keepdims=True)
        return (v - mu) / jnp.sqrt(var + eps)

    for bp in params["blocks"]:
        a = _silu(_silu(tc))
        feats = a @ bp["w_ada"] + bp["b_ada"]
        g1, g2, s1, s2, sh1, sh2 = [
            feats[:, i * D:(i + 1) * D][:, None, :] for i in range(6)
        ]
        mod1 = ln(h, 1e-6) * (1 + s1) + sh1
        qkv = mod1 @ bp["w_qkv"] + bp["b_qkv"]
        q = qkv[..., :D].reshape(B, S, H, hd).transpose(0, 2, 1, 3)
        k = qkv[..., D:2 * D].reshape(B, S, H, hd).transpose(0, 2, 1, 3)
        v = qkv[..., 2 * D:].reshape(B, S, H, hd).transpose(0, 2, 1, 3)
        q = ln(q, 1e-5) * bp["qn_g"] + bp["qn_b"]
        k = ln(k, 1e-5) * bp["kn_g"] + bp["kn_b"]
        q = rope(q)
        k = rope(k)
        scores = jnp.einsum("bhqd,bhkd->bhqk", q, k) / math.sqrt(hd)
        p = jax.nn.softmax(scores, axis=-1)
        o = jnp.einsum("bhqk,bhkd->bhqd", p, v).transpose(0, 2, 1, 3).reshape(B, S, D)
        attn = o @ bp["w_proj"] + bp["b_proj"]
        h = h + g1 * attn
        mod2 = ln(h, 1e-6) * (1 + s2) + sh2
        hid = _gelu_tanh(mod2 @ bp["w1"] + bp["b1"])
        h = h + g2 * (hid @ bp["w2"] + bp["b2"])

    hn = ln(h, 1e-5) * params["ln_g"] + params["ln_b"]
    return hn @ params["w_out"] + params["b_out"]


# ---------------- main ---------------------------------------------------------
if __name__ == "__main__":
    key = jax.random.PRNGKey(0)
    kparam, kx, kt, kc = jax.random.split(key, 4)
    params = init_params(kparam)
    # weight re-layout done once, outside the forward pass
    kparams = prepare_inference_params(params, BATCH, SEQ)

    x = jax.random.normal(kx, (BATCH, SEQ, INPUT_DIM), jnp.float32)
    t = jax.random.uniform(kt, (BATCH,), jnp.float32) * 100.0  # diffusion timesteps
    condition = jax.random.normal(kc, (BATCH, COND_DIM), jnp.float32)

    out = diffusion_transformer_forward(kparams, x, t, condition)
    out = jax.block_until_ready(out)

    ref = ref_forward(params, x, t, condition)
    assert out.shape == (BATCH, SEQ, OUTPUT_DIM)
    assert bool(jnp.all(jnp.isfinite(out)))
    max_err = float(jnp.max(jnp.abs(out - ref)))
    # approx-reciprocal softmax normalization introduces ~1e-4 relative error;
    # everything else is exact f32, so 1e-2 is a comfortable (and tighter) bound.
    assert max_err < 1e-2, f"max abs err vs reference: {max_err}"

    print("KERNEL_OK")
</pallas_src>

<mosaic_0001>
module attributes {stable_mosaic.version = 11 : i64} {
  func.func @_fused_dit_kernel(%arg0: memref<16x10xf32, #tpu.memory_space<vmem>>, %arg1: memref<2x32xf32, #tpu.memory_space<vmem>>, %arg2: memref<2x12xf32, #tpu.memory_space<vmem>>, %arg3: memref<16x2xf32, #tpu.memory_space<vmem>>, %arg4: memref<16x32xf32, #tpu.memory_space<vmem>>, %arg5: memref<16x32xf32, #tpu.memory_space<vmem>>, %arg6: memref<32x32xf32, #tpu.memory_space<vmem>>, %arg7: memref<32x32xf32, #tpu.memory_space<vmem>>, %arg8: memref<16x16xf32, #tpu.memory_space<vmem>>, %arg9: memref<4x1x32xf32, #tpu.memory_space<vmem>>, %arg10: memref<10x32xf32, #tpu.memory_space<vmem>>, %arg11: memref<1x32xf32, #tpu.memory_space<vmem>>, %arg12: memref<32x128xf32, #tpu.memory_space<vmem>>, %arg13: memref<1x128xf32, #tpu.memory_space<vmem>>, %arg14: memref<128x32xf32, #tpu.memory_space<vmem>>, %arg15: memref<1x32xf32, #tpu.memory_space<vmem>>, %arg16: memref<12x32xf32, #tpu.memory_space<vmem>>, %arg17: memref<1x32xf32, #tpu.memory_space<vmem>>, %arg18: memref<2x32x192xf32, #tpu.memory_space<vmem>>, %arg19: memref<2x1x192xf32, #tpu.memory_space<vmem>>, %arg20: memref<2x32x96xf32, #tpu.memory_space<vmem>>, %arg21: memref<2x1x96xf32, #tpu.memory_space<vmem>>, %arg22: memref<2x1x32xf32, #tpu.memory_space<vmem>>, %arg23: memref<2x1x32xf32, #tpu.memory_space<vmem>>, %arg24: memref<2x1x32xf32, #tpu.memory_space<vmem>>, %arg25: memref<2x1x32xf32, #tpu.memory_space<vmem>>, %arg26: memref<2x32x32xf32, #tpu.memory_space<vmem>>, %arg27: memref<2x1x32xf32, #tpu.memory_space<vmem>>, %arg28: memref<2x32x128xf32, #tpu.memory_space<vmem>>, %arg29: memref<2x1x128xf32, #tpu.memory_space<vmem>>, %arg30: memref<2x128x32xf32, #tpu.memory_space<vmem>>, %arg31: memref<2x1x32xf32, #tpu.memory_space<vmem>>, %arg32: memref<1x32xf32, #tpu.memory_space<vmem>>, %arg33: memref<1x32xf32, #tpu.memory_space<vmem>>, %arg34: memref<32x128xf32, #tpu.memory_space<vmem>>, %arg35: memref<1x128xf32, #tpu.memory_space<vmem>>, %arg36: memref<16x128xf32, #tpu.memory_space<vmem>>) attributes {dimension_semantics = [], scalar_prefetch = 0 : i64, scratch_operands = 0 : i64, tpu.core_type = #tpu.core_type<tc>} {
    %c0 = arith.constant 0 : index
    %c0_0 = arith.constant 0 : index
    %0 = vector.load %arg6[%c0, %c0_0] : memref<32x32xf32, #tpu.memory_space<vmem>>, vector<32x32xf32>
    %c0_1 = arith.constant 0 : index
    %c0_2 = arith.constant 0 : index
    %1 = vector.load %arg7[%c0_1, %c0_2] : memref<32x32xf32, #tpu.memory_space<vmem>>, vector<32x32xf32>
    %c0_3 = arith.constant 0 : index
    %c0_4 = arith.constant 0 : index
    %2 = vector.load %arg4[%c0_3, %c0_4] : memref<16x32xf32, #tpu.memory_space<vmem>>, vector<16x32xf32>
    %c0_5 = arith.constant 0 : index
    %c0_6 = arith.constant 0 : index
    %3 = vector.load %arg5[%c0_5, %c0_6] : memref<16x32xf32, #tpu.memory_space<vmem>>, vector<16x32xf32>
    %c0_7 = arith.constant 0 : index
    %c0_8 = arith.constant 0 : index
    %4 = vector.load %arg8[%c0_7, %c0_8] : memref<16x16xf32, #tpu.memory_space<vmem>>, vector<16x16xf32>
    %c0_9 = arith.constant 0 : index
    %c0_10 = arith.constant 0 : index
    %5 = vector.load %arg0[%c0_9, %c0_10] : memref<16x10xf32, #tpu.memory_space<vmem>>, vector<16x10xf32>
    %c0_11 = arith.constant 0 : index
    %c0_12 = arith.constant 0 : index
    %6 = vector.load %arg10[%c0_11, %c0_12] : memref<10x32xf32, #tpu.memory_space<vmem>>, vector<10x32xf32>
    %cst = arith.constant dense<0.000000e+00> : vector<16x32xf32>
    %7 = tpu.matmul %5, %6, %cst {dimension_numbers = #tpu.dot_dimension_numbers<[1], [0], [0], [1], [0, 0, 1, 1], [], []>} : vector<16x10xf32>, vector<10x32xf32>, vector<16x32xf32> -> vector<16x32xf32>
    %c0_13 = arith.constant 0 : index
    %c0_14 = arith.constant 0 : index
    %8 = vector.load %arg11[%c0_13, %c0_14] : memref<1x32xf32, #tpu.memory_space<vmem>>, vector<1x32xf32>
    %9 = vector.broadcast %8 : vector<1x32xf32> to vector<16x32xf32>
    %10 = arith.addf %7, %9 : vector<16x32xf32>
    %c0_15 = arith.constant 0 : index
    %c0_16 = arith.constant 0 : index
    %11 = vector.load %arg1[%c0_15, %c0_16] : memref<2x32xf32, #tpu.memory_space<vmem>>, vector<2x32xf32>
    %c0_17 = arith.constant 0 : index
    %c0_18 = arith.constant 0 : index
    %12 = vector.load %arg12[%c0_17, %c0_18] : memref<32x128xf32, #tpu.memory_space<vmem>>, vector<32x128xf32>
    %cst_19 = arith.constant dense<0.000000e+00> : vector<2x128xf32>
    %13 = tpu.matmul %11, %12, %cst_19 {dimension_numbers = #tpu.dot_dimension_numbers<[1], [0], [0], [1], [0, 0, 1, 1], [], []>} : vector<2x32xf32>, vector<32x128xf32>, vector<2x128xf32> -> vector<2x128xf32>
    %c0_20 = arith.constant 0 : index
    %c0_21 = arith.constant 0 : index
    %14 = vector.load %arg13[%c0_20, %c0_21] : memref<1x128xf32, #tpu.memory_space<vmem>>, vector<1x128xf32>
    %15 = vector.broadcast %14 : vector<1x128xf32> to vector<2x128xf32>
    %16 = arith.addf %13, %15 : vector<2x128xf32>
    %cst_22 = arith.constant 0.000000e+00 : f32
    %17 = vector.broadcast %cst_22 : f32 to vector<2x128xf32>
    %18 = arith.maximumf %16, %17 : vector<2x128xf32>
    %19 = math.absf %16 : vector<2x128xf32>
    %cst_23 = arith.constant 0.000000e+00 : f32
    %20 = vector.broadcast %cst_23 : f32 to vector<2x128xf32>
    %21 = arith.subf %20, %19 : vector<2x128xf32>
    %22 = math.exp %21 : vector<2x128xf32>
    %cst_24 = arith.constant 1.000000e+00 : f32
    %23 = vector.broadcast %cst_24 : f32 to vector<2x128xf32>
    %24 = arith.addf %23, %22 : vector<2x128xf32>
    %25 = math.log %24 : vector<2x128xf32>
    %26 = arith.addf %18, %25 : vector<2x128xf32>
    %27 = math.tanh %26 : vector<2x128xf32>
    %28 = arith.mulf %16, %27 : vector<2x128xf32>
    %c0_25 = arith.constant 0 : index
    %c0_26 = arith.constant 0 : index
    %29 = vector.load %arg14[%c0_25, %c0_26] : memref<128x32xf32, #tpu.memory_space<vmem>>, vector<128x32xf32>
    %cst_27 = arith.constant dense<0.000000e+00> : vector<2x32xf32>
    %30 = tpu.matmul %28, %29, %cst_27 {dimension_numbers = #tpu.dot_dimension_numbers<[1], [0], [0], [1], [0, 0, 1, 1], [], []>} : vector<2x128xf32>, vector<128x32xf32>, vector<2x32xf32> -> vector<2x32xf32>
    %c0_28 = arith.constant 0 : index
    %c0_29 = arith.constant 0 : index
    %31 = vector.load %arg15[%c0_28, %c0_29] : memref<1x32xf32, #tpu.memory_space<vmem>>, vector<1x32xf32>
    %32 = vector.broadcast %31 : vector<1x32xf32> to vector<2x32xf32>
    %33 = arith.addf %30, %32 : vector<2x32xf32>
    %c0_30 = arith.constant 0 : index
    %c0_31 = arith.constant 0 : index
    %34 = vector.load %arg2[%c0_30, %c0_31] : memref<2x12xf32, #tpu.memory_space<vmem>>, vector<2x12xf32>
    %c0_32 = arith.constant 0 : index
    %c0_33 = arith.constant 0 : index
    %35 = vector.load %arg16[%c0_32, %c0_33] : memref<12x32xf32, #tpu.memory_space<vmem>>, vector<12x32xf32>
    %cst_34 = arith.constant dense<0.000000e+00> : vector<2x32xf32>
    %36 = tpu.matmul %34, %35, %cst_34 {dimension_numbers = #tpu.dot_dimension_numbers<[1], [0], [0], [1], [0, 0, 1, 1], [], []>} : vector<2x12xf32>, vector<12x32xf32>, vector<2x32xf32> -> vector<2x32xf32>
    %c0_35 = arith.constant 0 : index
    %c0_36 = arith.constant 0 : index
    %37 = vector.load %arg17[%c0_35, %c0_36] : memref<1x32xf32, #tpu.memory_space<vmem>>, vector<1x32xf32>
    %38 = vector.broadcast %37 : vector<1x32xf32> to vector<2x32xf32>
    %39 = arith.addf %36, %38 : vector<2x32xf32>
    %c0_37 = arith.constant 0 : index
    %c0_38 = arith.constant 0 : index
    %40 = vector.load %arg3[%c0_37, %c0_38] : memref<16x2xf32, #tpu.memory_space<vmem>>, vector<16x2xf32>
    %41 = arith.addf %33, %39 : vector<2x32xf32>
    %42 = arith.negf %41 : vector<2x32xf32>
    %43 = math.exp %42 : vector<2x32xf32>
    %cst_39 = arith.constant 1.000000e+00 : f32
    %44 = vector.broadcast %cst_39 : f32 to vector<2x32xf32>
    %45 = arith.addf %44, %43 : vector<2x32xf32>
    %46 = arith.divf %44, %45 : vector<2x32xf32>
    %47 = arith.mulf %41, %46 : vector<2x32xf32>
    %48 = arith.negf %47 : vector<2x32xf32>
    %49 = math.exp %48 : vector<2x32xf32>
    %cst_40 = arith.constant 1.000000e+00 : f32
    %50 = vector.broadcast %cst_40 : f32 to vector<2x32xf32>
    %51 = arith.addf %50, %49 : vector<2x32xf32>
    %52 = arith.divf %50, %51 : vector<2x32xf32>
    %53 = arith.mulf %47, %52 : vector<2x32xf32>
    %cst_41 = arith.constant dense<0.000000e+00> : vector<16x32xf32>
    %54 = tpu.matmul %40, %53, %cst_41 {dimension_numbers = #tpu.dot_dimension_numbers<[1], [0], [0], [1], [0, 0, 1, 1], [], []>} : vector<16x2xf32>, vector<2x32xf32>, vector<16x32xf32> -> vector<16x32xf32>
    %c0_42 = arith.constant 0 : index
    %c0_43 = arith.constant 0 : index
    %c0_44 = arith.constant 0 : index
    %55 = vector.load %arg18[%c0_42, %c0_43, %c0_44] : memref<2x32x192xf32, #tpu.memory_space<vmem>>, vector<1x32x192xf32>
    %56 = vector.shape_cast %55 : vector<1x32x192xf32> to vector<32x192xf32>
    %cst_45 = arith.constant dense<0.000000e+00> : vector<16x192xf32>
    %57 = tpu.matmul %54, %56, %cst_45 {dimension_numbers = #tpu.dot_dimension_numbers<[1], [0], [0], [1], [0, 0, 1, 1], [], []>} : vector<16x32xf32>, vector<32x192xf32>, vector<16x192xf32> -> vector<16x192xf32>
    %c0_46 = arith.constant 0 : index
    %c0_47 = arith.constant 0 : index
    %c0_48 = arith.constant 0 : index
    %58 = vector.load %arg19[%c0_46, %c0_47, %c0_48] : memref<2x1x192xf32, #tpu.memory_space<vmem>>, vector<1x1x192xf32>
    %59 = vector.shape_cast %58 : vector<1x1x192xf32> to vector<1x192xf32>
    %60 = vector.broadcast %59 : vector<1x192xf32> to vector<16x192xf32>
    %61 = arith.addf %57, %60 : vector<16x192xf32>
    %62 = vector.extract_strided_slice %61 {offsets = [0, 0], sizes = [16, 32], strides = [1, 1]} : vector<16x192xf32> to vector<16x32xf32>
    %63 = vector.extract_strided_slice %61 {offsets = [0, 32], sizes = [16, 32], strides = [1, 1]} : vector<16x192xf32> to vector<16x32xf32>
    %64 = vector.extract_strided_slice %61 {offsets = [0, 64], sizes = [16, 32], strides = [1, 1]} : vector<16x192xf32> to vector<16x32xf32>
    %65 = vector.extract_strided_slice %61 {offsets = [0, 96], sizes = [16, 32], strides = [1, 1]} : vector<16x192xf32> to vector<16x32xf32>
    %66 = vector.extract_strided_slice %61 {offsets = [0, 128], sizes = [16, 32], strides = [1, 1]} : vector<16x192xf32> to vector<16x32xf32>
    %67 = vector.extract_strided_slice %61 {offsets = [0, 160], sizes = [16, 32], strides = [1, 1]} : vector<16x192xf32> to vector<16x32xf32>
    %cst_49 = arith.constant dense<0.000000e+00> : vector<16xf32>
    %68 = vector.multi_reduction <add>, %10, %cst_49 [1] : vector<16x32xf32> to vector<16xf32>
    %69 = vector.shape_cast %68 : vector<16xf32> to vector<16x1xf32>
    %cst_50 = arith.constant 3.200000e+01 : f32
    %70 = vector.broadcast %cst_50 : f32 to vector<16x1xf32>
    %71 = arith.divf %69, %70 : vector<16x1xf32>
    %72 = vector.broadcast %71 : vector<16x1xf32> to vector<16x32xf32>
    %73 = arith.subf %10, %72 : vector<16x32xf32>
    %74 = arith.mulf %73, %73 : vector<16x32xf32>
    %cst_51 = arith.constant dense<0.000000e+00> : vector<16xf32>
    %75 = vector.multi_reduction <add>, %74, %cst_51 [1] : vector<16x32xf32> to vector<16xf32>
    %76 = vector.shape_cast %75 : vector<16xf32> to vector<16x1xf32>
    %cst_52 = arith.constant 3.200000e+01 : f32
    %77 = vector.broadcast %cst_52 : f32 to vector<16x1xf32>
    %78 = arith.divf %76, %77 : vector<16x1xf32>
    %79 = vector.broadcast %71 : vector<16x1xf32> to vector<16x32xf32>
    %80 = arith.subf %10, %79 : vector<16x32xf32>
    %cst_53 = arith.constant 9.99999997E-7 : f32
    %81 = vector.broadcast %cst_53 : f32 to vector<16x1xf32>
    %82 = arith.addf %78, %81 : vector<16x1xf32>
    %83 = math.rsqrt %82 : vector<16x1xf32>
    %84 = vector.broadcast %83 : vector<16x1xf32> to vector<16x32xf32>
    %85 = arith.mulf %80, %84 : vector<16x32xf32>
    %cst_54 = arith.constant 1.000000e+00 : f32
    %86 = vector.broadcast %cst_54 : f32 to vector<16x32xf32>
    %87 = arith.addf %86, %64 : vector<16x32xf32>
    %88 = arith.mulf %85, %87 : vector<16x32xf32>
    %89 = arith.addf %88, %66 : vector<16x32xf32>
    %c0_55 = arith.constant 0 : index
    %c0_56 = arith.constant 0 : index
    %c0_57 = arith.constant 0 : index
    %90 = vector.load %arg20[%c0_55, %c0_56, %c0_57] : memref<2x32x96xf32, #tpu.memory_space<vmem>>, vector<1x32x96xf32>
    %91 = vector.shape_cast %90 : vector<1x32x96xf32> to vector<32x96xf32>
    %cst_58 = arith.constant dense<0.000000e+00> : vector<16x96xf32>
    %92 = tpu.matmul %89, %91, %cst_58 {dimension_numbers = #tpu.dot_dimension_numbers<[1], [0], [0], [1], [0, 0, 1, 1], [], []>} : vector<16x32xf32>, vector<32x96xf32>, vector<16x96xf32> -> vector<16x96xf32>
    %c0_59 = arith.constant 0 : index
    %c0_60 = arith.constant 0 : index
    %c0_61 = arith.constant 0 : index
    %93 = vector.load %arg21[%c0_59, %c0_60, %c0_61] : memref<2x1x96xf32, #tpu.memory_space<vmem>>, vector<1x1x96xf32>
    %94 = vector.shape_cast %93 : vector<1x1x96xf32> to vector<1x96xf32>
    %95 = vector.broadcast %94 : vector<1x96xf32> to vector<16x96xf32>
    %96 = arith.addf %92, %95 : vector<16x96xf32>
    %97 = vector.extract_strided_slice %96 {offsets = [0, 0], sizes = [16, 32], strides = [1, 1]} : vector<16x96xf32> to vector<16x32xf32>
    %98 = vector.extract_strided_slice %96 {offsets = [0, 32], sizes = [16, 32], strides = [1, 1]} : vector<16x96xf32> to vector<16x32xf32>
    %99 = vector.extract_strided_slice %96 {offsets = [0, 64], sizes = [16, 32], strides = [1, 1]} : vector<16x96xf32> to vector<16x32xf32>
    %cst_62 = arith.constant dense<0.000000e+00> : vector<16x32xf32>
    %100 = tpu.matmul %97, %0, %cst_62 {dimension_numbers = #tpu.dot_dimension_numbers<[1], [0], [0], [1], [0, 0, 1, 1], [], []>} : vector<16x32xf32>, vector<32x32xf32>, vector<16x32xf32> -> vector<16x32xf32>
    %101 = arith.mulf %97, %97 : vector<16x32xf32>
    %cst_63 = arith.constant dense<0.000000e+00> : vector<16x32xf32>
    %102 = tpu.matmul %101, %0, %cst_63 {dimension_numbers = #tpu.dot_dimension_numbers<[1], [0], [0], [1], [0, 0, 1, 1], [], []>} : vector<16x32xf32>, vector<32x32xf32>, vector<16x32xf32> -> vector<16x32xf32>
    %103 = arith.mulf %100, %100 : vector<16x32xf32>
    %104 = arith.subf %102, %103 : vector<16x32xf32>
    %105 = arith.subf %97, %100 : vector<16x32xf32>
    %cst_64 = arith.constant 9.99999974E-6 : f32
    %106 = vector.broadcast %cst_64 : f32 to vector<16x32xf32>
    %107 = arith.addf %104, %106 : vector<16x32xf32>
    %108 = math.rsqrt %107 : vector<16x32xf32>
    %109 = arith.mulf %105, %108 : vector<16x32xf32>
    %c0_65 = arith.constant 0 : index
    %c0_66 = arith.constant 0 : index
    %c0_67 = arith.constant 0 : index
    %110 = vector.load %arg22[%c0_65, %c0_66, %c0_67] : memref<2x1x32xf32, #tpu.memory_space<vmem>>, vector<1x1x32xf32>
    %111 = vector.shape_cast %110 : vector<1x1x32xf32> to vector<1x32xf32>
    %112 = vector.broadcast %111 : vector<1x32xf32> to vector<16x32xf32>
    %113 = arith.mulf %109, %112 : vector<16x32xf32>
    %c0_68 = arith.constant 0 : index
    %c0_69 = arith.constant 0 : index
    %c0_70 = arith.constant 0 : index
    %114 = vector.load %arg23[%c0_68, %c0_69, %c0_70] : memref<2x1x32xf32, #tpu.memory_space<vmem>>, vector<1x1x32xf32>
    %115 = vector.shape_cast %114 : vector<1x1x32xf32> to vector<1x32xf32>
    %116 = vector.broadcast %115 : vector<1x32xf32> to vector<16x32xf32>
    %117 = arith.addf %113, %116 : vector<16x32xf32>
    %cst_71 = arith.constant dense<0.000000e+00> : vector<16x32xf32>
    %118 = tpu.matmul %98, %0, %cst_71 {dimension_numbers = #tpu.dot_dimension_numbers<[1], [0], [0], [1], [0, 0, 1, 1], [], []>} : vector<16x32xf32>, vector<32x32xf32>, vector<16x32xf32> -> vector<16x32xf32>
    %119 = arith.mulf %98, %98 : vector<16x32xf32>
    %cst_72 = arith.constant dense<0.000000e+00> : vector<16x32xf32>
    %120 = tpu.matmul %119, %0, %cst_72 {dimension_numbers = #tpu.dot_dimension_numbers<[1], [0], [0], [1], [0, 0, 1, 1], [], []>} : vector<16x32xf32>, vector<32x32xf32>, vector<16x32xf32> -> vector<16x32xf32>
    %121 = arith.mulf %118, %118 : vector<16x32xf32>
    %122 = arith.subf %120, %121 : vector<16x32xf32>
    %123 = arith.subf %98, %118 : vector<16x32xf32>
    %cst_73 = arith.constant 9.99999974E-6 : f32
    %124 = vector.broadcast %cst_73 : f32 to vector<16x32xf32>
    %125 = arith.addf %122, %124 : vector<16x32xf32>
    %126 = math.rsqrt %125 : vector<16x32xf32>
    %127 = arith.mulf %123, %126 : vector<16x32xf32>
    %c0_74 = arith.constant 0 : index
    %c0_75 = arith.constant 0 : index
    %c0_76 = arith.constant 0 : index
    %128 = vector.load %arg24[%c0_74, %c0_75, %c0_76] : memref<2x1x32xf32, #tpu.memory_space<vmem>>, vector<1x1x32xf32>
    %129 = vector.shape_cast %128 : vector<1x1x32xf32> to vector<1x32xf32>
    %130 = vector.broadcast %129 : vector<1x32xf32> to vector<16x32xf32>
    %131 = arith.mulf %127, %130 : vector<16x32xf32>
    %c0_77 = arith.constant 0 : index
    %c0_78 = arith.constant 0 : index
    %c0_79 = arith.constant 0 : index
    %132 = vector.load %arg25[%c0_77, %c0_78, %c0_79] : memref<2x1x32xf32, #tpu.memory_space<vmem>>, vector<1x1x32xf32>
    %133 = vector.shape_cast %132 : vector<1x1x32xf32> to vector<1x32xf32>
    %134 = vector.broadcast %133 : vector<1x32xf32> to vector<16x32xf32>
    %135 = arith.addf %131, %134 : vector<16x32xf32>
    %136 = arith.mulf %117, %2 : vector<16x32xf32>
    %cst_80 = arith.constant dense<0.000000e+00> : vector<16x32xf32>
    %137 = tpu.matmul %117, %1, %cst_80 {dimension_numbers = #tpu.dot_dimension_numbers<[1], [0], [0], [1], [0, 0, 1, 1], [], []>} : vector<16x32xf32>, vector<32x32xf32>, vector<16x32xf32> -> vector<16x32xf32>
    %138 = arith.mulf %137, %3 : vector<16x32xf32>
    %139 = arith.addf %136, %138 : vector<16x32xf32>
    %140 = arith.mulf %135, %2 : vector<16x32xf32>
    %cst_81 = arith.constant dense<0.000000e+00> : vector<16x32xf32>
    %141 = tpu.matmul %135, %1, %cst_81 {dimension_numbers = #tpu.dot_dimension_numbers<[1], [0], [0], [1], [0, 0, 1, 1], [], []>} : vector<16x32xf32>, vector<32x32xf32>, vector<16x32xf32> -> vector<16x32xf32>
    %142 = arith.mulf %141, %3 : vector<16x32xf32>
    %143 = arith.addf %140, %142 : vector<16x32xf32>
    %cst_82 = arith.constant 0.000000e+00 : f32
    %144 = vector.broadcast %cst_82 : f32 to vector<16x32xf32>
    %c0_83 = arith.constant 0 : index
    %c0_84 = arith.constant 0 : index
    %c0_85 = arith.constant 0 : index
    %145 = vector.load %arg9[%c0_83, %c0_84, %c0_85] : memref<4x1x32xf32, #tpu.memory_space<vmem>>, vector<1x1x32xf32>
    %146 = vector.shape_cast %145 : vector<1x1x32xf32> to vector<1x32xf32>
    %147 = vector.broadcast %146 : vector<1x32xf32> to vector<16x32xf32>
    %148 = arith.mulf %139, %147 : vector<16x32xf32>
    %cst_86 = arith.constant dense<0.000000e+00> : vector<16x16xf32>
    %149 = tpu.matmul %148, %143, %cst_86 {dimension_numbers = #tpu.dot_dimension_numbers<[1], [1], [0], [0], [0, 0, 1, 0], [], []>} : vector<16x32xf32>, vector<16x32xf32>, vector<16x16xf32> -> vector<16x16xf32>
    %cst_87 = arith.constant 0.353553385 : f32
    %150 = vector.broadcast %cst_87 : f32 to vector<16x16xf32>
    %151 = arith.mulf %149, %150 : vector<16x16xf32>
    %152 = arith.addf %151, %4 : vector<16x16xf32>
    %cst_88 = arith.constant dense<0xFF800000> : vector<16xf32>
    %153 = vector.multi_reduction <maximumf>, %152, %cst_88 [1] : vector<16x16xf32> to vector<16xf32>
    %154 = vector.shape_cast %153 : vector<16xf32> to vector<16x1xf32>
    %155 = vector.broadcast %154 : vector<16x1xf32> to vector<16x16xf32>
    %156 = arith.subf %152, %155 : vector<16x16xf32>
    %157 = math.exp %156 : vector<16x16xf32>
    %cst_89 = arith.constant dense<0.000000e+00> : vector<16xf32>
    %158 = vector.multi_reduction <add>, %157, %cst_89 [1] : vector<16x16xf32> to vector<16xf32>
    %159 = vector.shape_cast %158 : vector<16xf32> to vector<16x1xf32>
    %160 = tpu.reciprocal %159 {approx = true} : vector<16x1xf32> -> vector<16x1xf32>
    %161 = vector.broadcast %160 : vector<16x1xf32> to vector<16x16xf32>
    %162 = arith.mulf %157, %161 : vector<16x16xf32>
    %163 = vector.broadcast %146 : vector<1x32xf32> to vector<16x32xf32>
    %164 = arith.mulf %99, %163 : vector<16x32xf32>
    %cst_90 = arith.constant dense<0.000000e+00> : vector<16x32xf32>
    %165 = tpu.matmul %162, %164, %cst_90 {dimension_numbers = #tpu.dot_dimension_numbers<[1], [0], [0], [1], [0, 0, 1, 1], [], []>} : vector<16x16xf32>, vector<16x32xf32>, vector<16x32xf32> -> vector<16x32xf32>
    %166 = arith.addf %144, %165 : vector<16x32xf32>
    %c1 = arith.constant 1 : index
    %c0_91 = arith.constant 0 : index
    %c0_92 = arith.constant 0 : index
    %167 = vector.load %arg9[%c1, %c0_91, %c0_92] : memref<4x1x32xf32, #tpu.memory_space<vmem>>, vector<1x1x32xf32>
    %168 = vector.shape_cast %167 : vector<1x1x32xf32> to vector<1x32xf32>
    %169 = vector.broadcast %168 : vector<1x32xf32> to vector<16x32xf32>
    %170 = arith.mulf %139, %169 : vector<16x32xf32>
    %cst_93 = arith.constant dense<0.000000e+00> : vector<16x16xf32>
    %171 = tpu.matmul %170, %143, %cst_93 {dimension_numbers = #tpu.dot_dimension_numbers<[1], [1], [0], [0], [0, 0, 1, 0], [], []>} : vector<16x32xf32>, vector<16x32xf32>, vector<16x16xf32> -> vector<16x16xf32>
    %cst_94 = arith.constant 0.353553385 : f32
    %172 = vector.broadcast %cst_94 : f32 to vector<16x16xf32>
    %173 = arith.mulf %171, %172 : vector<16x16xf32>
    %174 = arith.addf %173, %4 : vector<16x16xf32>
    %cst_95 = arith.constant dense<0xFF800000> : vector<16xf32>
    %175 = vector.multi_reduction <maximumf>, %174, %cst_95 [1] : vector<16x16xf32> to vector<16xf32>
    %176 = vector.shape_cast %175 : vector<16xf32> to vector<16x1xf32>
    %177 = vector.broadcast %176 : vector<16x1xf32> to vector<16x16xf32>
    %178 = arith.subf %174, %177 : vector<16x16xf32>
    %179 = math.exp %178 : vector<16x16xf32>
    %cst_96 = arith.constant dense<0.000000e+00> : vector<16xf32>
    %180 = vector.multi_reduction <add>, %179, %cst_96 [1] : vector<16x16xf32> to vector<16xf32>
    %181 = vector.shape_cast %180 : vector<16xf32> to vector<16x1xf32>
    %182 = tpu.reciprocal %181 {approx = true} : vector<16x1xf32> -> vector<16x1xf32>
    %183 = vector.broadcast %182 : vector<16x1xf32> to vector<16x16xf32>
    %184 = arith.mulf %179, %183 : vector<16x16xf32>
    %185 = vector.broadcast %168 : vector<1x32xf32> to vector<16x32xf32>
    %186 = arith.mulf %99, %185 : vector<16x32xf32>
    %cst_97 = arith.constant dense<0.000000e+00> : vector<16x32xf32>
    %187 = tpu.matmul %184, %186, %cst_97 {dimension_numbers = #tpu.dot_dimension_numbers<[1], [0], [0], [1], [0, 0, 1, 1], [], []>} : vector<16x16xf32>, vector<16x32xf32>, vector<16x32xf32> -> vector<16x32xf32>
    %188 = arith.addf %166, %187 : vector<16x32xf32>
    %c2 = arith.constant 2 : index
    %c0_98 = arith.constant 0 : index
    %c0_99 = arith.constant 0 : index
    %189 = vector.load %arg9[%c2, %c0_98, %c0_99] : memref<4x1x32xf32, #tpu.memory_space<vmem>>, vector<1x1x32xf32>
    %190 = vector.shape_cast %189 : vector<1x1x32xf32> to vector<1x32xf32>
    %191 = vector.broadcast %190 : vector<1x32xf32> to vector<16x32xf32>
    %192 = arith.mulf %139, %191 : vector<16x32xf32>
    %cst_100 = arith.constant dense<0.000000e+00> : vector<16x16xf32>
    %193 = tpu.matmul %192, %143, %cst_100 {dimension_numbers = #tpu.dot_dimension_numbers<[1], [1], [0], [0], [0, 0, 1, 0], [], []>} : vector<16x32xf32>, vector<16x32xf32>, vector<16x16xf32> -> vector<16x16xf32>
    %cst_101 = arith.constant 0.353553385 : f32
    %194 = vector.broadcast %cst_101 : f32 to vector<16x16xf32>
    %195 = arith.mulf %193, %194 : vector<16x16xf32>
    %196 = arith.addf %195, %4 : vector<16x16xf32>
    %cst_102 = arith.constant dense<0xFF800000> : vector<16xf32>
    %197 = vector.multi_reduction <maximumf>, %196, %cst_102 [1] : vector<16x16xf32> to vector<16xf32>
    %198 = vector.shape_cast %197 : vector<16xf32> to vector<16x1xf32>
    %199 = vector.broadcast %198 : vector<16x1xf32> to vector<16x16xf32>
    %200 = arith.subf %196, %199 : vector<16x16xf32>
    %201 = math.exp %200 : vector<16x16xf32>
    %cst_103 = arith.constant dense<0.000000e+00> : vector<16xf32>
    %202 = vector.multi_reduction <add>, %201, %cst_103 [1] : vector<16x16xf32> to vector<16xf32>
    %203 = vector.shape_cast %202 : vector<16xf32> to vector<16x1xf32>
    %204 = tpu.reciprocal %203 {approx = true} : vector<16x1xf32> -> vector<16x1xf32>
    %205 = vector.broadcast %204 : vector<16x1xf32> to vector<16x16xf32>
    %206 = arith.mulf %201, %205 : vector<16x16xf32>
    %207 = vector.broadcast %190 : vector<1x32xf32> to vector<16x32xf32>
    %208 = arith.mulf %99, %207 : vector<16x32xf32>
    %cst_104 = arith.constant dense<0.000000e+00> : vector<16x32xf32>
    %209 = tpu.matmul %206, %208, %cst_104 {dimension_numbers = #tpu.dot_dimension_numbers<[1], [0], [0], [1], [0, 0, 1, 1], [], []>} : vector<16x16xf32>, vector<16x32xf32>, vector<16x32xf32> -> vector<16x32xf32>
    %210 = arith.addf %188, %209 : vector<16x32xf32>
    %c3 = arith.constant 3 : index
    %c0_105 = arith.constant 0 : index
    %c0_106 = arith.constant 0 : index
    %211 = vector.load %arg9[%c3, %c0_105, %c0_106] : memref<4x1x32xf32, #tpu.memory_space<vmem>>, vector<1x1x32xf32>
    %212 = vector.shape_cast %211 : vector<1x1x32xf32> to vector<1x32xf32>
    %213 = vector.broadcast %212 : vector<1x32xf32> to vector<16x32xf32>
    %214 = arith.mulf %139, %213 : vector<16x32xf32>
    %cst_107 = arith.constant dense<0.000000e+00> : vector<16x16xf32>
    %215 = tpu.matmul %214, %143, %cst_107 {dimension_numbers = #tpu.dot_dimension_numbers<[1], [1], [0], [0], [0, 0, 1, 0], [], []>} : vector<16x32xf32>, vector<16x32xf32>, vector<16x16xf32> -> vector<16x16xf32>
    %cst_108 = arith.constant 0.353553385 : f32
    %216 = vector.broadcast %cst_108 : f32 to vector<16x16xf32>
    %217 = arith.mulf %215, %216 : vector<16x16xf32>
    %218 = arith.addf %217, %4 : vector<16x16xf32>
    %cst_109 = arith.constant dense<0xFF800000> : vector<16xf32>
    %219 = vector.multi_reduction <maximumf>, %218, %cst_109 [1] : vector<16x16xf32> to vector<16xf32>
    %220 = vector.shape_cast %219 : vector<16xf32> to vector<16x1xf32>
    %221 = vector.broadcast %220 : vector<16x1xf32> to vector<16x16xf32>
    %222 = arith.subf %218, %221 : vector<16x16xf32>
    %223 = math.exp %222 : vector<16x16xf32>
    %cst_110 = arith.constant dense<0.000000e+00> : vector<16xf32>
    %224 = vector.multi_reduction <add>, %223, %cst_110 [1] : vector<16x16xf32> to vector<16xf32>
    %225 = vector.shape_cast %224 : vector<16xf32> to vector<16x1xf32>
    %226 = tpu.reciprocal %225 {approx = true} : vector<16x1xf32> -> vector<16x1xf32>
    %227 = vector.broadcast %226 : vector<16x1xf32> to vector<16x16xf32>
    %228 = arith.mulf %223, %227 : vector<16x16xf32>
    %229 = vector.broadcast %212 : vector<1x32xf32> to vector<16x32xf32>
    %230 = arith.mulf %99, %229 : vector<16x32xf32>
    %cst_111 = arith.constant dense<0.000000e+00> : vector<16x32xf32>
    %231 = tpu.matmul %228, %230, %cst_111 {dimension_numbers = #tpu.dot_dimension_numbers<[1], [0], [0], [1], [0, 0, 1, 1], [], []>} : vector<16x16xf32>, vector<16x32xf32>, vector<16x32xf32> -> vector<16x32xf32>
    %232 = arith.addf %210, %231 : vector<16x32xf32>
    %c0_112 = arith.constant 0 : index
    %c0_113 = arith.constant 0 : index
    %c0_114 = arith.constant 0 : index
    %233 = vector.load %arg26[%c0_112, %c0_113, %c0_114] : memref<2x32x32xf32, #tpu.memory_space<vmem>>, vector<1x32x32xf32>
    %234 = vector.shape_cast %233 : vector<1x32x32xf32> to vector<32x32xf32>
    %cst_115 = arith.constant dense<0.000000e+00> : vector<16x32xf32>
    %235 = tpu.matmul %232, %234, %cst_115 {dimension_numbers = #tpu.dot_dimension_numbers<[1], [0], [0], [1], [0, 0, 1, 1], [], []>} : vector<16x32xf32>, vector<32x32xf32>, vector<16x32xf32> -> vector<16x32xf32>
    %c0_116 = arith.constant 0 : index
    %c0_117 = arith.constant 0 : index
    %c0_118 = arith.constant 0 : index
    %236 = vector.load %arg27[%c0_116, %c0_117, %c0_118] : memref<2x1x32xf32, #tpu.memory_space<vmem>>, vector<1x1x32xf32>
    %237 = vector.shape_cast %236 : vector<1x1x32xf32> to vector<1x32xf32>
    %238 = vector.broadcast %237 : vector<1x32xf32> to vector<16x32xf32>
    %239 = arith.addf %235, %238 : vector<16x32xf32>
    %240 = arith.mulf %62, %239 : vector<16x32xf32>
    %241 = arith.addf %10, %240 : vector<16x32xf32>
    %cst_119 = arith.constant dense<0.000000e+00> : vector<16xf32>
    %242 = vector.multi_reduction <add>, %241, %cst_119 [1] : vector<16x32xf32> to vector<16xf32>
    %243 = vector.shape_cast %242 : vector<16xf32> to vector<16x1xf32>
    %cst_120 = arith.constant 3.200000e+01 : f32
    %244 = vector.broadcast %cst_120 : f32 to vector<16x1xf32>
    %245 = arith.divf %243, %244 : vector<16x1xf32>
    %246 = vector.broadcast %245 : vector<16x1xf32> to vector<16x32xf32>
    %247 = arith.subf %241, %246 : vector<16x32xf32>
    %248 = arith.mulf %247, %247 : vector<16x32xf32>
    %cst_121 = arith.constant dense<0.000000e+00> : vector<16xf32>
    %249 = vector.multi_reduction <add>, %248, %cst_121 [1] : vector<16x32xf32> to vector<16xf32>
    %250 = vector.shape_cast %249 : vector<16xf32> to vector<16x1xf32>
    %cst_122 = arith.constant 3.200000e+01 : f32
    %251 = vector.broadcast %cst_122 : f32 to vector<16x1xf32>
    %252 = arith.divf %250, %251 : vector<16x1xf32>
    %253 = vector.broadcast %245 : vector<16x1xf32> to vector<16x32xf32>
    %254 = arith.subf %241, %253 : vector<16x32xf32>
    %cst_123 = arith.constant 9.99999997E-7 : f32
    %255 = vector.broadcast %cst_123 : f32 to vector<16x1xf32>
    %256 = arith.addf %252, %255 : vector<16x1xf32>
    %257 = math.rsqrt %256 : vector<16x1xf32>
    %258 = vector.broadcast %257 : vector<16x1xf32> to vector<16x32xf32>
    %259 = arith.mulf %254, %258 : vector<16x32xf32>
    %cst_124 = arith.constant 1.000000e+00 : f32
    %260 = vector.broadcast %cst_124 : f32 to vector<16x32xf32>
    %261 = arith.addf %260, %65 : vector<16x32xf32>
    %262 = arith.mulf %259, %261 : vector<16x32xf32>
    %263 = arith.addf %262, %67 : vector<16x32xf32>
    %c0_125 = arith.constant 0 : index
    %c0_126 = arith.constant 0 : index
    %c0_127 = arith.constant 0 : index
    %264 = vector.load %arg28[%c0_125, %c0_126, %c0_127] : memref<2x32x128xf32, #tpu.memory_space<vmem>>, vector<1x32x128xf32>
    %265 = vector.shape_cast %264 : vector<1x32x128xf32> to vector<32x128xf32>
    %cst_128 = arith.constant dense<0.000000e+00> : vector<16x128xf32>
    %266 = tpu.matmul %263, %265, %cst_128 {dimension_numbers = #tpu.dot_dimension_numbers<[1], [0], [0], [1], [0, 0, 1, 1], [], []>} : vector<16x32xf32>, vector<32x128xf32>, vector<16x128xf32> -> vector<16x128xf32>
    %c0_129 = arith.constant 0 : index
    %c0_130 = arith.constant 0 : index
    %c0_131 = arith.constant 0 : index
    %267 = vector.load %arg29[%c0_129, %c0_130, %c0_131] : memref<2x1x128xf32, #tpu.memory_space<vmem>>, vector<1x1x128xf32>
    %268 = vector.shape_cast %267 : vector<1x1x128xf32> to vector<1x128xf32>
    %269 = vector.broadcast %268 : vector<1x128xf32> to vector<16x128xf32>
    %270 = arith.addf %266, %269 : vector<16x128xf32>
    %cst_132 = arith.constant 5.000000e-01 : f32
    %271 = vector.broadcast %cst_132 : f32 to vector<16x128xf32>
    %272 = arith.mulf %271, %270 : vector<16x128xf32>
    %cst_133 = arith.constant 4.471500e-02 : f32
    %273 = vector.broadcast %cst_133 : f32 to vector<16x128xf32>
    %274 = arith.mulf %273, %270 : vector<16x128xf32>
    %275 = arith.mulf %274, %270 : vector<16x128xf32>
    %276 = arith.mulf %275, %270 : vector<16x128xf32>
    %277 = arith.addf %270, %276 : vector<16x128xf32>
    %cst_134 = arith.constant 0.797884583 : f32
    %278 = vector.broadcast %cst_134 : f32 to vector<16x128xf32>
    %279 = arith.mulf %278, %277 : vector<16x128xf32>
    %280 = math.tanh %279 : vector<16x128xf32>
    %cst_135 = arith.constant 1.000000e+00 : f32
    %281 = vector.broadcast %cst_135 : f32 to vector<16x128xf32>
    %282 = arith.addf %281, %280 : vector<16x128xf32>
    %283 = arith.mulf %272, %282 : vector<16x128xf32>
    %c0_136 = arith.constant 0 : index
    %c0_137 = arith.constant 0 : index
    %c0_138 = arith.constant 0 : index
    %284 = vector.load %arg30[%c0_136, %c0_137, %c0_138] : memref<2x128x32xf32, #tpu.memory_space<vmem>>, vector<1x128x32xf32>
    %285 = vector.shape_cast %284 : vector<1x128x32xf32> to vector<128x32xf32>
    %cst_139 = arith.constant dense<0.000000e+00> : vector<16x32xf32>
    %286 = tpu.matmul %283, %285, %cst_139 {dimension_numbers = #tpu.dot_dimension_numbers<[1], [0], [0], [1], [0, 0, 1, 1], [], []>} : vector<16x128xf32>, vector<128x32xf32>, vector<16x32xf32> -> vector<16x32xf32>
    %c0_140 = arith.constant 0 : index
    %c0_141 = arith.constant 0 : index
    %c0_142 = arith.constant 0 : index
    %287 = vector.load %arg31[%c0_140, %c0_141, %c0_142] : memref<2x1x32xf32, #tpu.memory_space<vmem>>, vector<1x1x32xf32>
    %288 = vector.shape_cast %287 : vector<1x1x32xf32> to vector<1x32xf32>
    %289 = vector.broadcast %288 : vector<1x32xf32> to vector<16x32xf32>
    %290 = arith.addf %286, %289 : vector<16x32xf32>
    %291 = arith.mulf %63, %290 : vector<16x32xf32>
    %292 = arith.addf %241, %291 : vector<16x32xf32>
    %c1_143 = arith.constant 1 : index
    %c0_144 = arith.constant 0 : index
    %c0_145 = arith.constant 0 : index
    %293 = vector.load %arg18[%c1_143, %c0_144, %c0_145] : memref<2x32x192xf32, #tpu.memory_space<vmem>>, vector<1x32x192xf32>
    %294 = vector.shape_cast %293 : vector<1x32x192xf32> to vector<32x192xf32>
    %cst_146 = arith.constant dense<0.000000e+00> : vector<16x192xf32>
    %295 = tpu.matmul %54, %294, %cst_146 {dimension_numbers = #tpu.dot_dimension_numbers<[1], [0], [0], [1], [0, 0, 1, 1], [], []>} : vector<16x32xf32>, vector<32x192xf32>, vector<16x192xf32> -> vector<16x192xf32>
    %c1_147 = arith.constant 1 : index
    %c0_148 = arith.constant 0 : index
    %c0_149 = arith.constant 0 : index
    %296 = vector.load %arg19[%c1_147, %c0_148, %c0_149] : memref<2x1x192xf32, #tpu.memory_space<vmem>>, vector<1x1x192xf32>
    %297 = vector.shape_cast %296 : vector<1x1x192xf32> to vector<1x192xf32>
    %298 = vector.broadcast %297 : vector<1x192xf32> to vector<16x192xf32>
    %299 = arith.addf %295, %298 : vector<16x192xf32>
    %300 = vector.extract_strided_slice %299 {offsets = [0, 0], sizes = [16, 32], strides = [1, 1]} : vector<16x192xf32> to vector<16x32xf32>
    %301 = vector.extract_strided_slice %299 {offsets = [0, 32], sizes = [16, 32], strides = [1, 1]} : vector<16x192xf32> to vector<16x32xf32>
    %302 = vector.extract_strided_slice %299 {offsets = [0, 64], sizes = [16, 32], strides = [1, 1]} : vector<16x192xf32> to vector<16x32xf32>
    %303 = vector.extract_strided_slice %299 {offsets = [0, 96], sizes = [16, 32], strides = [1, 1]} : vector<16x192xf32> to vector<16x32xf32>
    %304 = vector.extract_strided_slice %299 {offsets = [0, 128], sizes = [16, 32], strides = [1, 1]} : vector<16x192xf32> to vector<16x32xf32>
    %305 = vector.extract_strided_slice %299 {offsets = [0, 160], sizes = [16, 32], strides = [1, 1]} : vector<16x192xf32> to vector<16x32xf32>
    %cst_150 = arith.constant dense<0.000000e+00> : vector<16xf32>
    %306 = vector.multi_reduction <add>, %292, %cst_150 [1] : vector<16x32xf32> to vector<16xf32>
    %307 = vector.shape_cast %306 : vector<16xf32> to vector<16x1xf32>
    %cst_151 = arith.constant 3.200000e+01 : f32
    %308 = vector.broadcast %cst_151 : f32 to vector<16x1xf32>
    %309 = arith.divf %307, %308 : vector<16x1xf32>
    %310 = vector.broadcast %309 : vector<16x1xf32> to vector<16x32xf32>
    %311 = arith.subf %292, %310 : vector<16x32xf32>
    %312 = arith.mulf %311, %311 : vector<16x32xf32>
    %cst_152 = arith.constant dense<0.000000e+00> : vector<16xf32>
    %313 = vector.multi_reduction <add>, %312, %cst_152 [1] : vector<16x32xf32> to vector<16xf32>
    %314 = vector.shape_cast %313 : vector<16xf32> to vector<16x1xf32>
    %cst_153 = arith.constant 3.200000e+01 : f32
    %315 = vector.broadcast %cst_153 : f32 to vector<16x1xf32>
    %316 = arith.divf %314, %315 : vector<16x1xf32>
    %317 = vector.broadcast %309 : vector<16x1xf32> to vector<16x32xf32>
    %318 = arith.subf %292, %317 : vector<16x32xf32>
    %cst_154 = arith.constant 9.99999997E-7 : f32
    %319 = vector.broadcast %cst_154 : f32 to vector<16x1xf32>
    %320 = arith.addf %316, %319 : vector<16x1xf32>
    %321 = math.rsqrt %320 : vector<16x1xf32>
    %322 = vector.broadcast %321 : vector<16x1xf32> to vector<16x32xf32>
    %323 = arith.mulf %318, %322 : vector<16x32xf32>
    %cst_155 = arith.constant 1.000000e+00 : f32
    %324 = vector.broadcast %cst_155 : f32 to vector<16x32xf32>
    %325 = arith.addf %324, %302 : vector<16x32xf32>
    %326 = arith.mulf %323, %325 : vector<16x32xf32>
    %327 = arith.addf %326, %304 : vector<16x32xf32>
    %c1_156 = arith.constant 1 : index
    %c0_157 = arith.constant 0 : index
    %c0_158 = arith.constant 0 : index
    %328 = vector.load %arg20[%c1_156, %c0_157, %c0_158] : memref<2x32x96xf32, #tpu.memory_space<vmem>>, vector<1x32x96xf32>
    %329 = vector.shape_cast %328 : vector<1x32x96xf32> to vector<32x96xf32>
    %cst_159 = arith.constant dense<0.000000e+00> : vector<16x96xf32>
    %330 = tpu.matmul %327, %329, %cst_159 {dimension_numbers = #tpu.dot_dimension_numbers<[1], [0], [0], [1], [0, 0, 1, 1], [], []>} : vector<16x32xf32>, vector<32x96xf32>, vector<16x96xf32> -> vector<16x96xf32>
    %c1_160 = arith.constant 1 : index
    %c0_161 = arith.constant 0 : index
    %c0_162 = arith.constant 0 : index
    %331 = vector.load %arg21[%c1_160, %c0_161, %c0_162] : memref<2x1x96xf32, #tpu.memory_space<vmem>>, vector<1x1x96xf32>
    %332 = vector.shape_cast %331 : vector<1x1x96xf32> to vector<1x96xf32>
    %333 = vector.broadcast %332 : vector<1x96xf32> to vector<16x96xf32>
    %334 = arith.addf %330, %333 : vector<16x96xf32>
    %335 = vector.extract_strided_slice %334 {offsets = [0, 0], sizes = [16, 32], strides = [1, 1]} : vector<16x96xf32> to vector<16x32xf32>
    %336 = vector.extract_strided_slice %334 {offsets = [0, 32], sizes = [16, 32], strides = [1, 1]} : vector<16x96xf32> to vector<16x32xf32>
    %337 = vector.extract_strided_slice %334 {offsets = [0, 64], sizes = [16, 32], strides = [1, 1]} : vector<16x96xf32> to vector<16x32xf32>
    %cst_163 = arith.constant dense<0.000000e+00> : vector<16x32xf32>
    %338 = tpu.matmul %335, %0, %cst_163 {dimension_numbers = #tpu.dot_dimension_numbers<[1], [0], [0], [1], [0, 0, 1, 1], [], []>} : vector<16x32xf32>, vector<32x32xf32>, vector<16x32xf32> -> vector<16x32xf32>
    %339 = arith.mulf %335, %335 : vector<16x32xf32>
    %cst_164 = arith.constant dense<0.000000e+00> : vector<16x32xf32>
    %340 = tpu.matmul %339, %0, %cst_164 {dimension_numbers = #tpu.dot_dimension_numbers<[1], [0], [0], [1], [0, 0, 1, 1], [], []>} : vector<16x32xf32>, vector<32x32xf32>, vector<16x32xf32> -> vector<16x32xf32>
    %341 = arith.mulf %338, %338 : vector<16x32xf32>
    %342 = arith.subf %340, %341 : vector<16x32xf32>
    %343 = arith.subf %335, %338 : vector<16x32xf32>
    %cst_165 = arith.constant 9.99999974E-6 : f32
    %344 = vector.broadcast %cst_165 : f32 to vector<16x32xf32>
    %345 = arith.addf %342, %344 : vector<16x32xf32>
    %346 = math.rsqrt %345 : vector<16x32xf32>
    %347 = arith.mulf %343, %346 : vector<16x32xf32>
    %c1_166 = arith.constant 1 : index
    %c0_167 = arith.constant 0 : index
    %c0_168 = arith.constant 0 : index
    %348 = vector.load %arg22[%c1_166, %c0_167, %c0_168] : memref<2x1x32xf32, #tpu.memory_space<vmem>>, vector<1x1x32xf32>
    %349 = vector.shape_cast %348 : vector<1x1x32xf32> to vector<1x32xf32>
    %350 = vector.broadcast %349 : vector<1x32xf32> to vector<16x32xf32>
    %351 = arith.mulf %347, %350 : vector<16x32xf32>
    %c1_169 = arith.constant 1 : index
    %c0_170 = arith.constant 0 : index
    %c0_171 = arith.constant 0 : index
    %352 = vector.load %arg23[%c1_169, %c0_170, %c0_171] : memref<2x1x32xf32, #tpu.memory_space<vmem>>, vector<1x1x32xf32>
    %353 = vector.shape_cast %352 : vector<1x1x32xf32> to vector<1x32xf32>
    %354 = vector.broadcast %353 : vector<1x32xf32> to vector<16x32xf32>
    %355 = arith.addf %351, %354 : vector<16x32xf32>
    %cst_172 = arith.constant dense<0.000000e+00> : vector<16x32xf32>
    %356 = tpu.matmul %336, %0, %cst_172 {dimension_numbers = #tpu.dot_dimension_numbers<[1], [0], [0], [1], [0, 0, 1, 1], [], []>} : vector<16x32xf32>, vector<32x32xf32>, vector<16x32xf32> -> vector<16x32xf32>
    %357 = arith.mulf %336, %336 : vector<16x32xf32>
    %cst_173 = arith.constant dense<0.000000e+00> : vector<16x32xf32>
    %358 = tpu.matmul %357, %0, %cst_173 {dimension_numbers = #tpu.dot_dimension_numbers<[1], [0], [0], [1], [0, 0, 1, 1], [], []>} : vector<16x32xf32>, vector<32x32xf32>, vector<16x32xf32> -> vector<16x32xf32>
    %359 = arith.mulf %356, %356 : vector<16x32xf32>
    %360 = arith.subf %358, %359 : vector<16x32xf32>
    %361 = arith.subf %336, %356 : vector<16x32xf32>
    %cst_174 = arith.constant 9.99999974E-6 : f32
    %362 = vector.broadcast %cst_174 : f32 to vector<16x32xf32>
    %363 = arith.addf %360, %362 : vector<16x32xf32>
    %364 = math.rsqrt %363 : vector<16x32xf32>
    %365 = arith.mulf %361, %364 : vector<16x32xf32>
    %c1_175 = arith.constant 1 : index
    %c0_176 = arith.constant 0 : index
    %c0_177 = arith.constant 0 : index
    %366 = vector.load %arg24[%c1_175, %c0_176, %c0_177] : memref<2x1x32xf32, #tpu.memory_space<vmem>>, vector<1x1x32xf32>
    %367 = vector.shape_cast %366 : vector<1x1x32xf32> to vector<1x32xf32>
    %368 = vector.broadcast %367 : vector<1x32xf32> to vector<16x32xf32>
    %369 = arith.mulf %365, %368 : vector<16x32xf32>
    %c1_178 = arith.constant 1 : index
    %c0_179 = arith.constant 0 : index
    %c0_180 = arith.constant 0 : index
    %370 = vector.load %arg25[%c1_178, %c0_179, %c0_180] : memref<2x1x32xf32, #tpu.memory_space<vmem>>, vector<1x1x32xf32>
    %371 = vector.shape_cast %370 : vector<1x1x32xf32> to vector<1x32xf32>
    %372 = vector.broadcast %371 : vector<1x32xf32> to vector<16x32xf32>
    %373 = arith.addf %369, %372 : vector<16x32xf32>
    %374 = arith.mulf %355, %2 : vector<16x32xf32>
    %cst_181 = arith.constant dense<0.000000e+00> : vector<16x32xf32>
    %375 = tpu.matmul %355, %1, %cst_181 {dimension_numbers = #tpu.dot_dimension_numbers<[1], [0], [0], [1], [0, 0, 1, 1], [], []>} : vector<16x32xf32>, vector<32x32xf32>, vector<16x32xf32> -> vector<16x32xf32>
    %376 = arith.mulf %375, %3 : vector<16x32xf32>
    %377 = arith.addf %374, %376 : vector<16x32xf32>
    %378 = arith.mulf %373, %2 : vector<16x32xf32>
    %cst_182 = arith.constant dense<0.000000e+00> : vector<16x32xf32>
    %379 = tpu.matmul %373, %1, %cst_182 {dimension_numbers = #tpu.dot_dimension_numbers<[1], [0], [0], [1], [0, 0, 1, 1], [], []>} : vector<16x32xf32>, vector<32x32xf32>, vector<16x32xf32> -> vector<16x32xf32>
    %380 = arith.mulf %379, %3 : vector<16x32xf32>
    %381 = arith.addf %378, %380 : vector<16x32xf32>
    %cst_183 = arith.constant 0.000000e+00 : f32
    %382 = vector.broadcast %cst_183 : f32 to vector<16x32xf32>
    %c0_184 = arith.constant 0 : index
    %c0_185 = arith.constant 0 : index
    %c0_186 = arith.constant 0 : index
    %383 = vector.load %arg9[%c0_184, %c0_185, %c0_186] : memref<4x1x32xf32, #tpu.memory_space<vmem>>, vector<1x1x32xf32>
    %384 = vector.shape_cast %383 : vector<1x1x32xf32> to vector<1x32xf32>
    %385 = vector.broadcast %384 : vector<1x32xf32> to vector<16x32xf32>
    %386 = arith.mulf %377, %385 : vector<16x32xf32>
    %cst_187 = arith.constant dense<0.000000e+00> : vector<16x16xf32>
    %387 = tpu.matmul %386, %381, %cst_187 {dimension_numbers = #tpu.dot_dimension_numbers<[1], [1], [0], [0], [0, 0, 1, 0], [], []>} : vector<16x32xf32>, vector<16x32xf32>, vector<16x16xf32> -> vector<16x16xf32>
    %cst_188 = arith.constant 0.353553385 : f32
    %388 = vector.broadcast %cst_188 : f32 to vector<16x16xf32>
    %389 = arith.mulf %387, %388 : vector<16x16xf32>
    %390 = arith.addf %389, %4 : vector<16x16xf32>
    %cst_189 = arith.constant dense<0xFF800000> : vector<16xf32>
    %391 = vector.multi_reduction <maximumf>, %390, %cst_189 [1] : vector<16x16xf32> to vector<16xf32>
    %392 = vector.shape_cast %391 : vector<16xf32> to vector<16x1xf32>
    %393 = vector.broadcast %392 : vector<16x1xf32> to vector<16x16xf32>
    %394 = arith.subf %390, %393 : vector<16x16xf32>
    %395 = math.exp %394 : vector<16x16xf32>
    %cst_190 = arith.constant dense<0.000000e+00> : vector<16xf32>
    %396 = vector.multi_reduction <add>, %395, %cst_190 [1] : vector<16x16xf32> to vector<16xf32>
    %397 = vector.shape_cast %396 : vector<16xf32> to vector<16x1xf32>
    %398 = tpu.reciprocal %397 {approx = true} : vector<16x1xf32> -> vector<16x1xf32>
    %399 = vector.broadcast %398 : vector<16x1xf32> to vector<16x16xf32>
    %400 = arith.mulf %395, %399 : vector<16x16xf32>
    %401 = vector.broadcast %384 : vector<1x32xf32> to vector<16x32xf32>
    %402 = arith.mulf %337, %401 : vector<16x32xf32>
    %cst_191 = arith.constant dense<0.000000e+00> : vector<16x32xf32>
    %403 = tpu.matmul %400, %402, %cst_191 {dimension_numbers = #tpu.dot_dimension_numbers<[1], [0], [0], [1], [0, 0, 1, 1], [], []>} : vector<16x16xf32>, vector<16x32xf32>, vector<16x32xf32> -> vector<16x32xf32>
    %404 = arith.addf %382, %403 : vector<16x32xf32>
    %c1_192 = arith.constant 1 : index
    %c0_193 = arith.constant 0 : index
    %c0_194 = arith.constant 0 : index
    %405 = vector.load %arg9[%c1_192, %c0_193, %c0_194] : memref<4x1x32xf32, #tpu.memory_space<vmem>>, vector<1x1x32xf32>
    %406 = vector.shape_cast %405 : vector<1x1x32xf32> to vector<1x32xf32>
    %407 = vector.broadcast %406 : vector<1x32xf32> to vector<16x32xf32>
    %408 = arith.mulf %377, %407 : vector<16x32xf32>
    %cst_195 = arith.constant dense<0.000000e+00> : vector<16x16xf32>
    %409 = tpu.matmul %408, %381, %cst_195 {dimension_numbers = #tpu.dot_dimension_numbers<[1], [1], [0], [0], [0, 0, 1, 0], [], []>} : vector<16x32xf32>, vector<16x32xf32>, vector<16x16xf32> -> vector<16x16xf32>
    %cst_196 = arith.constant 0.353553385 : f32
    %410 = vector.broadcast %cst_196 : f32 to vector<16x16xf32>
    %411 = arith.mulf %409, %410 : vector<16x16xf32>
    %412 = arith.addf %411, %4 : vector<16x16xf32>
    %cst_197 = arith.constant dense<0xFF800000> : vector<16xf32>
    %413 = vector.multi_reduction <maximumf>, %412, %cst_197 [1] : vector<16x16xf32> to vector<16xf32>
    %414 = vector.shape_cast %413 : vector<16xf32> to vector<16x1xf32>
    %415 = vector.broadcast %414 : vector<16x1xf32> to vector<16x16xf32>
    %416 = arith.subf %412, %415 : vector<16x16xf32>
    %417 = math.exp %416 : vector<16x16xf32>
    %cst_198 = arith.constant dense<0.000000e+00> : vector<16xf32>
    %418 = vector.multi_reduction <add>, %417, %cst_198 [1] : vector<16x16xf32> to vector<16xf32>
    %419 = vector.shape_cast %418 : vector<16xf32> to vector<16x1xf32>
    %420 = tpu.reciprocal %419 {approx = true} : vector<16x1xf32> -> vector<16x1xf32>
    %421 = vector.broadcast %420 : vector<16x1xf32> to vector<16x16xf32>
    %422 = arith.mulf %417, %421 : vector<16x16xf32>
    %423 = vector.broadcast %406 : vector<1x32xf32> to vector<16x32xf32>
    %424 = arith.mulf %337, %423 : vector<16x32xf32>
    %cst_199 = arith.constant dense<0.000000e+00> : vector<16x32xf32>
    %425 = tpu.matmul %422, %424, %cst_199 {dimension_numbers = #tpu.dot_dimension_numbers<[1], [0], [0], [1], [0, 0, 1, 1], [], []>} : vector<16x16xf32>, vector<16x32xf32>, vector<16x32xf32> -> vector<16x32xf32>
    %426 = arith.addf %404, %425 : vector<16x32xf32>
    %c2_200 = arith.constant 2 : index
    %c0_201 = arith.constant 0 : index
    %c0_202 = arith.constant 0 : index
    %427 = vector.load %arg9[%c2_200, %c0_201, %c0_202] : memref<4x1x32xf32, #tpu.memory_space<vmem>>, vector<1x1x32xf32>
    %428 = vector.shape_cast %427 : vector<1x1x32xf32> to vector<1x32xf32>
    %429 = vector.broadcast %428 : vector<1x32xf32> to vector<16x32xf32>
    %430 = arith.mulf %377, %429 : vector<16x32xf32>
    %cst_203 = arith.constant dense<0.000000e+00> : vector<16x16xf32>
    %431 = tpu.matmul %430, %381, %cst_203 {dimension_numbers = #tpu.dot_dimension_numbers<[1], [1], [0], [0], [0, 0, 1, 0], [], []>} : vector<16x32xf32>, vector<16x32xf32>, vector<16x16xf32> -> vector<16x16xf32>
    %cst_204 = arith.constant 0.353553385 : f32
    %432 = vector.broadcast %cst_204 : f32 to vector<16x16xf32>
    %433 = arith.mulf %431, %432 : vector<16x16xf32>
    %434 = arith.addf %433, %4 : vector<16x16xf32>
    %cst_205 = arith.constant dense<0xFF800000> : vector<16xf32>
    %435 = vector.multi_reduction <maximumf>, %434, %cst_205 [1] : vector<16x16xf32> to vector<16xf32>
    %436 = vector.shape_cast %435 : vector<16xf32> to vector<16x1xf32>
    %437 = vector.broadcast %436 : vector<16x1xf32> to vector<16x16xf32>
    %438 = arith.subf %434, %437 : vector<16x16xf32>
    %439 = math.exp %438 : vector<16x16xf32>
    %cst_206 = arith.constant dense<0.000000e+00> : vector<16xf32>
    %440 = vector.multi_reduction <add>, %439, %cst_206 [1] : vector<16x16xf32> to vector<16xf32>
    %441 = vector.shape_cast %440 : vector<16xf32> to vector<16x1xf32>
    %442 = tpu.reciprocal %441 {approx = true} : vector<16x1xf32> -> vector<16x1xf32>
    %443 = vector.broadcast %442 : vector<16x1xf32> to vector<16x16xf32>
    %444 = arith.mulf %439, %443 : vector<16x16xf32>
    %445 = vector.broadcast %428 : vector<1x32xf32> to vector<16x32xf32>
    %446 = arith.mulf %337, %445 : vector<16x32xf32>
    %cst_207 = arith.constant dense<0.000000e+00> : vector<16x32xf32>
    %447 = tpu.matmul %444, %446, %cst_207 {dimension_numbers = #tpu.dot_dimension_numbers<[1], [0], [0], [1], [0, 0, 1, 1], [], []>} : vector<16x16xf32>, vector<16x32xf32>, vector<16x32xf32> -> vector<16x32xf32>
    %448 = arith.addf %426, %447 : vector<16x32xf32>
    %c3_208 = arith.constant 3 : index
    %c0_209 = arith.constant 0 : index
    %c0_210 = arith.constant 0 : index
    %449 = vector.load %arg9[%c3_208, %c0_209, %c0_210] : memref<4x1x32xf32, #tpu.memory_space<vmem>>, vector<1x1x32xf32>
    %450 = vector.shape_cast %449 : vector<1x1x32xf32> to vector<1x32xf32>
    %451 = vector.broadcast %450 : vector<1x32xf32> to vector<16x32xf32>
    %452 = arith.mulf %377, %451 : vector<16x32xf32>
    %cst_211 = arith.constant dense<0.000000e+00> : vector<16x16xf32>
    %453 = tpu.matmul %452, %381, %cst_211 {dimension_numbers = #tpu.dot_dimension_numbers<[1], [1], [0], [0], [0, 0, 1, 0], [], []>} : vector<16x32xf32>, vector<16x32xf32>, vector<16x16xf32> -> vector<16x16xf32>
    %cst_212 = arith.constant 0.353553385 : f32
    %454 = vector.broadcast %cst_212 : f32 to vector<16x16xf32>
    %455 = arith.mulf %453, %454 : vector<16x16xf32>
    %456 = arith.addf %455, %4 : vector<16x16xf32>
    %cst_213 = arith.constant dense<0xFF800000> : vector<16xf32>
    %457 = vector.multi_reduction <maximumf>, %456, %cst_213 [1] : vector<16x16xf32> to vector<16xf32>
    %458 = vector.shape_cast %457 : vector<16xf32> to vector<16x1xf32>
    %459 = vector.broadcast %458 : vector<16x1xf32> to vector<16x16xf32>
    %460 = arith.subf %456, %459 : vector<16x16xf32>
    %461 = math.exp %460 : vector<16x16xf32>
    %cst_214 = arith.constant dense<0.000000e+00> : vector<16xf32>
    %462 = vector.multi_reduction <add>, %461, %cst_214 [1] : vector<16x16xf32> to vector<16xf32>
    %463 = vector.shape_cast %462 : vector<16xf32> to vector<16x1xf32>
    %464 = tpu.reciprocal %463 {approx = true} : vector<16x1xf32> -> vector<16x1xf32>
    %465 = vector.broadcast %464 : vector<16x1xf32> to vector<16x16xf32>
    %466 = arith.mulf %461, %465 : vector<16x16xf32>
    %467 = vector.broadcast %450 : vector<1x32xf32> to vector<16x32xf32>
    %468 = arith.mulf %337, %467 : vector<16x32xf32>
    %cst_215 = arith.constant dense<0.000000e+00> : vector<16x32xf32>
    %469 = tpu.matmul %466, %468, %cst_215 {dimension_numbers = #tpu.dot_dimension_numbers<[1], [0], [0], [1], [0, 0, 1, 1], [], []>} : vector<16x16xf32>, vector<16x32xf32>, vector<16x32xf32> -> vector<16x32xf32>
    %470 = arith.addf %448, %469 : vector<16x32xf32>
    %c1_216 = arith.constant 1 : index
    %c0_217 = arith.constant 0 : index
    %c0_218 = arith.constant 0 : index
    %471 = vector.load %arg26[%c1_216, %c0_217, %c0_218] : memref<2x32x32xf32, #tpu.memory_space<vmem>>, vector<1x32x32xf32>
    %472 = vector.shape_cast %471 : vector<1x32x32xf32> to vector<32x32xf32>
    %cst_219 = arith.constant dense<0.000000e+00> : vector<16x32xf32>
    %473 = tpu.matmul %470, %472, %cst_219 {dimension_numbers = #tpu.dot_dimension_numbers<[1], [0], [0], [1], [0, 0, 1, 1], [], []>} : vector<16x32xf32>, vector<32x32xf32>, vector<16x32xf32> -> vector<16x32xf32>
    %c1_220 = arith.constant 1 : index
    %c0_221 = arith.constant 0 : index
    %c0_222 = arith.constant 0 : index
    %474 = vector.load %arg27[%c1_220, %c0_221, %c0_222] : memref<2x1x32xf32, #tpu.memory_space<vmem>>, vector<1x1x32xf32>
    %475 = vector.shape_cast %474 : vector<1x1x32xf32> to vector<1x32xf32>
    %476 = vector.broadcast %475 : vector<1x32xf32> to vector<16x32xf32>
    %477 = arith.addf %473, %476 : vector<16x32xf32>
    %478 = arith.mulf %300, %477 : vector<16x32xf32>
    %479 = arith.addf %292, %478 : vector<16x32xf32>
    %cst_223 = arith.constant dense<0.000000e+00> : vector<16xf32>
    %480 = vector.multi_reduction <add>, %479, %cst_223 [1] : vector<16x32xf32> to vector<16xf32>
    %481 = vector.shape_cast %480 : vector<16xf32> to vector<16x1xf32>
    %cst_224 = arith.constant 3.200000e+01 : f32
    %482 = vector.broadcast %cst_224 : f32 to vector<16x1xf32>
    %483 = arith.divf %481, %482 : vector<16x1xf32>
    %484 = vector.broadcast %483 : vector<16x1xf32> to vector<16x32xf32>
    %485 = arith.subf %479, %484 : vector<16x32xf32>
    %486 = arith.mulf %485, %485 : vector<16x32xf32>
    %cst_225 = arith.constant dense<0.000000e+00> : vector<16xf32>
    %487 = vector.multi_reduction <add>, %486, %cst_225 [1] : vector<16x32xf32> to vector<16xf32>
    %488 = vector.shape_cast %487 : vector<16xf32> to vector<16x1xf32>
    %cst_226 = arith.constant 3.200000e+01 : f32
    %489 = vector.broadcast %cst_226 : f32 to vector<16x1xf32>
    %490 = arith.divf %488, %489 : vector<16x1xf32>
    %491 = vector.broadcast %483 : vector<16x1xf32> to vector<16x32xf32>
    %492 = arith.subf %479, %491 : vector<16x32xf32>
    %cst_227 = arith.constant 9.99999997E-7 : f32
    %493 = vector.broadcast %cst_227 : f32 to vector<16x1xf32>
    %494 = arith.addf %490, %493 : vector<16x1xf32>
    %495 = math.rsqrt %494 : vector<16x1xf32>
    %496 = vector.broadcast %495 : vector<16x1xf32> to vector<16x32xf32>
    %497 = arith.mulf %492, %496 : vector<16x32xf32>
    %cst_228 = arith.constant 1.000000e+00 : f32
    %498 = vector.broadcast %cst_228 : f32 to vector<16x32xf32>
    %499 = arith.addf %498, %303 : vector<16x32xf32>
    %500 = arith.mulf %497, %499 : vector<16x32xf32>
    %501 = arith.addf %500, %305 : vector<16x32xf32>
    %c1_229 = arith.constant 1 : index
    %c0_230 = arith.constant 0 : index
    %c0_231 = arith.constant 0 : index
    %502 = vector.load %arg28[%c1_229, %c0_230, %c0_231] : memref<2x32x128xf32, #tpu.memory_space<vmem>>, vector<1x32x128xf32>
    %503 = vector.shape_cast %502 : vector<1x32x128xf32> to vector<32x128xf32>
    %cst_232 = arith.constant dense<0.000000e+00> : vector<16x128xf32>
    %504 = tpu.matmul %501, %503, %cst_232 {dimension_numbers = #tpu.dot_dimension_numbers<[1], [0], [0], [1], [0, 0, 1, 1], [], []>} : vector<16x32xf32>, vector<32x128xf32>, vector<16x128xf32> -> vector<16x128xf32>
    %c1_233 = arith.constant 1 : index
    %c0_234 = arith.constant 0 : index
    %c0_235 = arith.constant 0 : index
    %505 = vector.load %arg29[%c1_233, %c0_234, %c0_235] : memref<2x1x128xf32, #tpu.memory_space<vmem>>, vector<1x1x128xf32>
    %506 = vector.shape_cast %505 : vector<1x1x128xf32> to vector<1x128xf32>
    %507 = vector.broadcast %506 : vector<1x128xf32> to vector<16x128xf32>
    %508 = arith.addf %504, %507 : vector<16x128xf32>
    %cst_236 = arith.constant 5.000000e-01 : f32
    %509 = vector.broadcast %cst_236 : f32 to vector<16x128xf32>
    %510 = arith.mulf %509, %508 : vector<16x128xf32>
    %cst_237 = arith.constant 4.471500e-02 : f32
    %511 = vector.broadcast %cst_237 : f32 to vector<16x128xf32>
    %512 = arith.mulf %511, %508 : vector<16x128xf32>
    %513 = arith.mulf %512, %508 : vector<16x128xf32>
    %514 = arith.mulf %513, %508 : vector<16x128xf32>
    %515 = arith.addf %508, %514 : vector<16x128xf32>
    %cst_238 = arith.constant 0.797884583 : f32
    %516 = vector.broadcast %cst_238 : f32 to vector<16x128xf32>
    %517 = arith.mulf %516, %515 : vector<16x128xf32>
    %518 = math.tanh %517 : vector<16x128xf32>
    %cst_239 = arith.constant 1.000000e+00 : f32
    %519 = vector.broadcast %cst_239 : f32 to vector<16x128xf32>
    %520 = arith.addf %519, %518 : vector<16x128xf32>
    %521 = arith.mulf %510, %520 : vector<16x128xf32>
    %c1_240 = arith.constant 1 : index
    %c0_241 = arith.constant 0 : index
    %c0_242 = arith.constant 0 : index
    %522 = vector.load %arg30[%c1_240, %c0_241, %c0_242] : memref<2x128x32xf32, #tpu.memory_space<vmem>>, vector<1x128x32xf32>
    %523 = vector.shape_cast %522 : vector<1x128x32xf32> to vector<128x32xf32>
    %cst_243 = arith.constant dense<0.000000e+00> : vector<16x32xf32>
    %524 = tpu.matmul %521, %523, %cst_243 {dimension_numbers = #tpu.dot_dimension_numbers<[1], [0], [0], [1], [0, 0, 1, 1], [], []>} : vector<16x128xf32>, vector<128x32xf32>, vector<16x32xf32> -> vector<16x32xf32>
    %c1_244 = arith.constant 1 : index
    %c0_245 = arith.constant 0 : index
    %c0_246 = arith.constant 0 : index
    %525 = vector.load %arg31[%c1_244, %c0_245, %c0_246] : memref<2x1x32xf32, #tpu.memory_space<vmem>>, vector<1x1x32xf32>
    %526 = vector.shape_cast %525 : vector<1x1x32xf32> to vector<1x32xf32>
    %527 = vector.broadcast %526 : vector<1x32xf32> to vector<16x32xf32>
    %528 = arith.addf %524, %527 : vector<16x32xf32>
    %529 = arith.mulf %301, %528 : vector<16x32xf32>
    %530 = arith.addf %479, %529 : vector<16x32xf32>
    %cst_247 = arith.constant dense<0.000000e+00> : vector<16xf32>
    %531 = vector.multi_reduction <add>, %530, %cst_247 [1] : vector<16x32xf32> to vector<16xf32>
    %532 = vector.shape_cast %531 : vector<16xf32> to vector<16x1xf32>
    %cst_248 = arith.constant 3.200000e+01 : f32
    %533 = vector.broadcast %cst_248 : f32 to vector<16x1xf32>
    %534 = arith.divf %532, %533 : vector<16x1xf32>
    %535 = vector.broadcast %534 : vector<16x1xf32> to vector<16x32xf32>
    %536 = arith.subf %530, %535 : vector<16x32xf32>
    %537 = arith.mulf %536, %536 : vector<16x32xf32>
    %cst_249 = arith.constant dense<0.000000e+00> : vector<16xf32>
    %538 = vector.multi_reduction <add>, %537, %cst_249 [1] : vector<16x32xf32> to vector<16xf32>
    %539 = vector.shape_cast %538 : vector<16xf32> to vector<16x1xf32>
    %cst_250 = arith.constant 3.200000e+01 : f32
    %540 = vector.broadcast %cst_250 : f32 to vector<16x1xf32>
    %541 = arith.divf %539, %540 : vector<16x1xf32>
    %542 = vector.broadcast %534 : vector<16x1xf32> to vector<16x32xf32>
    %543 = arith.subf %530, %542 : vector<16x32xf32>
    %cst_251 = arith.constant 9.99999974E-6 : f32
    %544 = vector.broadcast %cst_251 : f32 to vector<16x1xf32>
    %545 = arith.addf %541, %544 : vector<16x1xf32>
    %546 = math.rsqrt %545 : vector<16x1xf32>
    %547 = vector.broadcast %546 : vector<16x1xf32> to vector<16x32xf32>
    %548 = arith.mulf %543, %547 : vector<16x32xf32>
    %c0_252 = arith.constant 0 : index
    %c0_253 = arith.constant 0 : index
    %549 = vector.load %arg32[%c0_252, %c0_253] : memref<1x32xf32, #tpu.memory_space<vmem>>, vector<1x32xf32>
    %550 = vector.broadcast %549 : vector<1x32xf32> to vector<16x32xf32>
    %551 = arith.mulf %548, %550 : vector<16x32xf32>
    %c0_254 = arith.constant 0 : index
    %c0_255 = arith.constant 0 : index
    %552 = vector.load %arg33[%c0_254, %c0_255] : memref<1x32xf32, #tpu.memory_space<vmem>>, vector<1x32xf32>
    %553 = vector.broadcast %552 : vector<1x32xf32> to vector<16x32xf32>
    %554 = arith.addf %551, %553 : vector<16x32xf32>
    %c0_256 = arith.constant 0 : index
    %c0_257 = arith.constant 0 : index
    %555 = vector.load %arg34[%c0_256, %c0_257] : memref<32x128xf32, #tpu.memory_space<vmem>>, vector<32x128xf32>
    %cst_258 = arith.constant dense<0.000000e+00> : vector<16x128xf32>
    %556 = tpu.matmul %554, %555, %cst_258 {dimension_numbers = #tpu.dot_dimension_numbers<[1], [0], [0], [1], [0, 0, 1, 1], [], []>} : vector<16x32xf32>, vector<32x128xf32>, vector<16x128xf32> -> vector<16x128xf32>
    %c0_259 = arith.constant 0 : index
    %c0_260 = arith.constant 0 : index
    %557 = vector.load %arg35[%c0_259, %c0_260] : memref<1x128xf32, #tpu.memory_space<vmem>>, vector<1x128xf32>
    %558 = vector.broadcast %557 : vector<1x128xf32> to vector<16x128xf32>
    %559 = arith.addf %556, %558 : vector<16x128xf32>
    %c0_261 = arith.constant 0 : index
    %c0_262 = arith.constant 0 : index
    %560 = vector.load %arg36[%c0_261, %c0_262] : memref<16x128xf32, #tpu.memory_space<vmem>>, vector<16x128xf32>
    tpu.vector_store %arg36[%c0_261, %c0_262], %559 {strides = array<i32>} : memref<16x128xf32, #tpu.memory_space<vmem>>, vector<16x128xf32>,
    return
  }
}

</mosaic_0001>

<llo_original>
// kernel: diffusion_transformer_forward.1
$region0: #{diffusion_transformer_forward.1}
  #allocation0 [shape = 'u32[]', space=smem, size = 0x4, offset = 0x4, fixed_abs, tag = 'smem constant byte address 0x4 - core index']
  #allocation1 [shape = 'u32[144,128]{1,0:T(1,128)}', space=vmem, size = 0x12000, scoped, tag = 'internal scratch']
  %s0 = inlined_call_operand.smem [shape: u32[37], index: -1, kind: input, shape index: {}]
  %s1 = sld [smem:[%s0]]
  %s2 = scalar_lea.smem %s0, 1
  %s3 = sld [smem:[%s2]]
  %s4 = scalar_lea.smem %s0, 2
  %s5 = sld [smem:[%s4]]
  %s6 = scalar_lea.smem %s0, 3
  %s7 = sld [smem:[%s6]]
  %s8 = scalar_lea.smem %s0, 4
  %s9 = sld [smem:[%s8]]
  %s10 = scalar_lea.smem %s0, 5
  %s11 = sld [smem:[%s10]]
  %s12 = scalar_lea.smem %s0, 6
  %s13 = sld [smem:[%s12]]
  %s14 = scalar_lea.smem %s0, 7
  %s15 = sld [smem:[%s14]]
  %s16 = scalar_lea.smem %s0, 8
  %s17 = sld [smem:[%s16]]
  %s18 = scalar_lea.smem %s0, 9
  %s19 = sld [smem:[%s18]]
  %s20 = scalar_lea.smem %s0, 10
  %s21 = sld [smem:[%s20]]
  %s22 = scalar_lea.smem %s0, 11
  %s23 = sld [smem:[%s22]]
  %s24 = scalar_lea.smem %s0, 12
  %s25 = sld [smem:[%s24]]
  %s26 = scalar_lea.smem %s0, 13
  %s27 = sld [smem:[%s26]]
  %s28 = scalar_lea.smem %s0, 14
  %s29 = sld [smem:[%s28]]
  %s30 = scalar_lea.smem %s0, 15
  %s31 = sld [smem:[%s30]]
  %s32 = scalar_lea.smem %s0, 16
  %s33 = sld [smem:[%s32]]
  %s34 = scalar_lea.smem %s0, 17
  %s35 = sld [smem:[%s34]]
  %s36 = scalar_lea.smem %s0, 18
  %s37 = sld [smem:[%s36]]
  %s38 = scalar_lea.smem %s0, 19
  %s39 = sld [smem:[%s38]]
  %s40 = scalar_lea.smem %s0, 20
  %s41 = sld [smem:[%s40]]
  %s42 = scalar_lea.smem %s0, 21
  %s43 = sld [smem:[%s42]]
  %s44 = scalar_lea.smem %s0, 22
  %s45 = sld [smem:[%s44]]
  %s46 = scalar_lea.smem %s0, 23
  %s47 = sld [smem:[%s46]]
  %s48 = scalar_lea.smem %s0, 24
  %s49 = sld [smem:[%s48]]
  %s50 = scalar_lea.smem %s0, 25
  %s51 = sld [smem:[%s50]]
  %s52 = scalar_lea.smem %s0, 26
  %s53 = sld [smem:[%s52]]
  %s54 = scalar_lea.smem %s0, 27
  %s55 = sld [smem:[%s54]]
  %s56 = scalar_lea.smem %s0, 28
  %s57 = sld [smem:[%s56]]
  %s58 = scalar_lea.smem %s0, 29
  %s59 = sld [smem:[%s58]]
  %s60 = scalar_lea.smem %s0, 30
  %s61 = sld [smem:[%s60]]
  %s62 = scalar_lea.smem %s0, 31
  %s63 = sld [smem:[%s62]]
  %s64 = scalar_lea.smem %s0, 32
  %s65 = sld [smem:[%s64]]
  %s66 = scalar_lea.smem %s0, 33
  %s67 = sld [smem:[%s66]]
  %s68 = scalar_lea.smem %s0, 34
  %s69 = sld [smem:[%s68]]
  %s70 = scalar_lea.smem %s0, 35
  %s71 = sld [smem:[%s70]]
  %s72 = scalar_lea.smem %s0, 36
  %s73 = sld [smem:[%s72]]
  %s74 = sld [smem:[#allocation0]]
  $region230: #{diffusion_transformer_forward.1} parent=0
    _
  %s76 = ssub.s32 1, %s74
  %s77 = scalar_select 0, %s76, %s74
  $region1: #{diffusion_transformer_forward.1} parent=0
    #allocation2 [shape = 'u8[8192]{0}', space=vmem, size = 0x2000, scoped, tag = 'input window, operand 4, single buffered']
    #allocation3 [shape = 's32[1]{0}', space=sflag, size = 0x4, scoped, tag = 'scoped memory for diffusion_transformer_forward.1']
    #allocation4 [shape = 'u8[8192]{0}', space=vmem, size = 0x2000, scoped, tag = 'input window, operand 8, single buffered']
    #allocation5 [shape = 's32[1]{0}', space=sflag, size = 0x4, scoped, tag = 'scoped memory for diffusion_transformer_forward.1']
    #allocation6 [shape = 'u8[2048]{0}', space=vmem, size = 0x800, scoped, tag = 'input window, operand 9, single buffered']
    #allocation7 [shape = 'u8[512]{0}', space=vmem, size = 0x400, scoped, tag = 'input window, operand 11, single buffered']
    #allocation8 [shape = 's32[1]{0}', space=sflag, size = 0x4, scoped, tag = 'scoped memory for diffusion_transformer_forward.1']
    #allocation9 [shape = 'u8[512]{0}', space=vmem, size = 0x400, scoped, tag = 'input window, operand 13, single buffered']
    #allocation10 [shape = 'u8[512]{0}', space=vmem, size = 0x400, scoped, tag = 'input window, operand 15, single buffered']
    #allocation11 [shape = 's32[1]{0}', space=sflag, size = 0x4, scoped, tag = 'scoped memory for diffusion_transformer_forward.1']
    #allocation12 [shape = 'u8[512]{0}', space=vmem, size = 0x400, scoped, tag = 'input window, operand 17, single buffered']
    #allocation13 [shape = 'u8[2048]{0}', space=vmem, size = 0x800, scoped, tag = 'input window, operand 19, single buffered']
    #allocation14 [shape = 's32[1]{0}', space=sflag, size = 0x4, scoped, tag = 'scoped memory for diffusion_transformer_forward.1']
    #allocation15 [shape = 'u8[1024]{0}', space=vmem, size = 0x400, scoped, tag = 'input window, operand 21, single buffered']
    #allocation16 [shape = 'u8[1024]{0}', space=vmem, size = 0x400, scoped, tag = 'input window, operand 22, single buffered']
    #allocation17 [shape = 's32[1]{0}', space=sflag, size = 0x4, scoped, tag = 'scoped memory for diffusion_transformer_forward.1']
    #allocation18 [shape = 'u8[1024]{0}', space=vmem, size = 0x400, scoped, tag = 'input window, operand 23, single buffered']
    #allocation19 [shape = 'u8[1024]{0}', space=vmem, size = 0x400, scoped, tag = 'input window, operand 24, single buffered']
    #allocation20 [shape = 's32[1]{0}', space=sflag, size = 0x4, scoped, tag = 'scoped memory for diffusion_transformer_forward.1']
    #allocation21 [shape = 'u8[1024]{0}', space=vmem, size = 0x400, scoped, tag = 'input window, operand 25, single buffered']
    #allocation22 [shape = 'u8[1024]{0}', space=vmem, size = 0x400, scoped, tag = 'input window, operand 27, single buffered']
    #allocation23 [shape = 's32[1]{0}', space=sflag, size = 0x4, scoped, tag = 'scoped memory for diffusion_transformer_forward.1']
    #allocation24 [shape = 'u8[1024]{0}', space=vmem, size = 0x400, scoped, tag = 'input window, operand 29, single buffered']
    #allocation25 [shape = 'u8[1024]{0}', space=vmem, size = 0x400, scoped, tag = 'input window, operand 31, single buffered']
    #allocation26 [shape = 's32[1]{0}', space=sflag, size = 0x4, scoped, tag = 'scoped memory for diffusion_transformer_forward.1']
    #allocation27 [shape = 'u8[512]{0}', space=vmem, size = 0x400, scoped, tag = 'input window, operand 32, single buffered']
    #allocation28 [shape = 'u8[512]{0}', space=vmem, size = 0x400, scoped, tag = 'input window, operand 33, single buffered']
    #allocation29 [shape = 's32[1]{0}', space=sflag, size = 0x4, scoped, tag = 'scoped memory for diffusion_transformer_forward.1']
    #allocation30 [shape = 'u8[512]{0}', space=vmem, size = 0x400, scoped, tag = 'input window, operand 35, single buffered']
    %78 = vsyncpa [#allocation3], 0
    %79 = vsyncpa [#allocation5], 0
    %80 = vsyncpa [#allocation8], 0
    %81 = vsyncpa [#allocation11], 0
    %82 = vsyncpa [#allocation14], 0
    %83 = vsyncpa [#allocation17], 0
    %84 = vsyncpa [#allocation20], 0
    %85 = vsyncpa [#allocation23], 0
    %86 = vsyncpa [#allocation26], 0
    %87 = vsyncpa [#allocation29], 0
    // Predicated region
    $region2: #{diffusion_transformer_forward.1} parent=1 // pred_check
      _
    $region3: #{diffusion_transformer_forward.1} parent=1 // pred_check_branch
      %89 = sbr.rel (0) target = $region5
    $region4: #{diffusion_transformer_forward.1} parent=1 // pred_region
      _
    $region5: #{diffusion_transformer_forward.1} parent=1 // pred_fallthru
      _
    // Predicated region
    $region6: #{diffusion_transformer_forward.1} parent=1 // pred_check
      _
    $region7: #{diffusion_transformer_forward.1} parent=1 // pred_check_branch
      %91 = sbr.rel (0) target = $region9
    $region8: #{diffusion_transformer_forward.1} parent=1 // pred_region
      _
    $region9: #{diffusion_transformer_forward.1} parent=1 // pred_fallthru
      _
    // Predicated region
    $region10: #{diffusion_transformer_forward.1} parent=1 // pred_check
      _
    $region11: #{diffusion_transformer_forward.1} parent=1 // pred_check_branch
      %93 = sbr.rel (0) target = $region13
    $region12: #{diffusion_transformer_forward.1} parent=1 // pred_region
      _
    $region13: #{diffusion_transformer_forward.1} parent=1 // pred_fallthru
      _
    // Predicated region
    $region14: #{diffusion_transformer_forward.1} parent=1 // pred_check
      _
    $region15: #{diffusion_transformer_forward.1} parent=1 // pred_check_branch
      %95 = sbr.rel (0) target = $region17
    $region16: #{diffusion_transformer_forward.1} parent=1 // pred_region
      _
    $region17: #{diffusion_transformer_forward.1} parent=1 // pred_fallthru
      _
    // Predicated region
    $region18: #{diffusion_transformer_forward.1} parent=1 // pred_check
      _
    $region19: #{diffusion_transformer_forward.1} parent=1 // pred_check_branch
      %97 = sbr.rel (0) target = $region21
    $region20: #{diffusion_transformer_forward.1} parent=1 // pred_region
      %s99 = ssub.s32 256, 256
      %100 = vsyncadd [#allocation3], %s99
      %s101 = sshll.u32 [#allocation2], 4
      %s102 = int_to_ptr.vmem [resolvable:$true] %s101
      %107 = dma.hbm_to_vmem [thread:$0]  %s9, 256, %s102, [#allocation3], 128, 128, 8
    $region21: #{diffusion_transformer_forward.1} parent=1 // pred_fallthru
      _
    // Predicated region
    $region22: #{diffusion_transformer_forward.1} parent=1 // pred_check
      _
    $region23: #{diffusion_transformer_forward.1} parent=1 // pred_check_branch
      %109 = sbr.rel (0) target = $region25
    $region24: #{diffusion_transformer_forward.1} parent=1 // pred_region
      _
    $region25: #{diffusion_transformer_forward.1} parent=1 // pred_fallthru
      _
    // Predicated region
    $region26: #{diffusion_transformer_forward.1} parent=1 // pred_check
      _
    $region27: #{diffusion_transformer_forward.1} parent=1 // pred_check_branch
      %111 = sbr.rel (0) target = $region29
    $region28: #{diffusion_transformer_forward.1} parent=1 // pred_region
      _
    $region29: #{diffusion_transformer_forward.1} parent=1 // pred_fallthru
      _
    // Predicated region
    $region30: #{diffusion_transformer_forward.1} parent=1 // pred_check
      _
    $region31: #{diffusion_transformer_forward.1} parent=1 // pred_check_branch
      %113 = sbr.rel (0) target = $region33
    $region32: #{diffusion_transformer_forward.1} parent=1 // pred_region
      _
    $region33: #{diffusion_transformer_forward.1} parent=1 // pred_fallthru
      _
    // Predicated region
    $region34: #{diffusion_transformer_forward.1} parent=1 // pred_check
      _
    $region35: #{diffusion_transformer_forward.1} parent=1 // pred_check_branch
      %115 = sbr.rel (0) target = $region37
    $region36: #{diffusion_transformer_forward.1} parent=1 // pred_region
      %s117 = ssub.s32 256, 256
      %118 = vsyncadd [#allocation5], %s117
      %s119 = sshll.u32 [#allocation4], 4
      %s120 = int_to_ptr.vmem [resolvable:$true] %s119
      %125 = dma.hbm_to_vmem [thread:$0]  %s17, 256, %s120, [#allocation5], 128, 128, 8
    $region37: #{diffusion_transformer_forward.1} parent=1 // pred_fallthru
      _
    // Predicated region
    $region38: #{diffusion_transformer_forward.1} parent=1 // pred_check
      _
    $region39: #{diffusion_transformer_forward.1} parent=1 // pred_check_branch
      %127 = sbr.rel (0) target = $region41
    $region40: #{diffusion_transformer_forward.1} parent=1 // pred_region
      %s129 = ssub.s32 64, 64
      %130 = vsyncadd [#allocation5], %s129
      %s131 = sshll.u32 [#allocation6], 4
      %s132 = int_to_ptr.vmem [resolvable:$true] %s131
      %137 = dma.hbm_to_vmem [thread:$0]  %s19, 64, %s132, [#allocation5], 16, 16, 1
    $region41: #{diffusion_transformer_forward.1} parent=1 // pred_fallthru
      _
    // Predicated region
    $region42: #{diffusion_transformer_forward.1} parent=1 // pred_check
      _
    $region43: #{diffusion_transformer_forward.1} parent=1 // pred_check_branch
      %139 = sbr.rel (0) target = $region45
    $region44: #{diffusion_transformer_forward.1} parent=1 // pred_region
      _
    $region45: #{diffusion_transformer_forward.1} parent=1 // pred_fallthru
      _
    // Predicated region
    $region46: #{diffusion_transformer_forward.1} parent=1 // pred_check
      _
    $region47: #{diffusion_transformer_forward.1} parent=1 // pred_check_branch
      %141 = sbr.rel (0) target = $region49
    $region48: #{diffusion_transformer_forward.1} parent=1 // pred_region
      %s143 = ssub.s32 16, 16
      %144 = vsyncadd [#allocation8], %s143
      %s146 = sshll.u32 [#allocation7], 4
      %s147 = int_to_ptr.vmem [resolvable:$true] %s146
      %149 = dma.hbm_to_vmem [thread:$0]  %s23, 16, %s147, [#allocation8]
    $region49: #{diffusion_transformer_forward.1} parent=1 // pred_fallthru
      _
    // Predicated region
    $region50: #{diffusion_transformer_forward.1} parent=1 // pred_check
      _
    $region51: #{diffusion_transformer_forward.1} parent=1 // pred_check_branch
      %151 = sbr.rel (0) target = $region53
    $region52: #{diffusion_transformer_forward.1} parent=1 // pred_region
      _
    $region53: #{diffusion_transformer_forward.1} parent=1 // pred_fallthru
      _
    // Predicated region
    $region54: #{diffusion_transformer_forward.1} parent=1 // pred_check
      _
    $region55: #{diffusion_transformer_forward.1} parent=1 // pred_check_branch
      %153 = sbr.rel (0) target = $region57
    $region56: #{diffusion_transformer_forward.1} parent=1 // pred_region
      %s155 = ssub.s32 16, 16
      %156 = vsyncadd [#allocation8], %s155
      %s158 = sshll.u32 [#allocation9], 4
      %s159 = int_to_ptr.vmem [resolvable:$true] %s158
      %161 = dma.hbm_to_vmem [thread:$0]  %s27, 16, %s159, [#allocation8]
    $region57: #{diffusion_transformer_forward.1} parent=1 // pred_fallthru
      _
    // Predicated region
    $region58: #{diffusion_transformer_forward.1} parent=1 // pred_check
      _
    $region59: #{diffusion_transformer_forward.1} parent=1 // pred_check_branch
      %163 = sbr.rel (0) target = $region61
    $region60: #{diffusion_transformer_forward.1} parent=1 // pred_region
      _
    $region61: #{diffusion_transformer_forward.1} parent=1 // pred_fallthru
      _
    // Predicated region
    $region62: #{diffusion_transformer_forward.1} parent=1 // pred_check
      _
    $region63: #{diffusion_transformer_forward.1} parent=1 // pred_check_branch
      %165 = sbr.rel (0) target = $region65
    $region64: #{diffusion_transformer_forward.1} parent=1 // pred_region
      %s167 = ssub.s32 16, 16
      %168 = vsyncadd [#allocation11], %s167
      %s170 = sshll.u32 [#allocation10], 4
      %s171 = int_to_ptr.vmem [resolvable:$true] %s170
      %173 = dma.hbm_to_vmem [thread:$0]  %s31, 16, %s171, [#allocation11]
    $region65: #{diffusion_transformer_forward.1} parent=1 // pred_fallthru
      _
    // Predicated region
    $region66: #{diffusion_transformer_forward.1} parent=1 // pred_check
      _
    $region67: #{diffusion_transformer_forward.1} parent=1 // pred_check_branch
      %175 = sbr.rel (0) target = $region69
    $region68: #{diffusion_transformer_forward.1} parent=1 // pred_region
      _
    $region69: #{diffusion_transformer_forward.1} parent=1 // pred_fallthru
      _
    // Predicated region
    $region70: #{diffusion_transformer_forward.1} parent=1 // pred_check
      _
    $region71: #{diffusion_transformer_forward.1} parent=1 // pred_check_branch
      %177 = sbr.rel (0) target = $region73
    $region72: #{diffusion_transformer_forward.1} parent=1 // pred_region
      %s179 = ssub.s32 16, 16
      %180 = vsyncadd [#allocation11], %s179
      %s182 = sshll.u32 [#allocation12], 4
      %s183 = int_to_ptr.vmem [resolvable:$true] %s182
      %185 = dma.hbm_to_vmem [thread:$0]  %s35, 16, %s183, [#allocation11]
    $region73: #{diffusion_transformer_forward.1} parent=1 // pred_fallthru
      _
    // Predicated region
    $region74: #{diffusion_transformer_forward.1} parent=1 // pred_check
      _
    $region75: #{diffusion_transformer_forward.1} parent=1 // pred_check_branch
      %187 = sbr.rel (0) target = $region77
    $region76: #{diffusion_transformer_forward.1} parent=1 // pred_region
      _
    $region77: #{diffusion_transformer_forward.1} parent=1 // pred_fallthru
      _
    // Predicated region
    $region78: #{diffusion_transformer_forward.1} parent=1 // pred_check
      _
    $region79: #{diffusion_transformer_forward.1} parent=1 // pred_check_branch
      %189 = sbr.rel (0) target = $region81
    $region80: #{diffusion_transformer_forward.1} parent=1 // pred_region
      %s191 = ssub.s32 64, 64
      %192 = vsyncadd [#allocation14], %s191
      %s193 = sshll.u32 [#allocation13], 4
      %s194 = int_to_ptr.vmem [resolvable:$true] %s193
      %199 = dma.hbm_to_vmem [thread:$0]  %s39, 64, %s194, [#allocation14], 32, 32, 2
    $region81: #{diffusion_transformer_forward.1} parent=1 // pred_fallthru
      _
    // Predicated region
    $region82: #{diffusion_transformer_forward.1} parent=1 // pred_check
      _
    $region83: #{diffusion_transformer_forward.1} parent=1 // pred_check_branch
      %201 = sbr.rel (0) target = $region85
    $region84: #{diffusion_transformer_forward.1} parent=1 // pred_region
      _
    $region85: #{diffusion_transformer_forward.1} parent=1 // pred_fallthru
      _
    // Predicated region
    $region86: #{diffusion_transformer_forward.1} parent=1 // pred_check
      _
    $region87: #{diffusion_transformer_forward.1} parent=1 // pred_check_branch
      %203 = sbr.rel (0) target = $region89
    $region88: #{diffusion_transformer_forward.1} parent=1 // pred_region
      %s205 = ssub.s32 32, 32
      %206 = vsyncadd [#allocation14], %s205
      %s207 = sshll.u32 [#allocation15], 4
      %s208 = int_to_ptr.vmem [resolvable:$true] %s207
      %213 = dma.hbm_to_vmem [thread:$0]  %s43, 32, %s208, [#allocation14], 16, 16, 1
    $region89: #{diffusion_transformer_forward.1} parent=1 // pred_fallthru
      _
    // Predicated region
    $region90: #{diffusion_transformer_forward.1} parent=1 // pred_check
      _
    $region91: #{diffusion_transformer_forward.1} parent=1 // pred_check_branch
      %215 = sbr.rel (0) target = $region93
    $region92: #{diffusion_transformer_forward.1} parent=1 // pred_region
      %s217 = ssub.s32 32, 32
      %218 = vsyncadd [#allocation17], %s217
      %s219 = sshll.u32 [#allocation16], 4
      %s220 = int_to_ptr.vmem [resolvable:$true] %s219
      %225 = dma.hbm_to_vmem [thread:$0]  %s45, 32, %s220, [#allocation17], 16, 16, 1
    $region93: #{diffusion_transformer_forward.1} parent=1 // pred_fallthru
      _
    // Predicated region
    $region94: #{diffusion_transformer_forward.1} parent=1 // pred_check
      _
    $region95: #{diffusion_transformer_forward.1} parent=1 // pred_check_branch
      %227 = sbr.rel (0) target = $region97
    $region96: #{diffusion_transformer_forward.1} parent=1 // pred_region
      %s229 = ssub.s32 32, 32
      %230 = vsyncadd [#allocation17], %s229
      %s231 = sshll.u32 [#allocation18], 4
      %s232 = int_to_ptr.vmem [resolvable:$true] %s231
      %237 = dma.hbm_to_vmem [thread:$0]  %s47, 32, %s232, [#allocation17], 16, 16, 1
    $region97: #{diffusion_transformer_forward.1} parent=1 // pred_fallthru
      _
    // Predicated region
    $region98: #{diffusion_transformer_forward.1} parent=1 // pred_check
      _
    $region99: #{diffusion_transformer_forward.1} parent=1 // pred_check_branch
      %239 = sbr.rel (0) target = $region101
    $region100: #{diffusion_transformer_forward.1} parent=1 // pred_region
      %s241 = ssub.s32 32, 32
      %242 = vsyncadd [#allocation20], %s241
      %s243 = sshll.u32 [#allocation19], 4
      %s244 = int_to_ptr.vmem [resolvable:$true] %s243
      %249 = dma.hbm_to_vmem [thread:$0]  %s49, 32, %s244, [#allocation20], 16, 16, 1
    $region101: #{diffusion_transformer_forward.1} parent=1 // pred_fallthru
      _
    // Predicated region
    $region102: #{diffusion_transformer_forward.1} parent=1 // pred_check
      _
    $region103: #{diffusion_transformer_forward.1} parent=1 // pred_check_branch
      %251 = sbr.rel (0) target = $region105
    $region104: #{diffusion_transformer_forward.1} parent=1 // pred_region
      %s253 = ssub.s32 32, 32
      %254 = vsyncadd [#allocation20], %s253
      %s255 = sshll.u32 [#allocation21], 4
      %s256 = int_to_ptr.vmem [resolvable:$true] %s255
      %261 = dma.hbm_to_vmem [thread:$0]  %s51, 32, %s256, [#allocation20], 16, 16, 1
    $region105: #{diffusion_transformer_forward.1} parent=1 // pred_fallthru
      _
    // Predicated region
    $region106: #{diffusion_transformer_forward.1} parent=1 // pred_check
      _
    $region107: #{diffusion_transformer_forward.1} parent=1 // pred_check_branch
      %263 = sbr.rel (0) target = $region109
    $region108: #{diffusion_transformer_forward.1} parent=1 // pred_region
      _
    $region109: #{diffusion_transformer_forward.1} parent=1 // pred_fallthru
      _
    // Predicated region
    $region110: #{diffusion_transformer_forward.1} parent=1 // pred_check
      _
    $region111: #{diffusion_transformer_forward.1} parent=1 // pred_check_branch
      %265 = sbr.rel (0) target = $region113
    $region112: #{diffusion_transformer_forward.1} parent=1 // pred_region
      %s267 = ssub.s32 32, 32
      %268 = vsyncadd [#allocation23], %s267
      %s269 = sshll.u32 [#allocation22], 4
      %s270 = int_to_ptr.vmem [resolvable:$true] %s269
      %275 = dma.hbm_to_vmem [thread:$0]  %s55, 32, %s270, [#allocation23], 16, 16, 1
    $region113: #{diffusion_transformer_forward.1} parent=1 // pred_fallthru
      _
    // Predicated region
    $region114: #{diffusion_transformer_forward.1} parent=1 // pred_check
      _
    $region115: #{diffusion_transformer_forward.1} parent=1 // pred_check_branch
      %277 = sbr.rel (0) target = $region117
    $region116: #{diffusion_transformer_forward.1} parent=1 // pred_region
      _
    $region117: #{diffusion_transformer_forward.1} parent=1 // pred_fallthru
      _
    // Predicated region
    $region118: #{diffusion_transformer_forward.1} parent=1 // pred_check
      _
    $region119: #{diffusion_transformer_forward.1} parent=1 // pred_check_branch
      %279 = sbr.rel (0) target = $region121
    $region120: #{diffusion_transformer_forward.1} parent=1 // pred_region
      %s281 = ssub.s32 32, 32
      %282 = vsyncadd [#allocation23], %s281
      %s283 = sshll.u32 [#allocation24], 4
      %s284 = int_to_ptr.vmem [resolvable:$true] %s283
      %289 = dma.hbm_to_vmem [thread:$0]  %s59, 32, %s284, [#allocation23], 16, 16, 1
    $region121: #{diffusion_transformer_forward.1} parent=1 // pred_fallthru
      _
    // Predicated region
    $region122: #{diffusion_transformer_forward.1} parent=1 // pred_check
      _
    $region123: #{diffusion_transformer_forward.1} parent=1 // pred_check_branch
      %291 = sbr.rel (0) target = $region125
    $region124: #{diffusion_transformer_forward.1} parent=1 // pred_region
      _
    $region125: #{diffusion_transformer_forward.1} parent=1 // pred_fallthru
      _
    // Predicated region
    $region126: #{diffusion_transformer_forward.1} parent=1 // pred_check
      _
    $region127: #{diffusion_transformer_forward.1} parent=1 // pred_check_branch
      %293 = sbr.rel (0) target = $region129
    $region128: #{diffusion_transformer_forward.1} parent=1 // pred_region
      %s295 = ssub.s32 32, 32
      %296 = vsyncadd [#allocation26], %s295
      %s297 = sshll.u32 [#allocation25], 4
      %s298 = int_to_ptr.vmem [resolvable:$true] %s297
      %303 = dma.hbm_to_vmem [thread:$0]  %s63, 32, %s298, [#allocation26], 16, 16, 1
    $region129: #{diffusion_transformer_forward.1} parent=1 // pred_fallthru
      _
    // Predicated region
    $region130: #{diffusion_transformer_forward.1} parent=1 // pred_check
      _
    $region131: #{diffusion_transformer_forward.1} parent=1 // pred_check_branch
      %305 = sbr.rel (0) target = $region133
    $region132: #{diffusion_transformer_forward.1} parent=1 // pred_region
      %s307 = ssub.s32 16, 16
      %308 = vsyncadd [#allocation26], %s307
      %s310 = sshll.u32 [#allocation27], 4
      %s311 = int_to_ptr.vmem [resolvable:$true] %s310
      %313 = dma.hbm_to_vmem [thread:$0]  %s65, 16, %s311, [#allocation26]
    $region133: #{diffusion_transformer_forward.1} parent=1 // pred_fallthru
      _
    // Predicated region
    $region134: #{diffusion_transformer_forward.1} parent=1 // pred_check
      _
    $region135: #{diffusion_transformer_forward.1} parent=1 // pred_check_branch
      %315 = sbr.rel (0) target = $region137
    $region136: #{diffusion_transformer_forward.1} parent=1 // pred_region
      %s317 = ssub.s32 16, 16
      %318 = vsyncadd [#allocation29], %s317
      %s320 = sshll.u32 [#allocation28], 4
      %s321 = int_to_ptr.vmem [resolvable:$true] %s320
      %323 = dma.hbm_to_vmem [thread:$0]  %s67, 16, %s321, [#allocation29]
    $region137: #{diffusion_transformer_forward.1} parent=1 // pred_fallthru
      _
    // Predicated region
    $region138: #{diffusion_transformer_forward.1} parent=1 // pred_check
      _
    $region139: #{diffusion_transformer_forward.1} parent=1 // pred_check_branch
      %325 = sbr.rel (0) target = $region141
    $region140: #{diffusion_transformer_forward.1} parent=1 // pred_region
      _
    $region141: #{diffusion_transformer_forward.1} parent=1 // pred_fallthru
      _
    // Predicated region
    $region142: #{diffusion_transformer_forward.1} parent=1 // pred_check
      _
    $region143: #{diffusion_transformer_forward.1} parent=1 // pred_check_branch
      %327 = sbr.rel (0) target = $region145
    $region144: #{diffusion_transformer_forward.1} parent=1 // pred_region
      %s329 = ssub.s32 16, 16
      %330 = vsyncadd [#allocation29], %s329
      %s332 = sshll.u32 [#allocation30], 4
      %s333 = int_to_ptr.vmem [resolvable:$true] %s332
      %335 = dma.hbm_to_vmem [thread:$0]  %s71, 16, %s333, [#allocation29]
    $region145: #{diffusion_transformer_forward.1} parent=1 // pred_fallthru
      _
    // Predicated region
    $region146: #{diffusion_transformer_forward.1} parent=1 // pred_check
      _
    $region147: #{diffusion_transformer_forward.1} parent=1 // pred_check_branch
      %337 = sbr.rel (0) target = $region149
    $region148: #{diffusion_transformer_forward.1} parent=1 // pred_region
      %338 = dma.done [#allocation3], 256
    $region149: #{diffusion_transformer_forward.1} parent=1 // pred_fallthru
      _
    // Predicated region
    $region150: #{diffusion_transformer_forward.1} parent=1 // pred_check
      _
    $region151: #{diffusion_transformer_forward.1} parent=1 // pred_check_branch
      %340 = sbr.rel (0) target = $region153
    $region152: #{diffusion_transformer_forward.1} parent=1 // pred_region
      %341 = dma.done [#allocation5], 256
    $region153: #{diffusion_transformer_forward.1} parent=1 // pred_fallthru
      _
    // Predicated region
    $region154: #{diffusion_transformer_forward.1} parent=1 // pred_check
      _
    $region155: #{diffusion_transformer_forward.1} parent=1 // pred_check_branch
      %343 = sbr.rel (0) target = $region157
    $region156: #{diffusion_transformer_forward.1} parent=1 // pred_region
      %344 = dma.done [#allocation5], 64
    $region157: #{diffusion_transformer_forward.1} parent=1 // pred_fallthru
      _
    // Predicated region
    $region158: #{diffusion_transformer_forward.1} parent=1 // pred_check
      _
    $region159: #{diffusion_transformer_forward.1} parent=1 // pred_check_branch
      %346 = sbr.rel (0) target = $region161
    $region160: #{diffusion_transformer_forward.1} parent=1 // pred_region
      %347 = dma.done [#allocation8], 16
    $region161: #{diffusion_transformer_forward.1} parent=1 // pred_fallthru
      _
    // Predicated region
    $region162: #{diffusion_transformer_forward.1} parent=1 // pred_check
      _
    $region163: #{diffusion_transformer_forward.1} parent=1 // pred_check_branch
      %349 = sbr.rel (0) target = $region165
    $region164: #{diffusion_transformer_forward.1} parent=1 // pred_region
      %350 = dma.done [#allocation8], 16
    $region165: #{diffusion_transformer_forward.1} parent=1 // pred_fallthru
      _
    // Predicated region
    $region166: #{diffusion_transformer_forward.1} parent=1 // pred_check
      _
    $region167: #{diffusion_transformer_forward.1} parent=1 // pred_check_branch
      %352 = sbr.rel (0) target = $region169
    $region168: #{diffusion_transformer_forward.1} parent=1 // pred_region
      %353 = dma.done [#allocation11], 16
    $region169: #{diffusion_transformer_forward.1} parent=1 // pred_fallthru
      _
    // Predicated region
    $region170: #{diffusion_transformer_forward.1} parent=1 // pred_check
      _
    $region171: #{diffusion_transformer_forward.1} parent=1 // pred_check_branch
      %355 = sbr.rel (0) target = $region173
    $region172: #{diffusion_transformer_forward.1} parent=1 // pred_region
      %356 = dma.done [#allocation11], 16
    $region173: #{diffusion_transformer_forward.1} parent=1 // pred_fallthru
      _
    // Predicated region
    $region174: #{diffusion_transformer_forward.1} parent=1 // pred_check
      _
    $region175: #{diffusion_transformer_forward.1} parent=1 // pred_check_branch
      %358 = sbr.rel (0) target = $region177
    $region176: #{diffusion_transformer_forward.1} parent=1 // pred_region
      %359 = dma.done [#allocation14], 64
    $region177: #{diffusion_transformer_forward.1} parent=1 // pred_fallthru
      _
    // Predicated region
    $region178: #{diffusion_transformer_forward.1} parent=1 // pred_check
      _
    $region179: #{diffusion_transformer_forward.1} parent=1 // pred_check_branch
      %361 = sbr.rel (0) target = $region181
    $region180: #{diffusion_transformer_forward.1} parent=1 // pred_region
      %362 = dma.done [#allocation14], 32
    $region181: #{diffusion_transformer_forward.1} parent=1 // pred_fallthru
      _
    // Predicated region
    $region182: #{diffusion_transformer_forward.1} parent=1 // pred_check
      _
    $region183: #{diffusion_transformer_forward.1} parent=1 // pred_check_branch
      %364 = sbr.rel (0) target = $region185
    $region184: #{diffusion_transformer_forward.1} parent=1 // pred_region
      %365 = dma.done [#allocation17], 32
    $region185: #{diffusion_transformer_forward.1} parent=1 // pred_fallthru
      _
    // Predicated region
    $region186: #{diffusion_transformer_forward.1} parent=1 // pred_check
      _
    $region187: #{diffusion_transformer_forward.1} parent=1 // pred_check_branch
      %367 = sbr.rel (0) target = $region189
    $region188: #{diffusion_transformer_forward.1} parent=1 // pred_region
      %368 = dma.done [#allocation17], 32
    $region189: #{diffusion_transformer_forward.1} parent=1 // pred_fallthru
      _
    // Predicated region
    $region190: #{diffusion_transformer_forward.1} parent=1 // pred_check
      _
    $region191: #{diffusion_transformer_forward.1} parent=1 // pred_check_branch
      %370 = sbr.rel (0) target = $region193
    $region192: #{diffusion_transformer_forward.1} parent=1 // pred_region
      %371 = dma.done [#allocation20], 32
    $region193: #{diffusion_transformer_forward.1} parent=1 // pred_fallthru
      _
    // Predicated region
    $region194: #{diffusion_transformer_forward.1} parent=1 // pred_check
      _
    $region195: #{diffusion_transformer_forward.1} parent=1 // pred_check_branch
      %373 = sbr.rel (0) target = $region197
    $region196: #{diffusion_transformer_forward.1} parent=1 // pred_region
      %374 = dma.done [#allocation20], 32
    $region197: #{diffusion_transformer_forward.1} parent=1 // pred_fallthru
      _
    // Predicated region
    $region198: #{diffusion_transformer_forward.1} parent=1 // pred_check
      _
    $region199: #{diffusion_transformer_forward.1} parent=1 // pred_check_branch
      %376 = sbr.rel (0) target = $region201
    $region200: #{diffusion_transformer_forward.1} parent=1 // pred_region
      %377 = dma.done [#allocation23], 32
    $region201: #{diffusion_transformer_forward.1} parent=1 // pred_fallthru
      _
    // Predicated region
    $region202: #{diffusion_transformer_forward.1} parent=1 // pred_check
      _
    $region203: #{diffusion_transformer_forward.1} parent=1 // pred_check_branch
      %379 = sbr.rel (0) target = $region205
    $region204: #{diffusion_transformer_forward.1} parent=1 // pred_region
      %380 = dma.done [#allocation23], 32
    $region205: #{diffusion_transformer_forward.1} parent=1 // pred_fallthru
      _
    // Predicated region
    $region206: #{diffusion_transformer_forward.1} parent=1 // pred_check
      _
    $region207: #{diffusion_transformer_forward.1} parent=1 // pred_check_branch
      %382 = sbr.rel (0) target = $region209
    $region208: #{diffusion_transformer_forward.1} parent=1 // pred_region
      %383 = dma.done [#allocation26], 32
    $region209: #{diffusion_transformer_forward.1} parent=1 // pred_fallthru
      _
    // Predicated region
    $region210: #{diffusion_transformer_forward.1} parent=1 // pred_check
      _
    $region211: #{diffusion_transformer_forward.1} parent=1 // pred_check_branch
      %385 = sbr.rel (0) target = $region213
    $region212: #{diffusion_transformer_forward.1} parent=1 // pred_region
      %386 = dma.done [#allocation26], 16
    $region213: #{diffusion_transformer_forward.1} parent=1 // pred_fallthru
      _
    // Predicated region
    $region214: #{diffusion_transformer_forward.1} parent=1 // pred_check
      _
    $region215: #{diffusion_transformer_forward.1} parent=1 // pred_check_branch
      %388 = sbr.rel (0) target = $region217
    $region216: #{diffusion_transformer_forward.1} parent=1 // pred_region
      %389 = dma.done [#allocation29], 16
    $region217: #{diffusion_transformer_forward.1} parent=1 // pred_fallthru
      _
    // Predicated region
    $region218: #{diffusion_transformer_forward.1} parent=1 // pred_check
      _
    $region219: #{diffusion_transformer_forward.1} parent=1 // pred_check_branch
      %391 = sbr.rel (0) target = $region221
    $region220: #{diffusion_transformer_forward.1} parent=1 // pred_region
      %392 = dma.done [#allocation29], 16
    $region221: #{diffusion_transformer_forward.1} parent=1 // pred_fallthru
      _
    %v393 = vld [vmem:[%s13] sm:$0xff]
    %v394 = vld [vmem:[%s13 + $0x8] sm:$0xff]
    %v395 = vld [vmem:[%s13 + $0x10] sm:$0xff]
    %v396 = vld [vmem:[%s13 + $0x18] sm:$0xff]
    %v397 = vld [vmem:[%s15] sm:$0xff]
    %v398 = vld [vmem:[%s15 + $0x8] sm:$0xff]
    %v399 = vld [vmem:[%s15 + $0x10] sm:$0xff]
    %v400 = vld [vmem:[%s15 + $0x18] sm:$0xff]
    %v401 = vld [vmem:[#allocation2] sm:$0xff]
    %v402 = vld [vmem:[#allocation2 + $0x8] sm:$0xff]
    %v403 = vld [vmem:[%s11] sm:$0xff]
    %v404 = vld [vmem:[%s11 + $0x8] sm:$0xff]
    %v405 = vld [vmem:[#allocation4] sm:$0xff]
    %v406 = vld [vmem:[#allocation4 + $0x8] sm:$0xff]
    %v407 = vld [vmem:[%s1] sm:$0xff]
    %v408 = vld [vmem:[%s1 + $0x8] sm:$0xff]
    %v409 = vld [vmem:[%s21] sm:$0xff]
    %v410 = vld [vmem:[%s21 + $0x8] sm:$0x3]
    %v411 = vld [vmem:[#allocation7] sm:$0x1]
    %v413 = vlaneseq
    %v414 = vshrl.u32 %v413, 7
    %v415 = vsub.s32 0, %v414
    %v416 = vrot.slane %v411, %v415
    %vm418 = vcmask 80896
    %v420 = vsel %vm418, %v407, 0
    %v423 = vsel %vm418, %v408, 0
    %vm425 = vcmask 1041408
    %v427 = vsel %vm425, %v410, 0
    %429 = vmatprep.subr.mxu0 0.0
    %430 = vmatpush1.msra.mxu0 %v409
    %431 = vmatprep.subr.mxu0 0.0
    %432 = vmatpush1.msra.mxu0 %v427
    %433 = vmatprep.subr.mxu0 0.0
    %434 = vmatpush1.msra.mxu0 0.0
    %435 = vmatprep.subr.mxu0 0.0
    %436 = vmatpush1.msra.mxu0 0.0
    %437 = vmatprep.subr.mxu0 0.0
    %438 = vmatpush1.msra.mxu0 0.0
    %439 = vmatprep.subr.mxu0 0.0
    %440 = vmatpush1.msra.mxu0 0.0
    %441 = vmatprep.subr.mxu0 0.0
    %442 = vmatpush1.msra.mxu0 0.0
    %443 = vmatprep.subr.mxu0 0.0
    %444 = vmatpush1.msra.mxu0 0.0
    %445 = vmatprep.subr.mxu0 0.0
    %446 = vmatpush1.msra.mxu0 0.0
    %447 = vmatprep.subr.mxu0 0.0
    %448 = vmatpush1.msra.mxu0 0.0
    %449 = vmatprep.subr.mxu0 0.0
    %450 = vmatpush1.msra.mxu0 0.0
    %451 = vmatprep.subr.mxu0 0.0
    %452 = vmatpush1.msra.mxu0 0.0
    %453 = vmatprep.subr.mxu0 0.0
    %454 = vmatpush1.msra.mxu0 0.0
    %455 = vmatprep.subr.mxu0 0.0
    %456 = vmatpush1.msra.mxu0 0.0
    %457 = vmatprep.subr.mxu0 0.0
    %458 = vmatpush1.msra.mxu0 0.0
    %459 = vmatprep.subr.mxu0 0.0
    %460 = vmatpush1.msra.mxu0 0.0
    %461 = vmatprep.subr.mxu0 0.0
    %462 = vmatpush1.msra.mxu0 0.0
    %463 = vmatprep.subr.mxu0 0.0
    %464 = vmatpush1.msra.mxu0 0.0
    %465 = vmatprep.subr.mxu0 0.0
    %466 = vmatpush1.msra.mxu0 0.0
    %467 = vmatprep.subr.mxu0 0.0
    %468 = vmatpush1.msra.mxu0 0.0
    %469 = vmatprep.subr.mxu0 0.0
    %470 = vmatpush1.msra.mxu0 0.0
    %471 = vmatprep.subr.mxu0 0.0
    %472 = vmatpush1.msra.mxu0 0.0
    %473 = vmatprep.subr.mxu0 0.0
    %474 = vmatpush1.msra.mxu0 0.0
    %475 = vmatprep.subr.mxu0 0.0
    %476 = vmatpush1.msra.mxu0 0.0
    %477 = vmatprep.subr.mxu0 0.0
    %478 = vmatpush1.msra.mxu0 0.0
    %479 = vmatprep.subr.mxu0 0.0
    %480 = vmatpush1.msra.mxu0 0.0
    %481 = vmatprep.subr.mxu0 0.0
    %482 = vmatpush1.msra.mxu0 0.0
    %483 = vmatprep.subr.mxu0 0.0
    %484 = vmatpush1.msra.mxu0 0.0
    %485 = vmatprep.subr.mxu0 0.0
    %486 = vmatpush1.msra.mxu0 0.0
    %487 = vmatprep.subr.mxu0 0.0
    %488 = vmatpush1.msra.mxu0 0.0
    %489 = vmatprep.subr.mxu0 0.0
    %490 = vmatpush1.msra.mxu0 0.0
    %491 = vmatprep.subr.mxu0 0.0
    %492 = vmatpush1.msra.mxu0 0.0
    %493 = vmatprep.mubr.f32.mxu0 0.0
    %494 = vmatmul.mubr.f32.gmra.mrb[0].mxu0 %v420
    %v495 = vpop.f32.mrb[0].mxu0
    %v496 = vadd.f32 %v416, %v495
    %v497 = vpop.f32.mrb[0].mxu0
    %498 = vmatprep.mubr.f32.mxu0 0.0
    %499 = vmatmul.mubr.f32.gmra.mrb[0].mxu0 %v423
    %v500 = vpop.f32.mrb[0].mxu0
    %v501 = vadd.f32 %v416, %v500
    %v502 = vpop.f32.mrb[0].mxu0
    %503 = vdwg.mxu0
    %v504 = vld [vmem:[%s3] sm:$0x3]
    %v505 = vld [vmem:[%s25] sm:$0xff]
    %v506 = vld [vmem:[%s25 + $0x8] sm:$0xff]
    %v507 = vld [vmem:[%s25 + $0x10] sm:$0xff]
    %v508 = vld [vmem:[%s25 + $0x18] sm:$0xff]
    %v509 = vld [vmem:[#allocation9] sm:$0x1]
    %v511 = vlaneseq
    %v512 = vshrl.u32 %v511, 7
    %v513 = vsub.s32 0, %v512
    %v514 = vrot.slane %v509, %v513
    %vm516 = vcmask 261120
    %v518 = vsel %vm516, %v504, 0
    %520 = vmatprep.subr.mxu0 0.0
    %521 = vmatpush1.msra.mxu0 %v505
    %522 = vmatprep.subr.mxu0 0.0
    %523 = vmatpush1.msra.mxu0 %v506
    %524 = vmatprep.subr.mxu0 0.0
    %525 = vmatpush1.msra.mxu0 %v507
    %526 = vmatprep.subr.mxu0 0.0
    %527 = vmatpush1.msra.mxu0 %v508
    %528 = vmatprep.subr.mxu0 0.0
    %529 = vmatpush1.msra.mxu0 0.0
    %530 = vmatprep.subr.mxu0 0.0
    %531 = vmatpush1.msra.mxu0 0.0
    %532 = vmatprep.subr.mxu0 0.0
    %533 = vmatpush1.msra.mxu0 0.0
    %534 = vmatprep.subr.mxu0 0.0
    %535 = vmatpush1.msra.mxu0 0.0
    %536 = vmatprep.subr.mxu0 0.0
    %537 = vmatpush1.msra.mxu0 0.0
    %538 = vmatprep.subr.mxu0 0.0
    %539 = vmatpush1.msra.mxu0 0.0
    %540 = vmatprep.subr.mxu0 0.0
    %541 = vmatpush1.msra.mxu0 0.0
    %542 = vmatprep.subr.mxu0 0.0
    %543 = vmatpush1.msra.mxu0 0.0
    %544 = vmatprep.subr.mxu0 0.0
    %545 = vmatpush1.msra.mxu0 0.0
    %546 = vmatprep.subr.mxu0 0.0
    %547 = vmatpush1.msra.mxu0 0.0
    %548 = vmatprep.subr.mxu0 0.0
    %549 = vmatpush1.msra.mxu0 0.0
    %550 = vmatprep.subr.mxu0 0.0
    %551 = vmatpush1.msra.mxu0 0.0
    %552 = vmatprep.subr.mxu0 0.0
    %553 = vmatpush1.msra.mxu0 0.0
    %554 = vmatprep.subr.mxu0 0.0
    %555 = vmatpush1.msra.mxu0 0.0
    %556 = vmatprep.subr.mxu0 0.0
    %557 = vmatpush1.msra.mxu0 0.0
    %558 = vmatprep.subr.mxu0 0.0
    %559 = vmatpush1.msra.mxu0 0.0
    %560 = vmatprep.subr.mxu0 0.0
    %561 = vmatpush1.msra.mxu0 0.0
    %562 = vmatprep.subr.mxu0 0.0
    %563 = vmatpush1.msra.mxu0 0.0
    %564 = vmatprep.subr.mxu0 0.0
    %565 = vmatpush1.msra.mxu0 0.0
    %566 = vmatprep.subr.mxu0 0.0
    %567 = vmatpush1.msra.mxu0 0.0
    %568 = vmatprep.subr.mxu0 0.0
    %569 = vmatpush1.msra.mxu0 0.0
    %570 = vmatprep.subr.mxu0 0.0
    %571 = vmatpush1.msra.mxu0 0.0
    %572 = vmatprep.subr.mxu0 0.0
    %573 = vmatpush1.msra.mxu0 0.0
    %574 = vmatprep.subr.mxu0 0.0
    %575 = vmatpush1.msra.mxu0 0.0
    %576 = vmatprep.subr.mxu0 0.0
    %577 = vmatpush1.msra.mxu0 0.0
    %578 = vmatprep.subr.mxu0 0.0
    %579 = vmatpush1.msra.mxu0 0.0
    %580 = vmatprep.subr.mxu0 0.0
    %581 = vmatpush1.msra.mxu0 0.0
    %582 = vmatprep.subr.mxu0 0.0
    %583 = vmatpush1.msra.mxu0 0.0
    %584 = vmatprep.mubr.f32.mxu0 0.0
    %585 = vmatmul.mubr.f32.gmra.mrb[0].mxu0 %v518
    %v586 = vpop.f32.mrb[0].mxu0
    %v587 = vadd.f32 %v514, %v586
    %v588 = vpop.f32.mrb[0].mxu0
    %589 = vdwg.mxu0
    %v590 = vmax.f32 %v587, 0.0
    %v591 = vand.u32 2147483647, %v587
    %v592 = vsub.f32 0.0, %v591
    %v593 = vmul.f32 %v592, 1.442695
    %v594 = vpow.pop %v593
    %v595 = vadd.f32 %v594, 1.0
    %v596 = vlog2.pop %v595
    %v597 = vmul.f32 %v596, 0.6931472
    %v598 = vadd.f32 %v590, %v597
    %v599 = vtanh.pop %v598
    %v600 = vmul.f32 %v587, %v599
    %v601 = vld [vmem:[%s29] sm:$0xff]
    %v602 = vld [vmem:[%s29 + $0x8] sm:$0xff]
    %v603 = vld [vmem:[%s29 + $0x10] sm:$0xff]
    %v604 = vld [vmem:[%s29 + $0x18] sm:$0xff]
    %v605 = vld [vmem:[%s29 + $0x20] sm:$0xff]
    %v606 = vld [vmem:[%s29 + $0x28] sm:$0xff]
    %v607 = vld [vmem:[%s29 + $0x30] sm:$0xff]
    %v608 = vld [vmem:[%s29 + $0x38] sm:$0xff]
    %v609 = vld [vmem:[%s29 + $0x40] sm:$0xff]
    %v610 = vld [vmem:[%s29 + $0x48] sm:$0xff]
    %v611 = vld [vmem:[%s29 + $0x50] sm:$0xff]
    %v612 = vld [vmem:[%s29 + $0x58] sm:$0xff]
    %v613 = vld [vmem:[%s29 + $0x60] sm:$0xff]
    %v614 = vld [vmem:[%s29 + $0x68] sm:$0xff]
    %v615 = vld [vmem:[%s29 + $0x70] sm:$0xff]
    %v616 = vld [vmem:[%s29 + $0x78] sm:$0xff]
    %v617 = vld [vmem:[#allocation10] sm:$0x1]
    %v619 = vlaneseq
    %v620 = vshrl.u32 %v619, 7
    %v621 = vsub.s32 0, %v620
    %v622 = vrot.slane %v617, %v621
    %624 = vmatprep.subr.mxu0 0.0
    %625 = vmatpush1.msra.mxu0 %v601
    %626 = vmatprep.subr.mxu0 0.0
    %627 = vmatpush1.msra.mxu0 %v602
    %628 = vmatprep.subr.mxu0 0.0
    %629 = vmatpush1.msra.mxu0 %v603
    %630 = vmatprep.subr.mxu0 0.0
    %631 = vmatpush1.msra.mxu0 %v604
    %632 = vmatprep.subr.mxu0 0.0
    %633 = vmatpush1.msra.mxu0 %v605
    %634 = vmatprep.subr.mxu0 0.0
    %635 = vmatpush1.msra.mxu0 %v606
    %636 = vmatprep.subr.mxu0 0.0
    %637 = vmatpush1.msra.mxu0 %v607
    %638 = vmatprep.subr.mxu0 0.0
    %639 = vmatpush1.msra.mxu0 %v608
    %640 = vmatprep.subr.mxu0 0.0
    %641 = vmatpush1.msra.mxu0 %v609
    %642 = vmatprep.subr.mxu0 0.0
    %643 = vmatpush1.msra.mxu0 %v610
    %644 = vmatprep.subr.mxu0 0.0
    %645 = vmatpush1.msra.mxu0 %v611
    %646 = vmatprep.subr.mxu0 0.0
    %647 = vmatpush1.msra.mxu0 %v612
    %648 = vmatprep.subr.mxu0 0.0
    %649 = vmatpush1.msra.mxu0 %v613
    %650 = vmatprep.subr.mxu0 0.0
    %651 = vmatpush1.msra.mxu0 %v614
    %652 = vmatprep.subr.mxu0 0.0
    %653 = vmatpush1.msra.mxu0 %v615
    %654 = vmatprep.subr.mxu0 0.0
    %655 = vmatpush1.msra.mxu0 %v616
    %656 = vmatprep.subr.mxu0 0.0
    %657 = vmatpush1.msra.mxu0 0.0
    %658 = vmatprep.subr.mxu0 0.0
    %659 = vmatpush1.msra.mxu0 0.0
    %660 = vmatprep.subr.mxu0 0.0
    %661 = vmatpush1.msra.mxu0 0.0
    %662 = vmatprep.subr.mxu0 0.0
    %663 = vmatpush1.msra.mxu0 0.0
    %664 = vmatprep.subr.mxu0 0.0
    %665 = vmatpush1.msra.mxu0 0.0
    %666 = vmatprep.subr.mxu0 0.0
    %667 = vmatpush1.msra.mxu0 0.0
    %668 = vmatprep.subr.mxu0 0.0
    %669 = vmatpush1.msra.mxu0 0.0
    %670 = vmatprep.subr.mxu0 0.0
    %671 = vmatpush1.msra.mxu0 0.0
    %672 = vmatprep.subr.mxu0 0.0
    %673 = vmatpush1.msra.mxu0 0.0
    %674 = vmatprep.subr.mxu0 0.0
    %675 = vmatpush1.msra.mxu0 0.0
    %676 = vmatprep.subr.mxu0 0.0
    %677 = vmatpush1.msra.mxu0 0.0
    %678 = vmatprep.subr.mxu0 0.0
    %679 = vmatpush1.msra.mxu0 0.0
    %680 = vmatprep.subr.mxu0 0.0
    %681 = vmatpush1.msra.mxu0 0.0
    %682 = vmatprep.subr.mxu0 0.0
    %683 = vmatpush1.msra.mxu0 0.0
    %684 = vmatprep.subr.mxu0 0.0
    %685 = vmatpush1.msra.mxu0 0.0
    %686 = vmatprep.subr.mxu0 0.0
    %687 = vmatpush1.msra.mxu0 0.0
    %688 = vmatprep.mubr.f32.mxu0 0.0
    %689 = vmatmul.mubr.f32.gmra.mrb[0].mxu0 %v600
    %v690 = vpop.f32.mrb[0].mxu0
    %v691 = vadd.f32 %v622, %v690
    %v692 = vpop.f32.mrb[0].mxu0
    %693 = vdwg.mxu0
    %v694 = vld [vmem:[%s5] sm:$0x3]
    %v695 = vld [vmem:[%s33] sm:$0xff]
    %v696 = vld [vmem:[%s33 + $0x8] sm:$0xf]
    %v697 = vld [vmem:[#allocation12] sm:$0x1]
    %v699 = vlaneseq
    %v700 = vshrl.u32 %v699, 7
    %v701 = vsub.s32 0, %v700
    %v702 = vrot.slane %v697, %v701
    %vm704 = vcmask 97280
    %v706 = vsel %vm704, %v694, 0
    %vm708 = vcmask 1043456
    %v710 = vsel %vm708, %v696, 0
    %712 = vmatprep.subr.mxu0 0.0
    %713 = vmatpush1.msra.mxu0 %v695
    %714 = vmatprep.subr.mxu0 0.0
    %715 = vmatpush1.msra.mxu0 %v710
    %716 = vmatprep.subr.mxu0 0.0
    %717 = vmatpush1.msra.mxu0 0.0
    %718 = vmatprep.subr.mxu0 0.0
    %719 = vmatpush1.msra.mxu0 0.0
    %720 = vmatprep.subr.mxu0 0.0
    %721 = vmatpush1.msra.mxu0 0.0
    %722 = vmatprep.subr.mxu0 0.0
    %723 = vmatpush1.msra.mxu0 0.0
    %724 = vmatprep.subr.mxu0 0.0
    %725 = vmatpush1.msra.mxu0 0.0
    %726 = vmatprep.subr.mxu0 0.0
    %727 = vmatpush1.msra.mxu0 0.0
    %728 = vmatprep.subr.mxu0 0.0
    %729 = vmatpush1.msra.mxu0 0.0
    %730 = vmatprep.subr.mxu0 0.0
    %731 = vmatpush1.msra.mxu0 0.0
    %732 = vmatprep.subr.mxu0 0.0
    %733 = vmatpush1.msra.mxu0 0.0
    %734 = vmatprep.subr.mxu0 0.0
    %735 = vmatpush1.msra.mxu0 0.0
    %736 = vmatprep.subr.mxu0 0.0
    %737 = vmatpush1.msra.mxu0 0.0
    %738 = vmatprep.subr.mxu0 0.0
    %739 = vmatpush1.msra.mxu0 0.0
    %740 = vmatprep.subr.mxu0 0.0
    %741 = vmatpush1.msra.mxu0 0.0
    %742 = vmatprep.subr.mxu0 0.0
    %743 = vmatpush1.msra.mxu0 0.0
    %744 = vmatprep.subr.mxu0 0.0
    %745 = vmatpush1.msra.mxu0 0.0
    %746 = vmatprep.subr.mxu0 0.0
    %747 = vmatpush1.msra.mxu0 0.0
    %748 = vmatprep.subr.mxu0 0.0
    %749 = vmatpush1.msra.mxu0 0.0
    %750 = vmatprep.subr.mxu0 0.0
    %751 = vmatpush1.msra.mxu0 0.0
    %752 = vmatprep.subr.mxu0 0.0
    %753 = vmatpush1.msra.mxu0 0.0
    %754 = vmatprep.subr.mxu0 0.0
    %755 = vmatpush1.msra.mxu0 0.0
    %756 = vmatprep.subr.mxu0 0.0
    %757 = vmatpush1.msra.mxu0 0.0
    %758 = vmatprep.subr.mxu0 0.0
    %759 = vmatpush1.msra.mxu0 0.0
    %760 = vmatprep.subr.mxu0 0.0
    %761 = vmatpush1.msra.mxu0 0.0
    %762 = vmatprep.subr.mxu0 0.0
    %763 = vmatpush1.msra.mxu0 0.0
    %764 = vmatprep.subr.mxu0 0.0
    %765 = vmatpush1.msra.mxu0 0.0
    %766 = vmatprep.subr.mxu0 0.0
    %767 = vmatpush1.msra.mxu0 0.0
    %768 = vmatprep.subr.mxu0 0.0
    %769 = vmatpush1.msra.mxu0 0.0
    %770 = vmatprep.subr.mxu0 0.0
    %771 = vmatpush1.msra.mxu0 0.0
    %772 = vmatprep.subr.mxu0 0.0
    %773 = vmatpush1.msra.mxu0 0.0
    %774 = vmatprep.subr.mxu0 0.0
    %775 = vmatpush1.msra.mxu0 0.0
    %776 = vmatprep.mubr.f32.mxu0 0.0
    %777 = vmatmul.mubr.f32.gmra.mrb[0].mxu0 %v706
    %v778 = vpop.f32.mrb[0].mxu0
    %v779 = vadd.f32 %v702, %v778
    %v780 = vpop.f32.mrb[0].mxu0
    %781 = vdwg.mxu0
    %v782 = vld [vmem:[%s7] sm:$0xff]
    %v783 = vld [vmem:[%s7 + $0x8] sm:$0xff]
    %v784 = vadd.f32 %v691, %v779
    %v785 = vxor.u32 %v784, 2147483648
    %v786 = vmul.f32 %v785, 1.442695
    %v787 = vpow.pop %v786
    %v788 = vadd.f32 %v787, 1.0
    %v789 = vrcp.pop %v788
    %v790 = vmul.f32 1.0, %v789
    %v791 = vmul.f32 %v784, %v790
    %v792 = vxor.u32 %v791, 2147483648
    %v793 = vmul.f32 %v792, 1.442695
    %v794 = vpow.pop %v793
    %v795 = vadd.f32 %v794, 1.0
    %v796 = vrcp.pop %v795
    %v797 = vmul.f32 1.0, %v796
    %v798 = vmul.f32 %v791, %v797
    %vm799 = vcmask 15360
    %v801 = vsel %vm799, %v782, 0
    %v804 = vsel %vm799, %v783, 0
    %v807 = vsel %vm425, %v798, 0
    %809 = vmatprep.subr.mxu0 0.0
    %810 = vmatpush1.msra.mxu0 %v807
    %811 = vmatprep.subr.mxu0 0.0
    %812 = vmatpush1.msra.mxu0 0.0
    %813 = vmatprep.subr.mxu0 0.0
    %814 = vmatpush1.msra.mxu0 0.0
    %815 = vmatprep.subr.mxu0 0.0
    %816 = vmatpush1.msra.mxu0 0.0
    %817 = vmatprep.subr.mxu0 0.0
    %818 = vmatpush1.msra.mxu0 0.0
    %819 = vmatprep.subr.mxu0 0.0
    %820 = vmatpush1.msra.mxu0 0.0
    %821 = vmatprep.subr.mxu0 0.0
    %822 = vmatpush1.msra.mxu0 0.0
    %823 = vmatprep.subr.mxu0 0.0
    %824 = vmatpush1.msra.mxu0 0.0
    %825 = vmatprep.subr.mxu0 0.0
    %826 = vmatpush1.msra.mxu0 0.0
    %827 = vmatprep.subr.mxu0 0.0
    %828 = vmatpush1.msra.mxu0 0.0
    %829 = vmatprep.subr.mxu0 0.0
    %830 = vmatpush1.msra.mxu0 0.0
    %831 = vmatprep.subr.mxu0 0.0
    %832 = vmatpush1.msra.mxu0 0.0
    %833 = vmatprep.subr.mxu0 0.0
    %834 = vmatpush1.msra.mxu0 0.0
    %835 = vmatprep.subr.mxu0 0.0
    %836 = vmatpush1.msra.mxu0 0.0
    %837 = vmatprep.subr.mxu0 0.0
    %838 = vmatpush1.msra.mxu0 0.0
    %839 = vmatprep.subr.mxu0 0.0
    %840 = vmatpush1.msra.mxu0 0.0
    %841 = vmatprep.subr.mxu0 0.0
    %842 = vmatpush1.msra.mxu0 0.0
    %843 = vmatprep.subr.mxu0 0.0
    %844 = vmatpush1.msra.mxu0 0.0
    %845 = vmatprep.subr.mxu0 0.0
    %846 = vmatpush1.msra.mxu0 0.0
    %847 = vmatprep.subr.mxu0 0.0
    %848 = vmatpush1.msra.mxu0 0.0
    %849 = vmatprep.subr.mxu0 0.0
    %850 = vmatpush1.msra.mxu0 0.0
    %851 = vmatprep.subr.mxu0 0.0
    %852 = vmatpush1.msra.mxu0 0.0
    %853 = vmatprep.subr.mxu0 0.0
    %854 = vmatpush1.msra.mxu0 0.0
    %855 = vmatprep.subr.mxu0 0.0
    %856 = vmatpush1.msra.mxu0 0.0
    %857 = vmatprep.subr.mxu0 0.0
    %858 = vmatpush1.msra.mxu0 0.0
    %859 = vmatprep.subr.mxu0 0.0
    %860 = vmatpush1.msra.mxu0 0.0
    %861 = vmatprep.subr.mxu0 0.0
    %862 = vmatpush1.msra.mxu0 0.0
    %863 = vmatprep.subr.mxu0 0.0
    %864 = vmatpush1.msra.mxu0 0.0
    %865 = vmatprep.subr.mxu0 0.0
    %866 = vmatpush1.msra.mxu0 0.0
    %867 = vmatprep.subr.mxu0 0.0
    %868 = vmatpush1.msra.mxu0 0.0
    %869 = vmatprep.subr.mxu0 0.0
    %870 = vmatpush1.msra.mxu0 0.0
    %871 = vmatprep.subr.mxu0 0.0
    %872 = vmatpush1.msra.mxu0 0.0
    %873 = vmatprep.mubr.f32.mxu0 0.0
    %874 = vmatmul.mubr.f32.gmra.mrb[0].mxu0 %v801
    %v875 = vpop.f32.mrb[0].mxu0
    %v876 = vadd.f32 0.0, %v875
    %v877 = vpop.f32.mrb[0].mxu0
    %878 = vmatprep.mubr.f32.mxu0 0.0
    %879 = vmatmul.mubr.f32.gmra.mrb[0].mxu0 %v804
    %v880 = vpop.f32.mrb[0].mxu0
    %v881 = vadd.f32 0.0, %v880
    %v882 = vpop.f32.mrb[0].mxu0
    %883 = vdwg.mxu0
    %v884 = vld [vmem:[%s37] sm:$0xff]
    %v885 = vld [vmem:[%s37 + $0x8] sm:$0xff]
    %v886 = vld [vmem:[%s37 + $0x10] sm:$0xff]
    %v887 = vld [vmem:[%s37 + $0x18] sm:$0xff]
    %v888 = vld [vmem:[%s37 + $0x20] sm:$0xff]
    %v889 = vld [vmem:[%s37 + $0x28] sm:$0xff]
    %v890 = vld [vmem:[%s37 + $0x30] sm:$0xff]
    %v891 = vld [vmem:[%s37 + $0x38] sm:$0xff]
    %v892 = vld [vmem:[#allocation13] sm:$0x3]
    %v894 = vlaneseq
    %v895 = vshrl.u32 %v894, 7
    %v896 = vsub.s32 0, %v895
    %v897 = vrot.slane %v892, %v896
    %v898 = vlaneseq
    %v899 = vshrl.u32 %v898, 7
    %v900 = vsub.s32 1, %v899
    %v901 = vrot.slane %v892, %v900
    %v905 = vsel %vm516, %v876, 0
    %v908 = vsel %vm516, %v881, 0
    %910 = vmatprep.subr.mxu0 %v885
    %911 = vmatpush1.msra.mxu0 %v884
    %912 = vmatprep.subr.mxu0 %v887
    %913 = vmatpush1.msra.mxu0 %v886
    %914 = vmatprep.subr.mxu0 %v889
    %915 = vmatpush1.msra.mxu0 %v888
    %916 = vmatprep.subr.mxu0 %v891
    %917 = vmatpush1.msra.mxu0 %v890
    %918 = vmatprep.subr.mxu0 0.0
    %919 = vmatpush1.msra.mxu0 0.0
    %920 = vmatprep.subr.mxu0 0.0
    %921 = vmatpush1.msra.mxu0 0.0
    %922 = vmatprep.subr.mxu0 0.0
    %923 = vmatpush1.msra.mxu0 0.0
    %924 = vmatprep.subr.mxu0 0.0
    %925 = vmatpush1.msra.mxu0 0.0
    %926 = vmatprep.subr.mxu0 0.0
    %927 = vmatpush1.msra.mxu0 0.0
    %928 = vmatprep.subr.mxu0 0.0
    %929 = vmatpush1.msra.mxu0 0.0
    %930 = vmatprep.subr.mxu0 0.0
    %931 = vmatpush1.msra.mxu0 0.0
    %932 = vmatprep.subr.mxu0 0.0
    %933 = vmatpush1.msra.mxu0 0.0
    %934 = vmatprep.subr.mxu0 0.0
    %935 = vmatpush1.msra.mxu0 0.0
    %936 = vmatprep.subr.mxu0 0.0
    %937 = vmatpush1.msra.mxu0 0.0
    %938 = vmatprep.subr.mxu0 0.0
    %939 = vmatpush1.msra.mxu0 0.0
    %940 = vmatprep.subr.mxu0 0.0
    %941 = vmatpush1.msra.mxu0 0.0
    %942 = vmatprep.subr.mxu0 0.0
    %943 = vmatpush1.msra.mxu0 0.0
    %944 = vmatprep.subr.mxu0 0.0
    %945 = vmatpush1.msra.mxu0 0.0
    %946 = vmatprep.subr.mxu0 0.0
    %947 = vmatpush1.msra.mxu0 0.0
    %948 = vmatprep.subr.mxu0 0.0
    %949 = vmatpush1.msra.mxu0 0.0
    %950 = vmatprep.subr.mxu0 0.0
    %951 = vmatpush1.msra.mxu0 0.0
    %952 = vmatprep.subr.mxu0 0.0
    %953 = vmatpush1.msra.mxu0 0.0
    %954 = vmatprep.subr.mxu0 0.0
    %955 = vmatpush1.msra.mxu0 0.0
    %956 = vmatprep.subr.mxu0 0.0
    %957 = vmatpush1.msra.mxu0 0.0
    %958 = vmatprep.subr.mxu0 0.0
    %959 = vmatpush1.msra.mxu0 0.0
    %960 = vmatprep.subr.mxu0 0.0
    %961 = vmatpush1.msra.mxu0 0.0
    %962 = vmatprep.subr.mxu0 0.0
    %963 = vmatpush1.msra.mxu0 0.0
    %964 = vmatprep.subr.mxu0 0.0
    %965 = vmatpush1.msra.mxu0 0.0
    %966 = vmatprep.subr.mxu0 0.0
    %967 = vmatpush1.msra.mxu0 0.0
    %968 = vmatprep.subr.mxu0 0.0
    %969 = vmatpush1.msra.mxu0 0.0
    %970 = vmatprep.subr.mxu0 0.0
    %971 = vmatpush1.msra.mxu0 0.0
    %972 = vmatprep.subr.mxu0 0.0
    %973 = vmatpush1.msra.mxu0 0.0
    %974 = vmatprep.mubr.f32.mxu0 0.0
    %975 = vmatmul.mubr.f32.gmra.mrb[0].mxu0 %v905
    %v976 = vpop.f32.mrb[0].mxu0
    %v977 = vadd.f32 %v897, %v976
    %v978 = vpop.f32.mrb[0].mxu0
    %v979 = vadd.f32 %v901, %v978
    %980 = vmatprep.mubr.f32.mxu0 0.0
    %981 = vmatmul.mubr.f32.gmra.mrb[0].mxu0 %v908
    %v982 = vpop.f32.mrb[0].mxu0
    %v983 = vadd.f32 %v897, %v982
    %v984 = vpop.f32.mrb[0].mxu0
    %v985 = vadd.f32 %v901, %v984
    %986 = vdwg.mxu0
    %v987 = vsel %vm516, %v496, 0.0
    %988 = vadd.xlane.f32.xlu0 %v987
    %v989 = vpop.xlane.xlu0 %988
    %v990 = vsel %vm516, %v501, 0.0
    %991 = vadd.xlane.f32.xlu0 %v990
    %v992 = vpop.xlane.xlu0 %991
    %v993 = vrcp.pop 32.0
    %v994 = vmul.f32 %v989, %v993
    %v995 = vmul.f32 %v992, %v993
    %v996 = vsub.f32 %v496, %v994
    %v997 = vsub.f32 %v501, %v995
    %v998 = vmul.f32 %v996, %v996
    %v999 = vmul.f32 %v997, %v997
    %v1000 = vsel %vm516, %v998, 0.0
    %1001 = vadd.xlane.f32.xlu0 %v1000
    %v1002 = vpop.xlane.xlu0 %1001
    %v1003 = vsel %vm516, %v999, 0.0
    %1004 = vadd.xlane.f32.xlu0 %v1003
    %v1005 = vpop.xlane.xlu0 %1004
    %v1006 = vmul.f32 %v1002, %v993
    %v1007 = vmul.f32 %v1005, %v993
    %v1008 = vadd.f32 %v1006, 1e-06
    %v1009 = vadd.f32 %v1007, 1e-06
    %v1010 = vrsqrt.pop %v1008
    %v1011 = vrsqrt.pop %v1009
    %v1012 = vmul.f32 %v996, %v1010
    %v1013 = vmul.f32 %v997, %v1011
    %v1014 = vadd.f32 %v977, 1.0
    %v1015 = vadd.f32 %v983, 1.0
    %1018 = vrot.lane.b32.xlu0 %v1014, 64
    %v1019 = vpop.permute.xlu0 %1018
    %1020 = vrot.lane.b32.xlu0 %v1015, 64
    %v1021 = vpop.permute.xlu0 %1020
    %v1024 = vmul.f32 %v1012, %v1019
    %v1025 = vmul.f32 %v1013, %v1021
    %v1026 = vadd.f32 %v1024, %v979
    %v1027 = vadd.f32 %v1025, %v985
    %v1028 = vld [vmem:[%s41] sm:$0xff]
    %v1029 = vld [vmem:[%s41 + $0x8] sm:$0xff]
    %v1030 = vld [vmem:[%s41 + $0x10] sm:$0xff]
    %v1031 = vld [vmem:[%s41 + $0x18] sm:$0xff]
    %v1032 = vld [vmem:[#allocation15] sm:$0x1]
    %v1034 = vlaneseq
    %v1035 = vshrl.u32 %v1034, 7
    %v1036 = vsub.s32 0, %v1035
    %v1037 = vrot.slane %v1032, %v1036
    %v1040 = vsel %vm516, %v1026, 0
    %v1043 = vsel %vm516, %v1027, 0
    %1045 = vmatprep.subr.mxu0 0.0
    %1046 = vmatpush1.msra.mxu0 %v1028
    %1047 = vmatprep.subr.mxu0 0.0
    %1048 = vmatpush1.msra.mxu0 %v1029
    %1049 = vmatprep.subr.mxu0 0.0
    %1050 = vmatpush1.msra.mxu0 %v1030
    %1051 = vmatprep.subr.mxu0 0.0
    %1052 = vmatpush1.msra.mxu0 %v1031
    %1053 = vmatprep.subr.mxu0 0.0
    %1054 = vmatpush1.msra.mxu0 0.0
    %1055 = vmatprep.subr.mxu0 0.0
    %1056 = vmatpush1.msra.mxu0 0.0
    %1057 = vmatprep.subr.mxu0 0.0
    %1058 = vmatpush1.msra.mxu0 0.0
    %1059 = vmatprep.subr.mxu0 0.0
    %1060 = vmatpush1.msra.mxu0 0.0
    %1061 = vmatprep.subr.mxu0 0.0
    %1062 = vmatpush1.msra.mxu0 0.0
    %1063 = vmatprep.subr.mxu0 0.0
    %1064 = vmatpush1.msra.mxu0 0.0
    %1065 = vmatprep.subr.mxu0 0.0
    %1066 = vmatpush1.msra.mxu0 0.0
    %1067 = vmatprep.subr.mxu0 0.0
    %1068 = vmatpush1.msra.mxu0 0.0
    %1069 = vmatprep.subr.mxu0 0.0
    %1070 = vmatpush1.msra.mxu0 0.0
    %1071 = vmatprep.subr.mxu0 0.0
    %1072 = vmatpush1.msra.mxu0 0.0
    %1073 = vmatprep.subr.mxu0 0.0
    %1074 = vmatpush1.msra.mxu0 0.0
    %1075 = vmatprep.subr.mxu0 0.0
    %1076 = vmatpush1.msra.mxu0 0.0
    %1077 = vmatprep.subr.mxu0 0.0
    %1078 = vmatpush1.msra.mxu0 0.0
    %1079 = vmatprep.subr.mxu0 0.0
    %1080 = vmatpush1.msra.mxu0 0.0
    %1081 = vmatprep.subr.mxu0 0.0
    %1082 = vmatpush1.msra.mxu0 0.0
    %1083 = vmatprep.subr.mxu0 0.0
    %1084 = vmatpush1.msra.mxu0 0.0
    %1085 = vmatprep.subr.mxu0 0.0
    %1086 = vmatpush1.msra.mxu0 0.0
    %1087 = vmatprep.subr.mxu0 0.0
    %1088 = vmatpush1.msra.mxu0 0.0
    %1089 = vmatprep.subr.mxu0 0.0
    %1090 = vmatpush1.msra.mxu0 0.0
    %1091 = vmatprep.subr.mxu0 0.0
    %1092 = vmatpush1.msra.mxu0 0.0
    %1093 = vmatprep.subr.mxu0 0.0
    %1094 = vmatpush1.msra.mxu0 0.0
    %1095 = vmatprep.subr.mxu0 0.0
    %1096 = vmatpush1.msra.mxu0 0.0
    %1097 = vmatprep.subr.mxu0 0.0
    %1098 = vmatpush1.msra.mxu0 0.0
    %1099 = vmatprep.subr.mxu0 0.0
    %1100 = vmatpush1.msra.mxu0 0.0
    %1101 = vmatprep.subr.mxu0 0.0
    %1102 = vmatpush1.msra.mxu0 0.0
    %1103 = vmatprep.subr.mxu0 0.0
    %1104 = vmatpush1.msra.mxu0 0.0
    %1105 = vmatprep.subr.mxu0 0.0
    %1106 = vmatpush1.msra.mxu0 0.0
    %1107 = vmatprep.subr.mxu0 0.0
    %1108 = vmatpush1.msra.mxu0 0.0
    %1109 = vmatprep.mubr.f32.mxu0 0.0
    %1110 = vmatmul.mubr.f32.gmra.mrb[0].mxu0 %v1040
    %v1111 = vpop.f32.mrb[0].mxu0
    %v1112 = vadd.f32 %v1037, %v1111
    %v1113 = vpop.f32.mrb[0].mxu0
    %1114 = vmatprep.mubr.f32.mxu0 0.0
    %1115 = vmatmul.mubr.f32.gmra.mrb[0].mxu0 %v1043
    %v1116 = vpop.f32.mrb[0].mxu0
    %v1117 = vadd.f32 %v1037, %v1116
    %v1118 = vpop.f32.mrb[0].mxu0
    %1119 = vdwg.mxu0
    %v1121 = vsel %vm516, %v1112, 0
    %v1124 = vsel %vm516, %v1117, 0
    %1126 = vmatprep.subr.mxu0 0.0
    %1127 = vmatpush1.msra.mxu0 %v393
    %1128 = vmatprep.subr.mxu0 0.0
    %1129 = vmatpush1.msra.mxu0 %v394
    %1130 = vmatprep.subr.mxu0 0.0
    %1131 = vmatpush1.msra.mxu0 %v395
    %1132 = vmatprep.subr.mxu0 0.0
    %1133 = vmatpush1.msra.mxu0 %v396
    %1134 = vmatprep.subr.mxu0 0.0
    %1135 = vmatpush1.msra.mxu0 0.0
    %1136 = vmatprep.subr.mxu0 0.0
    %1137 = vmatpush1.msra.mxu0 0.0
    %1138 = vmatprep.subr.mxu0 0.0
    %1139 = vmatpush1.msra.mxu0 0.0
    %1140 = vmatprep.subr.mxu0 0.0
    %1141 = vmatpush1.msra.mxu0 0.0
    %1142 = vmatprep.subr.mxu0 0.0
    %1143 = vmatpush1.msra.mxu0 0.0
    %1144 = vmatprep.subr.mxu0 0.0
    %1145 = vmatpush1.msra.mxu0 0.0
    %1146 = vmatprep.subr.mxu0 0.0
    %1147 = vmatpush1.msra.mxu0 0.0
    %1148 = vmatprep.subr.mxu0 0.0
    %1149 = vmatpush1.msra.mxu0 0.0
    %1150 = vmatprep.subr.mxu0 0.0
    %1151 = vmatpush1.msra.mxu0 0.0
    %1152 = vmatprep.subr.mxu0 0.0
    %1153 = vmatpush1.msra.mxu0 0.0
    %1154 = vmatprep.subr.mxu0 0.0
    %1155 = vmatpush1.msra.mxu0 0.0
    %1156 = vmatprep.subr.mxu0 0.0
    %1157 = vmatpush1.msra.mxu0 0.0
    %1158 = vmatprep.subr.mxu0 0.0
    %1159 = vmatpush1.msra.mxu0 0.0
    %1160 = vmatprep.subr.mxu0 0.0
    %1161 = vmatpush1.msra.mxu0 0.0
    %1162 = vmatprep.subr.mxu0 0.0
    %1163 = vmatpush1.msra.mxu0 0.0
    %1164 = vmatprep.subr.mxu0 0.0
    %1165 = vmatpush1.msra.mxu0 0.0
    %1166 = vmatprep.subr.mxu0 0.0
    %1167 = vmatpush1.msra.mxu0 0.0
    %1168 = vmatprep.subr.mxu0 0.0
    %1169 = vmatpush1.msra.mxu0 0.0
    %1170 = vmatprep.subr.mxu0 0.0
    %1171 = vmatpush1.msra.mxu0 0.0
    %1172 = vmatprep.subr.mxu0 0.0
    %1173 = vmatpush1.msra.mxu0 0.0
    %1174 = vmatprep.subr.mxu0 0.0
    %1175 = vmatpush1.msra.mxu0 0.0
    %1176 = vmatprep.subr.mxu0 0.0
    %1177 = vmatpush1.msra.mxu0 0.0
    %1178 = vmatprep.subr.mxu0 0.0
    %1179 = vmatpush1.msra.mxu0 0.0
    %1180 = vmatprep.subr.mxu0 0.0
    %1181 = vmatpush1.msra.mxu0 0.0
    %1182 = vmatprep.subr.mxu0 0.0
    %1183 = vmatpush1.msra.mxu0 0.0
    %1184 = vmatprep.subr.mxu0 0.0
    %1185 = vmatpush1.msra.mxu0 0.0
    %1186 = vmatprep.subr.mxu0 0.0
    %1187 = vmatpush1.msra.mxu0 0.0
    %1188 = vmatprep.subr.mxu0 0.0
    %1189 = vmatpush1.msra.mxu0 0.0
    %1190 = vmatprep.mubr.f32.mxu0 0.0
    %1191 = vmatmul.mubr.f32.gmra.mrb[0].mxu0 %v1121
    %v1192 = vpop.f32.mrb[0].mxu0
    %v1193 = vadd.f32 0.0, %v1192
    %v1194 = vpop.f32.mrb[0].mxu0
    %1195 = vmatprep.mubr.f32.mxu0 0.0
    %1196 = vmatmul.mubr.f32.gmra.mrb[0].mxu0 %v1124
    %v1197 = vpop.f32.mrb[0].mxu0
    %v1198 = vadd.f32 0.0, %v1197
    %v1199 = vpop.f32.mrb[0].mxu0
    %1200 = vdwg.mxu0
    %v1201 = vmul.f32 %v1112, %v1112
    %v1202 = vmul.f32 %v1117, %v1117
    %v1204 = vsel %vm516, %v1201, 0
    %v1207 = vsel %vm516, %v1202, 0
    %1209 = vmatprep.subr.mxu0 0.0
    %1210 = vmatpush1.msra.mxu0 %v393
    %1211 = vmatprep.subr.mxu0 0.0
    %1212 = vmatpush1.msra.mxu0 %v394
    %1213 = vmatprep.subr.mxu0 0.0
    %1214 = vmatpush1.msra.mxu0 %v395
    %1215 = vmatprep.subr.mxu0 0.0
    %1216 = vmatpush1.msra.mxu0 %v396
    %1217 = vmatprep.subr.mxu0 0.0
    %1218 = vmatpush1.msra.mxu0 0.0
    %1219 = vmatprep.subr.mxu0 0.0
    %1220 = vmatpush1.msra.mxu0 0.0
    %1221 = vmatprep.subr.mxu0 0.0
    %1222 = vmatpush1.msra.mxu0 0.0
    %1223 = vmatprep.subr.mxu0 0.0
    %1224 = vmatpush1.msra.mxu0 0.0
    %1225 = vmatprep.subr.mxu0 0.0
    %1226 = vmatpush1.msra.mxu0 0.0
    %1227 = vmatprep.subr.mxu0 0.0
    %1228 = vmatpush1.msra.mxu0 0.0
    %1229 = vmatprep.subr.mxu0 0.0
    %1230 = vmatpush1.msra.mxu0 0.0
    %1231 = vmatprep.subr.mxu0 0.0
    %1232 = vmatpush1.msra.mxu0 0.0
    %1233 = vmatprep.subr.mxu0 0.0
    %1234 = vmatpush1.msra.mxu0 0.0
    %1235 = vmatprep.subr.mxu0 0.0
    %1236 = vmatpush1.msra.mxu0 0.0
    %1237 = vmatprep.subr.mxu0 0.0
    %1238 = vmatpush1.msra.mxu0 0.0
    %1239 = vmatprep.subr.mxu0 0.0
    %1240 = vmatpush1.msra.mxu0 0.0
    %1241 = vmatprep.subr.mxu0 0.0
    %1242 = vmatpush1.msra.mxu0 0.0
    %1243 = vmatprep.subr.mxu0 0.0
    %1244 = vmatpush1.msra.mxu0 0.0
    %1245 = vmatprep.subr.mxu0 0.0
    %1246 = vmatpush1.msra.mxu0 0.0
    %1247 = vmatprep.subr.mxu0 0.0
    %1248 = vmatpush1.msra.mxu0 0.0
    %1249 = vmatprep.subr.mxu0 0.0
    %1250 = vmatpush1.msra.mxu0 0.0
    %1251 = vmatprep.subr.mxu0 0.0
    %1252 = vmatpush1.msra.mxu0 0.0
    %1253 = vmatprep.subr.mxu0 0.0
    %1254 = vmatpush1.msra.mxu0 0.0
    %1255 = vmatprep.subr.mxu0 0.0
    %1256 = vmatpush1.msra.mxu0 0.0
    %1257 = vmatprep.subr.mxu0 0.0
    %1258 = vmatpush1.msra.mxu0 0.0
    %1259 = vmatprep.subr.mxu0 0.0
    %1260 = vmatpush1.msra.mxu0 0.0
    %1261 = vmatprep.subr.mxu0 0.0
    %1262 = vmatpush1.msra.mxu0 0.0
    %1263 = vmatprep.subr.mxu0 0.0
    %1264 = vmatpush1.msra.mxu0 0.0
    %1265 = vmatprep.subr.mxu0 0.0
    %1266 = vmatpush1.msra.mxu0 0.0
    %1267 = vmatprep.subr.mxu0 0.0
    %1268 = vmatpush1.msra.mxu0 0.0
    %1269 = vmatprep.subr.mxu0 0.0
    %1270 = vmatpush1.msra.mxu0 0.0
    %1271 = vmatprep.subr.mxu0 0.0
    %1272 = vmatpush1.msra.mxu0 0.0
    %1273 = vmatprep.mubr.f32.mxu0 0.0
    %1274 = vmatmul.mubr.f32.gmra.mrb[0].mxu0 %v1204
    %v1275 = vpop.f32.mrb[0].mxu0
    %v1276 = vadd.f32 0.0, %v1275
    %v1277 = vpop.f32.mrb[0].mxu0
    %1278 = vmatprep.mubr.f32.mxu0 0.0
    %1279 = vmatmul.mubr.f32.gmra.mrb[0].mxu0 %v1207
    %v1280 = vpop.f32.mrb[0].mxu0
    %v1281 = vadd.f32 0.0, %v1280
    %v1282 = vpop.f32.mrb[0].mxu0
    %1283 = vdwg.mxu0
    %v1284 = vmul.f32 %v1193, %v1193
    %v1285 = vmul.f32 %v1198, %v1198
    %v1286 = vsub.f32 %v1276, %v1284
    %v1287 = vsub.f32 %v1281, %v1285
    %v1288 = vsub.f32 %v1112, %v1193
    %v1289 = vsub.f32 %v1117, %v1198
    %v1290 = vadd.f32 %v1286, 1e-05
    %v1291 = vadd.f32 %v1287, 1e-05
    %v1292 = vrsqrt.pop %v1290
    %v1293 = vrsqrt.pop %v1291
    %v1294 = vmul.f32 %v1288, %v1292
    %v1295 = vmul.f32 %v1289, %v1293
    %v1296 = vld [vmem:[#allocation16] sm:$0x1]
    %v1298 = vlaneseq
    %v1299 = vshrl.u32 %v1298, 7
    %v1300 = vsub.s32 0, %v1299
    %v1301 = vrot.slane %v1296, %v1300
    %v1303 = vmul.f32 %v1294, %v1301
    %v1304 = vmul.f32 %v1295, %v1301
    %v1305 = vld [vmem:[#allocation18] sm:$0x1]
    %v1307 = vlaneseq
    %v1308 = vshrl.u32 %v1307, 7
    %v1309 = vsub.s32 0, %v1308
    %v1310 = vrot.slane %v1305, %v1309
    %v1312 = vadd.f32 %v1303, %v1310
    %v1313 = vadd.f32 %v1304, %v1310
    %1314 = vrot.lane.b32.xlu0 %v1112, 96
    %v1315 = vpop.permute.xlu0 %1314
    %1316 = vrot.lane.b32.xlu0 %v1117, 96
    %v1317 = vpop.permute.xlu0 %1316
    %v1318 = vsel %vm516, %v1315, 0
    %v1320 = vsel %vm516, %v1317, 0
    %1322 = vmatprep.subr.mxu0 0.0
    %1323 = vmatpush1.msra.mxu0 %v393
    %1324 = vmatprep.subr.mxu0 0.0
    %1325 = vmatpush1.msra.mxu0 %v394
    %1326 = vmatprep.subr.mxu0 0.0
    %1327 = vmatpush1.msra.mxu0 %v395
    %1328 = vmatprep.subr.mxu0 0.0
    %1329 = vmatpush1.msra.mxu0 %v396
    %1330 = vmatprep.subr.mxu0 0.0
    %1331 = vmatpush1.msra.mxu0 0.0
    %1332 = vmatprep.subr.mxu0 0.0
    %1333 = vmatpush1.msra.mxu0 0.0
    %1334 = vmatprep.subr.mxu0 0.0
    %1335 = vmatpush1.msra.mxu0 0.0
    %1336 = vmatprep.subr.mxu0 0.0
    %1337 = vmatpush1.msra.mxu0 0.0
    %1338 = vmatprep.subr.mxu0 0.0
    %1339 = vmatpush1.msra.mxu0 0.0
    %1340 = vmatprep.subr.mxu0 0.0
    %1341 = vmatpush1.msra.mxu0 0.0
    %1342 = vmatprep.subr.mxu0 0.0
    %1343 = vmatpush1.msra.mxu0 0.0
    %1344 = vmatprep.subr.mxu0 0.0
    %1345 = vmatpush1.msra.mxu0 0.0
    %1346 = vmatprep.subr.mxu0 0.0
    %1347 = vmatpush1.msra.mxu0 0.0
    %1348 = vmatprep.subr.mxu0 0.0
    %1349 = vmatpush1.msra.mxu0 0.0
    %1350 = vmatprep.subr.mxu0 0.0
    %1351 = vmatpush1.msra.mxu0 0.0
    %1352 = vmatprep.subr.mxu0 0.0
    %1353 = vmatpush1.msra.mxu0 0.0
    %1354 = vmatprep.subr.mxu0 0.0
    %1355 = vmatpush1.msra.mxu0 0.0
    %1356 = vmatprep.subr.mxu0 0.0
    %1357 = vmatpush1.msra.mxu0 0.0
    %1358 = vmatprep.subr.mxu0 0.0
    %1359 = vmatpush1.msra.mxu0 0.0
    %1360 = vmatprep.subr.mxu0 0.0
    %1361 = vmatpush1.msra.mxu0 0.0
    %1362 = vmatprep.subr.mxu0 0.0
    %1363 = vmatpush1.msra.mxu0 0.0
    %1364 = vmatprep.subr.mxu0 0.0
    %1365 = vmatpush1.msra.mxu0 0.0
    %1366 = vmatprep.subr.mxu0 0.0
    %1367 = vmatpush1.msra.mxu0 0.0
    %1368 = vmatprep.subr.mxu0 0.0
    %1369 = vmatpush1.msra.mxu0 0.0
    %1370 = vmatprep.subr.mxu0 0.0
    %1371 = vmatpush1.msra.mxu0 0.0
    %1372 = vmatprep.subr.mxu0 0.0
    %1373 = vmatpush1.msra.mxu0 0.0
    %1374 = vmatprep.subr.mxu0 0.0
    %1375 = vmatpush1.msra.mxu0 0.0
    %1376 = vmatprep.subr.mxu0 0.0
    %1377 = vmatpush1.msra.mxu0 0.0
    %1378 = vmatprep.subr.mxu0 0.0
    %1379 = vmatpush1.msra.mxu0 0.0
    %1380 = vmatprep.subr.mxu0 0.0
    %1381 = vmatpush1.msra.mxu0 0.0
    %1382 = vmatprep.subr.mxu0 0.0
    %1383 = vmatpush1.msra.mxu0 0.0
    %1384 = vmatprep.subr.mxu0 0.0
    %1385 = vmatpush1.msra.mxu0 0.0
    %1386 = vmatprep.mubr.f32.mxu0 0.0
    %1387 = vmatmul.mubr.f32.gmra.mrb[0].mxu0 %v1318
    %v1388 = vpop.f32.mrb[0].mxu0
    %v1389 = vadd.f32 0.0, %v1388
    %v1390 = vpop.f32.mrb[0].mxu0
    %1391 = vmatprep.mubr.f32.mxu0 0.0
    %1392 = vmatmul.mubr.f32.gmra.mrb[0].mxu0 %v1320
    %v1393 = vpop.f32.mrb[0].mxu0
    %v1394 = vadd.f32 0.0, %v1393
    %v1395 = vpop.f32.mrb[0].mxu0
    %1396 = vdwg.mxu0
    %1397 = vrot.lane.b32.xlu0 %v1201, 96
    %v1398 = vpop.permute.xlu0 %1397
    %1399 = vrot.lane.b32.xlu0 %v1202, 96
    %v1400 = vpop.permute.xlu0 %1399
    %v1401 = vsel %vm516, %v1398, 0
    %v1403 = vsel %vm516, %v1400, 0
    %1405 = vmatprep.subr.mxu0 0.0
    %1406 = vmatpush1.msra.mxu0 %v393
    %1407 = vmatprep.subr.mxu0 0.0
    %1408 = vmatpush1.msra.mxu0 %v394
    %1409 = vmatprep.subr.mxu0 0.0
    %1410 = vmatpush1.msra.mxu0 %v395
    %1411 = vmatprep.subr.mxu0 0.0
    %1412 = vmatpush1.msra.mxu0 %v396
    %1413 = vmatprep.subr.mxu0 0.0
    %1414 = vmatpush1.msra.mxu0 0.0
    %1415 = vmatprep.subr.mxu0 0.0
    %1416 = vmatpush1.msra.mxu0 0.0
    %1417 = vmatprep.subr.mxu0 0.0
    %1418 = vmatpush1.msra.mxu0 0.0
    %1419 = vmatprep.subr.mxu0 0.0
    %1420 = vmatpush1.msra.mxu0 0.0
    %1421 = vmatprep.subr.mxu0 0.0
    %1422 = vmatpush1.msra.mxu0 0.0
    %1423 = vmatprep.subr.mxu0 0.0
    %1424 = vmatpush1.msra.mxu0 0.0
    %1425 = vmatprep.subr.mxu0 0.0
    %1426 = vmatpush1.msra.mxu0 0.0
    %1427 = vmatprep.subr.mxu0 0.0
    %1428 = vmatpush1.msra.mxu0 0.0
    %1429 = vmatprep.subr.mxu0 0.0
    %1430 = vmatpush1.msra.mxu0 0.0
    %1431 = vmatprep.subr.mxu0 0.0
    %1432 = vmatpush1.msra.mxu0 0.0
    %1433 = vmatprep.subr.mxu0 0.0
    %1434 = vmatpush1.msra.mxu0 0.0
    %1435 = vmatprep.subr.mxu0 0.0
    %1436 = vmatpush1.msra.mxu0 0.0
    %1437 = vmatprep.subr.mxu0 0.0
    %1438 = vmatpush1.msra.mxu0 0.0
    %1439 = vmatprep.subr.mxu0 0.0
    %1440 = vmatpush1.msra.mxu0 0.0
    %1441 = vmatprep.subr.mxu0 0.0
    %1442 = vmatpush1.msra.mxu0 0.0
    %1443 = vmatprep.subr.mxu0 0.0
    %1444 = vmatpush1.msra.mxu0 0.0
    %1445 = vmatprep.subr.mxu0 0.0
    %1446 = vmatpush1.msra.mxu0 0.0
    %1447 = vmatprep.subr.mxu0 0.0
    %1448 = vmatpush1.msra.mxu0 0.0
    %1449 = vmatprep.subr.mxu0 0.0
    %1450 = vmatpush1.msra.mxu0 0.0
    %1451 = vmatprep.subr.mxu0 0.0
    %1452 = vmatpush1.msra.mxu0 0.0
    %1453 = vmatprep.subr.mxu0 0.0
    %1454 = vmatpush1.msra.mxu0 0.0
    %1455 = vmatprep.subr.mxu0 0.0
    %1456 = vmatpush1.msra.mxu0 0.0
    %1457 = vmatprep.subr.mxu0 0.0
    %1458 = vmatpush1.msra.mxu0 0.0
    %1459 = vmatprep.subr.mxu0 0.0
    %1460 = vmatpush1.msra.mxu0 0.0
    %1461 = vmatprep.subr.mxu0 0.0
    %1462 = vmatpush1.msra.mxu0 0.0
    %1463 = vmatprep.subr.mxu0 0.0
    %1464 = vmatpush1.msra.mxu0 0.0
    %1465 = vmatprep.subr.mxu0 0.0
    %1466 = vmatpush1.msra.mxu0 0.0
    %1467 = vmatprep.subr.mxu0 0.0
    %1468 = vmatpush1.msra.mxu0 0.0
    %1469 = vmatprep.mubr.f32.mxu0 0.0
    %1470 = vmatmul.mubr.f32.gmra.mrb[0].mxu0 %v1401
    %v1471 = vpop.f32.mrb[0].mxu0
    %v1472 = vadd.f32 0.0, %v1471
    %v1473 = vpop.f32.mrb[0].mxu0
    %1474 = vmatprep.mubr.f32.mxu0 0.0
    %1475 = vmatmul.mubr.f32.gmra.mrb[0].mxu0 %v1403
    %v1476 = vpop.f32.mrb[0].mxu0
    %v1477 = vadd.f32 0.0, %v1476
    %v1478 = vpop.f32.mrb[0].mxu0
    %1479 = vdwg.mxu0
    %v1480 = vmul.f32 %v1389, %v1389
    %v1481 = vmul.f32 %v1394, %v1394
    %v1482 = vsub.f32 %v1472, %v1480
    %v1483 = vsub.f32 %v1477, %v1481
    %1486 = vrot.lane.b32.xlu0 %v1389, 32
    %v1487 = vpop.permute.xlu0 %1486
    %1488 = vrot.lane.b32.xlu0 %v1394, 32
    %v1489 = vpop.permute.xlu0 %1488
    %v1492 = vsub.f32 %v1112, %v1487
    %v1493 = vsub.f32 %v1117, %v1489
    %v1494 = vadd.f32 %v1482, 1e-05
    %v1495 = vadd.f32 %v1483, 1e-05
    %v1496 = vrsqrt.pop %v1494
    %v1497 = vrsqrt.pop %v1495
    %1500 = vrot.lane.b32.xlu0 %v1496, 32
    %v1501 = vpop.permute.xlu0 %1500
    %1502 = vrot.lane.b32.xlu0 %v1497, 32
    %v1503 = vpop.permute.xlu0 %1502
    %v1506 = vmul.f32 %v1492, %v1501
    %v1507 = vmul.f32 %v1493, %v1503
    %v1508 = vld [vmem:[#allocation19] sm:$0x1]
    %v1510 = vlaneseq
    %v1511 = vshrl.u32 %v1510, 7
    %v1512 = vsub.s32 0, %v1511
    %v1513 = vrot.slane %v1508, %v1512
    %1514 = vrot.lane.b32.xlu0 %v1513, 32
    %v1515 = vpop.permute.xlu0 %1514
    %v1517 = vmul.f32 %v1506, %v1515
    %v1518 = vmul.f32 %v1507, %v1515
    %v1519 = vld [vmem:[#allocation21] sm:$0x1]
    %v1521 = vlaneseq
    %v1522 = vshrl.u32 %v1521, 7
    %v1523 = vsub.s32 0, %v1522
    %v1524 = vrot.slane %v1519, %v1523
    %1525 = vrot.lane.b32.xlu0 %v1524, 32
    %v1526 = vpop.permute.xlu0 %1525
    %v1528 = vadd.f32 %v1517, %v1526
    %v1529 = vadd.f32 %v1518, %v1526
    %v1530 = vmul.f32 %v1312, %v401
    %v1531 = vmul.f32 %v1313, %v402
    %v1533 = vsel %vm516, %v1312, 0
    %v1536 = vsel %vm516, %v1313, 0
    %1538 = vmatprep.subr.mxu0 0.0
    %1539 = vmatpush1.msra.mxu0 %v397
    %1540 = vmatprep.subr.mxu0 0.0
    %1541 = vmatpush1.msra.mxu0 %v398
    %1542 = vmatprep.subr.mxu0 0.0
    %1543 = vmatpush1.msra.mxu0 %v399
    %1544 = vmatprep.subr.mxu0 0.0
    %1545 = vmatpush1.msra.mxu0 %v400
    %1546 = vmatprep.subr.mxu0 0.0
    %1547 = vmatpush1.msra.mxu0 0.0
    %1548 = vmatprep.subr.mxu0 0.0
    %1549 = vmatpush1.msra.mxu0 0.0
    %1550 = vmatprep.subr.mxu0 0.0
    %1551 = vmatpush1.msra.mxu0 0.0
    %1552 = vmatprep.subr.mxu0 0.0
    %1553 = vmatpush1.msra.mxu0 0.0
    %1554 = vmatprep.subr.mxu0 0.0
    %1555 = vmatpush1.msra.mxu0 0.0
    %1556 = vmatprep.subr.mxu0 0.0
    %1557 = vmatpush1.msra.mxu0 0.0
    %1558 = vmatprep.subr.mxu0 0.0
    %1559 = vmatpush1.msra.mxu0 0.0
    %1560 = vmatprep.subr.mxu0 0.0
    %1561 = vmatpush1.msra.mxu0 0.0
    %1562 = vmatprep.subr.mxu0 0.0
    %1563 = vmatpush1.msra.mxu0 0.0
    %1564 = vmatprep.subr.mxu0 0.0
    %1565 = vmatpush1.msra.mxu0 0.0
    %1566 = vmatprep.subr.mxu0 0.0
    %1567 = vmatpush1.msra.mxu0 0.0
    %1568 = vmatprep.subr.mxu0 0.0
    %1569 = vmatpush1.msra.mxu0 0.0
    %1570 = vmatprep.subr.mxu0 0.0
    %1571 = vmatpush1.msra.mxu0 0.0
    %1572 = vmatprep.subr.mxu0 0.0
    %1573 = vmatpush1.msra.mxu0 0.0
    %1574 = vmatprep.subr.mxu0 0.0
    %1575 = vmatpush1.msra.mxu0 0.0
    %1576 = vmatprep.subr.mxu0 0.0
    %1577 = vmatpush1.msra.mxu0 0.0
    %1578 = vmatprep.subr.mxu0 0.0
    %1579 = vmatpush1.msra.mxu0 0.0
    %1580 = vmatprep.subr.mxu0 0.0
    %1581 = vmatpush1.msra.mxu0 0.0
    %1582 = vmatprep.subr.mxu0 0.0
    %1583 = vmatpush1.msra.mxu0 0.0
    %1584 = vmatprep.subr.mxu0 0.0
    %1585 = vmatpush1.msra.mxu0 0.0
    %1586 = vmatprep.subr.mxu0 0.0
    %1587 = vmatpush1.msra.mxu0 0.0
    %1588 = vmatprep.subr.mxu0 0.0
    %1589 = vmatpush1.msra.mxu0 0.0
    %1590 = vmatprep.subr.mxu0 0.0
    %1591 = vmatpush1.msra.mxu0 0.0
    %1592 = vmatprep.subr.mxu0 0.0
    %1593 = vmatpush1.msra.mxu0 0.0
    %1594 = vmatprep.subr.mxu0 0.0
    %1595 = vmatpush1.msra.mxu0 0.0
    %1596 = vmatprep.subr.mxu0 0.0
    %1597 = vmatpush1.msra.mxu0 0.0
    %1598 = vmatprep.subr.mxu0 0.0
    %1599 = vmatpush1.msra.mxu0 0.0
    %1600 = vmatprep.subr.mxu0 0.0
    %1601 = vmatpush1.msra.mxu0 0.0
    %1602 = vmatprep.mubr.f32.mxu0 0.0
    %1603 = vmatmul.mubr.f32.gmra.mrb[0].mxu0 %v1533
    %v1604 = vpop.f32.mrb[0].mxu0
    %v1605 = vadd.f32 0.0, %v1604
    %v1606 = vpop.f32.mrb[0].mxu0
    %1607 = vmatprep.mubr.f32.mxu0 0.0
    %1608 = vmatmul.mubr.f32.gmra.mrb[0].mxu0 %v1536
    %v1609 = vpop.f32.mrb[0].mxu0
    %v1610 = vadd.f32 0.0, %v1609
    %v1611 = vpop.f32.mrb[0].mxu0
    %1612 = vdwg.mxu0
    %v1613 = vmul.f32 %v1605, %v403
    %v1614 = vmul.f32 %v1610, %v404
    %v1615 = vadd.f32 %v1530, %v1613
    %v1616 = vadd.f32 %v1531, %v1614
    %1619 = vrot.lane.b32.xlu0 %v401, 32
    %v1620 = vpop.permute.xlu0 %1619
    %1621 = vrot.lane.b32.xlu0 %v402, 32
    %v1622 = vpop.permute.xlu0 %1621
    %v1625 = vmul.f32 %v1528, %v1620
    %v1626 = vmul.f32 %v1529, %v1622
    %1629 = vrot.lane.b32.xlu0 %v1528, 96
    %v1630 = vpop.permute.xlu0 %1629
    %1631 = vrot.lane.b32.xlu0 %v1529, 96
    %v1632 = vpop.permute.xlu0 %1631
    %v1633 = vsel %vm516, %v1630, 0
    %v1635 = vsel %vm516, %v1632, 0
    %1637 = vmatprep.subr.mxu0 0.0
    %1638 = vmatpush1.msra.mxu0 %v397
    %1639 = vmatprep.subr.mxu0 0.0
    %1640 = vmatpush1.msra.mxu0 %v398
    %1641 = vmatprep.subr.mxu0 0.0
    %1642 = vmatpush1.msra.mxu0 %v399
    %1643 = vmatprep.subr.mxu0 0.0
    %1644 = vmatpush1.msra.mxu0 %v400
    %1645 = vmatprep.subr.mxu0 0.0
    %1646 = vmatpush1.msra.mxu0 0.0
    %1647 = vmatprep.subr.mxu0 0.0
    %1648 = vmatpush1.msra.mxu0 0.0
    %1649 = vmatprep.subr.mxu0 0.0
    %1650 = vmatpush1.msra.mxu0 0.0
    %1651 = vmatprep.subr.mxu0 0.0
    %1652 = vmatpush1.msra.mxu0 0.0
    %1653 = vmatprep.subr.mxu0 0.0
    %1654 = vmatpush1.msra.mxu0 0.0
    %1655 = vmatprep.subr.mxu0 0.0
    %1656 = vmatpush1.msra.mxu0 0.0
    %1657 = vmatprep.subr.mxu0 0.0
    %1658 = vmatpush1.msra.mxu0 0.0
    %1659 = vmatprep.subr.mxu0 0.0
    %1660 = vmatpush1.msra.mxu0 0.0
    %1661 = vmatprep.subr.mxu0 0.0
    %1662 = vmatpush1.msra.mxu0 0.0
    %1663 = vmatprep.subr.mxu0 0.0
    %1664 = vmatpush1.msra.mxu0 0.0
    %1665 = vmatprep.subr.mxu0 0.0
    %1666 = vmatpush1.msra.mxu0 0.0
    %1667 = vmatprep.subr.mxu0 0.0
    %1668 = vmatpush1.msra.mxu0 0.0
    %1669 = vmatprep.subr.mxu0 0.0
    %1670 = vmatpush1.msra.mxu0 0.0
    %1671 = vmatprep.subr.mxu0 0.0
    %1672 = vmatpush1.msra.mxu0 0.0
    %1673 = vmatprep.subr.mxu0 0.0
    %1674 = vmatpush1.msra.mxu0 0.0
    %1675 = vmatprep.subr.mxu0 0.0
    %1676 = vmatpush1.msra.mxu0 0.0
    %1677 = vmatprep.subr.mxu0 0.0
    %1678 = vmatpush1.msra.mxu0 0.0
    %1679 = vmatprep.subr.mxu0 0.0
    %1680 = vmatpush1.msra.mxu0 0.0
    %1681 = vmatprep.subr.mxu0 0.0
    %1682 = vmatpush1.msra.mxu0 0.0
    %1683 = vmatprep.subr.mxu0 0.0
    %1684 = vmatpush1.msra.mxu0 0.0
    %1685 = vmatprep.subr.mxu0 0.0
    %1686 = vmatpush1.msra.mxu0 0.0
    %1687 = vmatprep.subr.mxu0 0.0
    %1688 = vmatpush1.msra.mxu0 0.0
    %1689 = vmatprep.subr.mxu0 0.0
    %1690 = vmatpush1.msra.mxu0 0.0
    %1691 = vmatprep.subr.mxu0 0.0
    %1692 = vmatpush1.msra.mxu0 0.0
    %1693 = vmatprep.subr.mxu0 0.0
    %1694 = vmatpush1.msra.mxu0 0.0
    %1695 = vmatprep.subr.mxu0 0.0
    %1696 = vmatpush1.msra.mxu0 0.0
    %1697 = vmatprep.subr.mxu0 0.0
    %1698 = vmatpush1.msra.mxu0 0.0
    %1699 = vmatprep.subr.mxu0 0.0
    %1700 = vmatpush1.msra.mxu0 0.0
    %1701 = vmatprep.mubr.f32.mxu0 0.0
    %1702 = vmatmul.mubr.f32.gmra.mrb[0].mxu0 %v1633
    %v1703 = vpop.f32.mrb[0].mxu0
    %v1704 = vadd.f32 0.0, %v1703
    %v1705 = vpop.f32.mrb[0].mxu0
    %1706 = vmatprep.mubr.f32.mxu0 0.0
    %1707 = vmatmul.mubr.f32.gmra.mrb[0].mxu0 %v1635
    %v1708 = vpop.f32.mrb[0].mxu0
    %v1709 = vadd.f32 0.0, %v1708
    %v1710 = vpop.f32.mrb[0].mxu0
    %1711 = vdwg.mxu0
    %v1712 = vmul.f32 %v1704, %v403
    %v1713 = vmul.f32 %v1709, %v404
    %1716 = vrot.lane.b32.xlu0 %v1712, 32
    %v1717 = vpop.permute.xlu0 %1716
    %1718 = vrot.lane.b32.xlu0 %v1713, 32
    %v1719 = vpop.permute.xlu0 %1718
    %v1722 = vadd.f32 %v1625, %v1717
    %v1723 = vadd.f32 %v1626, %v1719
    %v1724 = vld [vmem:[#allocation6] sm:$0x1]
    %v1726 = vlaneseq
    %v1727 = vshrl.u32 %v1726, 7
    %v1728 = vsub.s32 0, %v1727
    %v1729 = vrot.slane %v1724, %v1728
    %v1731 = vmul.f32 %v1615, %v1729
    %v1732 = vmul.f32 %v1616, %v1729
    %1735 = vrot.lane.b32.xlu0 %v1722, 96
    %v1736 = vpop.permute.xlu0 %1735
    %1737 = vrot.lane.b32.xlu0 %v1723, 96
    %v1738 = vpop.permute.xlu0 %1737
    %v1740 = vsel %vm516, %v1731, 0
    %v1743 = vsel %vm516, %v1732, 0
    %v1745 = vsel %vm516, %v1736, 0
    %v1747 = vsel %vm516, %v1738, 0
    %1749 = vmatprep.subr.mxu0 0.0
    %1750 = vmatpush1.xpose.msra.mxu0 %v1745
    %1751 = vmatprep.subr.mxu0 0.0
    %1752 = vmatpush1.xpose.msra.mxu0 %v1747
    %1753 = vmatprep.subr.mxu0 0.0
    %1754 = vmatpush1.xpose.msra.mxu0 0.0
    %1755 = vmatprep.subr.mxu0 0.0
    %1756 = vmatpush1.xpose.msra.mxu0 0.0
    %1757 = vmatprep.subr.mxu0 0.0
    %1758 = vmatpush1.xpose.msra.mxu0 0.0
    %1759 = vmatprep.subr.mxu0 0.0
    %1760 = vmatpush1.xpose.msra.mxu0 0.0
    %1761 = vmatprep.subr.mxu0 0.0
    %1762 = vmatpush1.xpose.msra.mxu0 0.0
    %1763 = vmatprep.subr.mxu0 0.0
    %1764 = vmatpush1.xpose.msra.mxu0 0.0
    %1765 = vmatprep.subr.mxu0 0.0
    %1766 = vmatpush1.xpose.msra.mxu0 0.0
    %1767 = vmatprep.subr.mxu0 0.0
    %1768 = vmatpush1.xpose.msra.mxu0 0.0
    %1769 = vmatprep.subr.mxu0 0.0
    %1770 = vmatpush1.xpose.msra.mxu0 0.0
    %1771 = vmatprep.subr.mxu0 0.0
    %1772 = vmatpush1.xpose.msra.mxu0 0.0
    %1773 = vmatprep.subr.mxu0 0.0
    %1774 = vmatpush1.xpose.msra.mxu0 0.0
    %1775 = vmatprep.subr.mxu0 0.0
    %1776 = vmatpush1.xpose.msra.mxu0 0.0
    %1777 = vmatprep.subr.mxu0 0.0
    %1778 = vmatpush1.xpose.msra.mxu0 0.0
    %1779 = vmatprep.subr.mxu0 0.0
    %1780 = vmatpush1.xpose.msra.mxu0 0.0
    %1781 = vmatprep.subr.mxu0 0.0
    %1782 = vmatpush1.xpose.msra.mxu0 0.0
    %1783 = vmatprep.subr.mxu0 0.0
    %1784 = vmatpush1.xpose.msra.mxu0 0.0
    %1785 = vmatprep.subr.mxu0 0.0
    %1786 = vmatpush1.xpose.msra.mxu0 0.0
    %1787 = vmatprep.subr.mxu0 0.0
    %1788 = vmatpush1.xpose.msra.mxu0 0.0
    %1789 = vmatprep.subr.mxu0 0.0
    %1790 = vmatpush1.xpose.msra.mxu0 0.0
    %1791 = vmatprep.subr.mxu0 0.0
    %1792 = vmatpush1.xpose.msra.mxu0 0.0
    %1793 = vmatprep.subr.mxu0 0.0
    %1794 = vmatpush1.xpose.msra.mxu0 0.0
    %1795 = vmatprep.subr.mxu0 0.0
    %1796 = vmatpush1.xpose.msra.mxu0 0.0
    %1797 = vmatprep.subr.mxu0 0.0
    %1798 = vmatpush1.xpose.msra.mxu0 0.0
    %1799 = vmatprep.subr.mxu0 0.0
    %1800 = vmatpush1.xpose.msra.mxu0 0.0
    %1801 = vmatprep.subr.mxu0 0.0
    %1802 = vmatpush1.xpose.msra.mxu0 0.0
    %1803 = vmatprep.subr.mxu0 0.0
    %1804 = vmatpush1.xpose.msra.mxu0 0.0
    %1805 = vmatprep.subr.mxu0 0.0
    %1806 = vmatpush1.xpose.msra.mxu0 0.0
    %1807 = vmatprep.subr.mxu0 0.0
    %1808 = vmatpush1.xpose.msra.mxu0 0.0
    %1809 = vmatprep.subr.mxu0 0.0
    %1810 = vmatpush1.xpose.msra.mxu0 0.0
    %1811 = vmatprep.subr.mxu0 0.0
    %1812 = vmatpush1.xpose.msra.mxu0 0.0
    %1813 = vmatprep.mubr.f32.mxu0 0.0
    %1814 = vmatmul.mubr.f32.gmra.mrb[0].mxu0 %v1740
    %v1815 = vpop.f32.mrb[0].mxu0
    %v1816 = vadd.f32 0.0, %v1815
    %v1817 = vpop.f32.mrb[0].mxu0
    %1818 = vmatprep.mubr.f32.mxu0 0.0
    %1819 = vmatmul.mubr.f32.gmra.mrb[0].mxu0 %v1743
    %v1820 = vpop.f32.mrb[0].mxu0
    %v1821 = vadd.f32 0.0, %v1820
    %v1822 = vpop.f32.mrb[0].mxu0
    %1823 = vdwg.mxu0
    %v1824 = vmul.f32 %v1816, 0.35355338
    %v1825 = vmul.f32 %v1821, 0.35355338
    %v1826 = vadd.f32 %v1824, %v405
    %v1827 = vadd.f32 %v1825, %v406
    %vm1828 = vcmask 130048
    %v1829 = vsel %vm1828, %v1826, -inf
    %1830 = vmax.xlane.f32.xlu0 %v1829
    %v1831 = vpop.xlane.xlu0 %1830
    %v1832 = vsel %vm1828, %v1827, -inf
    %1833 = vmax.xlane.f32.xlu0 %v1832
    %v1834 = vpop.xlane.xlu0 %1833
    %v1835 = vsub.f32 %v1826, %v1831
    %v1836 = vsub.f32 %v1827, %v1834
    %v1837 = vmul.f32 %v1835, 1.442695
    %v1838 = vpow.pop %v1837
    %v1839 = vmul.f32 %v1836, 1.442695
    %v1840 = vpow.pop %v1839
    %v1841 = vsel %vm1828, %v1838, 0.0
    %1842 = vadd.xlane.f32.xlu0 %v1841
    %v1843 = vpop.xlane.xlu0 %1842
    %v1844 = vsel %vm1828, %v1840, 0.0
    %1845 = vadd.xlane.f32.xlu0 %v1844
    %v1846 = vpop.xlane.xlu0 %1845
    %v1847 = vrcp.pop %v1843
    %v1848 = vrcp.pop %v1846
    %v1849 = vmul.f32 %v1838, %v1847
    %v1850 = vmul.f32 %v1840, %v1848
    %1851 = vrot.lane.b32.xlu0 %v1729, 64
    %v1852 = vpop.permute.xlu0 %1851
    %v1854 = vmul.f32 %v1112, %v1852
    %v1855 = vmul.f32 %v1117, %v1852
    %s1856 = scalar_lea.vmem [#allocation6], 1
    %v1857 = vld [vmem:[%s1856] sm:$0x1]
    %v1859 = vlaneseq
    %v1860 = vshrl.u32 %v1859, 7
    %v1861 = vsub.s32 0, %v1860
    %v1862 = vrot.slane %v1857, %v1861
    %v1864 = vmul.f32 %v1615, %v1862
    %v1865 = vmul.f32 %v1616, %v1862
    %v1867 = vsel %vm516, %v1864, 0
    %v1870 = vsel %vm516, %v1865, 0
    %1872 = vmatprep.subr.mxu0 0.0
    %1873 = vmatpush1.xpose.msra.mxu0 %v1745
    %1874 = vmatprep.subr.mxu0 0.0
    %1875 = vmatpush1.xpose.msra.mxu0 %v1747
    %1876 = vmatprep.subr.mxu0 0.0
    %1877 = vmatpush1.xpose.msra.mxu0 0.0
    %1878 = vmatprep.subr.mxu0 0.0
    %1879 = vmatpush1.xpose.msra.mxu0 0.0
    %1880 = vmatprep.subr.mxu0 0.0
    %1881 = vmatpush1.xpose.msra.mxu0 0.0
    %1882 = vmatprep.subr.mxu0 0.0
    %1883 = vmatpush1.xpose.msra.mxu0 0.0
    %1884 = vmatprep.subr.mxu0 0.0
    %1885 = vmatpush1.xpose.msra.mxu0 0.0
    %1886 = vmatprep.subr.mxu0 0.0
    %1887 = vmatpush1.xpose.msra.mxu0 0.0
    %1888 = vmatprep.subr.mxu0 0.0
    %1889 = vmatpush1.xpose.msra.mxu0 0.0
    %1890 = vmatprep.subr.mxu0 0.0
    %1891 = vmatpush1.xpose.msra.mxu0 0.0
    %1892 = vmatprep.subr.mxu0 0.0
    %1893 = vmatpush1.xpose.msra.mxu0 0.0
    %1894 = vmatprep.subr.mxu0 0.0
    %1895 = vmatpush1.xpose.msra.mxu0 0.0
    %1896 = vmatprep.subr.mxu0 0.0
    %1897 = vmatpush1.xpose.msra.mxu0 0.0
    %1898 = vmatprep.subr.mxu0 0.0
    %1899 = vmatpush1.xpose.msra.mxu0 0.0
    %1900 = vmatprep.subr.mxu0 0.0
    %1901 = vmatpush1.xpose.msra.mxu0 0.0
    %1902 = vmatprep.subr.mxu0 0.0
    %1903 = vmatpush1.xpose.msra.mxu0 0.0
    %1904 = vmatprep.subr.mxu0 0.0
    %1905 = vmatpush1.xpose.msra.mxu0 0.0
    %1906 = vmatprep.subr.mxu0 0.0
    %1907 = vmatpush1.xpose.msra.mxu0 0.0
    %1908 = vmatprep.subr.mxu0 0.0
    %1909 = vmatpush1.xpose.msra.mxu0 0.0
    %1910 = vmatprep.subr.mxu0 0.0
    %1911 = vmatpush1.xpose.msra.mxu0 0.0
    %1912 = vmatprep.subr.mxu0 0.0
    %1913 = vmatpush1.xpose.msra.mxu0 0.0
    %1914 = vmatprep.subr.mxu0 0.0
    %1915 = vmatpush1.xpose.msra.mxu0 0.0
    %1916 = vmatprep.subr.mxu0 0.0
    %1917 = vmatpush1.xpose.msra.mxu0 0.0
    %1918 = vmatprep.subr.mxu0 0.0
    %1919 = vmatpush1.xpose.msra.mxu0 0.0
    %1920 = vmatprep.subr.mxu0 0.0
    %1921 = vmatpush1.xpose.msra.mxu0 0.0
    %1922 = vmatprep.subr.mxu0 0.0
    %1923 = vmatpush1.xpose.msra.mxu0 0.0
    %1924 = vmatprep.subr.mxu0 0.0
    %1925 = vmatpush1.xpose.msra.mxu0 0.0
    %1926 = vmatprep.subr.mxu0 0.0
    %1927 = vmatpush1.xpose.msra.mxu0 0.0
    %1928 = vmatprep.subr.mxu0 0.0
    %1929 = vmatpush1.xpose.msra.mxu0 0.0
    %1930 = vmatprep.subr.mxu0 0.0
    %1931 = vmatpush1.xpose.msra.mxu0 0.0
    %1932 = vmatprep.subr.mxu0 0.0
    %1933 = vmatpush1.xpose.msra.mxu0 0.0
    %1934 = vmatprep.subr.mxu0 0.0
    %1935 = vmatpush1.xpose.msra.mxu0 0.0
    %1936 = vmatprep.mubr.f32.mxu0 0.0
    %1937 = vmatmul.mubr.f32.gmra.mrb[0].mxu0 %v1867
    %v1938 = vpop.f32.mrb[0].mxu0
    %v1939 = vadd.f32 0.0, %v1938
    %v1940 = vpop.f32.mrb[0].mxu0
    %1941 = vmatprep.mubr.f32.mxu0 0.0
    %1942 = vmatmul.mubr.f32.gmra.mrb[0].mxu0 %v1870
    %v1943 = vpop.f32.mrb[0].mxu0
    %v1944 = vadd.f32 0.0, %v1943
    %v1945 = vpop.f32.mrb[0].mxu0
    %1946 = vdwg.mxu0
    %v1947 = vmul.f32 %v1939, 0.35355338
    %v1948 = vmul.f32 %v1944, 0.35355338
    %v1949 = vadd.f32 %v1947, %v405
    %v1950 = vadd.f32 %v1948, %v406
    %v1951 = vsel %vm1828, %v1949, -inf
    %1952 = vmax.xlane.f32.xlu0 %v1951
    %v1953 = vpop.xlane.xlu0 %1952
    %v1954 = vsel %vm1828, %v1950, -inf
    %1955 = vmax.xlane.f32.xlu0 %v1954
    %v1956 = vpop.xlane.xlu0 %1955
    %v1957 = vsub.f32 %v1949, %v1953
    %v1958 = vsub.f32 %v1950, %v1956
    %v1959 = vmul.f32 %v1957, 1.442695
    %v1960 = vpow.pop %v1959
    %v1961 = vmul.f32 %v1958, 1.442695
    %v1962 = vpow.pop %v1961
    %v1963 = vsel %vm1828, %v1960, 0.0
    %1964 = vadd.xlane.f32.xlu0 %v1963
    %v1965 = vpop.xlane.xlu0 %1964
    %v1966 = vsel %vm1828, %v1962, 0.0
    %1967 = vadd.xlane.f32.xlu0 %v1966
    %v1968 = vpop.xlane.xlu0 %1967
    %v1969 = vrcp.pop %v1965
    %v1970 = vrcp.pop %v1968
    %v1971 = vmul.f32 %v1960, %v1969
    %v1972 = vmul.f32 %v1962, %v1970
    %1973 = vrot.lane.b32.xlu0 %v1862, 64
    %v1974 = vpop.permute.xlu0 %1973
    %v1976 = vmul.f32 %v1112, %v1974
    %v1977 = vmul.f32 %v1117, %v1974
    %1980 = vrot.lane.b32.xlu0 %v1976, 64
    %v1981 = vpop.permute.xlu0 %1980
    %1982 = vrot.lane.b32.xlu0 %v1977, 64
    %v1983 = vpop.permute.xlu0 %1982
    %v1987 = vsel %vm1828, %v1971, 0
    %v1990 = vsel %vm1828, %v1972, 0
    %1992 = vmatprep.subr.mxu0 0.0
    %1993 = vmatpush1.msra.mxu0 %v1981
    %1994 = vmatprep.subr.mxu0 0.0
    %1995 = vmatpush1.msra.mxu0 %v1983
    %1996 = vmatprep.subr.mxu0 0.0
    %1997 = vmatpush1.msra.mxu0 0.0
    %1998 = vmatprep.subr.mxu0 0.0
    %1999 = vmatpush1.msra.mxu0 0.0
    %2000 = vmatprep.subr.mxu0 0.0
    %2001 = vmatpush1.msra.mxu0 0.0
    %2002 = vmatprep.subr.mxu0 0.0
    %2003 = vmatpush1.msra.mxu0 0.0
    %2004 = vmatprep.subr.mxu0 0.0
    %2005 = vmatpush1.msra.mxu0 0.0
    %2006 = vmatprep.subr.mxu0 0.0
    %2007 = vmatpush1.msra.mxu0 0.0
    %2008 = vmatprep.subr.mxu0 0.0
    %2009 = vmatpush1.msra.mxu0 0.0
    %2010 = vmatprep.subr.mxu0 0.0
    %2011 = vmatpush1.msra.mxu0 0.0
    %2012 = vmatprep.subr.mxu0 0.0
    %2013 = vmatpush1.msra.mxu0 0.0
    %2014 = vmatprep.subr.mxu0 0.0
    %2015 = vmatpush1.msra.mxu0 0.0
    %2016 = vmatprep.subr.mxu0 0.0
    %2017 = vmatpush1.msra.mxu0 0.0
    %2018 = vmatprep.subr.mxu0 0.0
    %2019 = vmatpush1.msra.mxu0 0.0
    %2020 = vmatprep.subr.mxu0 0.0
    %2021 = vmatpush1.msra.mxu0 0.0
    %2022 = vmatprep.subr.mxu0 0.0
    %2023 = vmatpush1.msra.mxu0 0.0
    %2024 = vmatprep.subr.mxu0 0.0
    %2025 = vmatpush1.msra.mxu0 0.0
    %2026 = vmatprep.subr.mxu0 0.0
    %2027 = vmatpush1.msra.mxu0 0.0
    %2028 = vmatprep.subr.mxu0 0.0
    %2029 = vmatpush1.msra.mxu0 0.0
    %2030 = vmatprep.subr.mxu0 0.0
    %2031 = vmatpush1.msra.mxu0 0.0
    %2032 = vmatprep.subr.mxu0 0.0
    %2033 = vmatpush1.msra.mxu0 0.0
    %2034 = vmatprep.subr.mxu0 0.0
    %2035 = vmatpush1.msra.mxu0 0.0
    %2036 = vmatprep.subr.mxu0 0.0
    %2037 = vmatpush1.msra.mxu0 0.0
    %2038 = vmatprep.subr.mxu0 0.0
    %2039 = vmatpush1.msra.mxu0 0.0
    %2040 = vmatprep.subr.mxu0 0.0
    %2041 = vmatpush1.msra.mxu0 0.0
    %2042 = vmatprep.subr.mxu0 0.0
    %2043 = vmatpush1.msra.mxu0 0.0
    %2044 = vmatprep.subr.mxu0 0.0
    %2045 = vmatpush1.msra.mxu0 0.0
    %2046 = vmatprep.subr.mxu0 0.0
    %2047 = vmatpush1.msra.mxu0 0.0
    %2048 = vmatprep.subr.mxu0 0.0
    %2049 = vmatpush1.msra.mxu0 0.0
    %2050 = vmatprep.subr.mxu0 0.0
    %2051 = vmatpush1.msra.mxu0 0.0
    %2052 = vmatprep.subr.mxu0 0.0
    %2053 = vmatpush1.msra.mxu0 0.0
    %2054 = vmatprep.subr.mxu0 0.0
    %2055 = vmatpush1.msra.mxu0 0.0
    %2056 = vmatprep.mubr.f32.mxu0 0.0
    %2057 = vmatmul.mubr.f32.gmra.mrb[0].mxu0 %v1987
    %v2058 = vpop.f32.mrb[0].mxu0
    %v2059 = vadd.f32 0.0, %v2058
    %v2060 = vpop.f32.mrb[0].mxu0
    %2061 = vmatprep.mubr.f32.mxu0 0.0
    %2062 = vmatmul.mubr.f32.gmra.mrb[0].mxu0 %v1990
    %v2063 = vpop.f32.mrb[0].mxu0
    %v2064 = vadd.f32 0.0, %v2063
    %v2065 = vpop.f32.mrb[0].mxu0
    %2066 = vdwg.mxu0
    %2069 = vrot.lane.b32.xlu0 %v1854, 64
    %v2070 = vpop.permute.xlu0 %2069
    %2071 = vrot.lane.b32.xlu0 %v1855, 64
    %v2072 = vpop.permute.xlu0 %2071
    %v2076 = vsel %vm1828, %v1849, 0
    %v2079 = vsel %vm1828, %v1850, 0
    %2081 = vmatprep.subr.mxu0 0.0
    %2082 = vmatpush1.msra.mxu0 %v2070
    %2083 = vmatprep.subr.mxu0 0.0
    %2084 = vmatpush1.msra.mxu0 %v2072
    %2085 = vmatprep.subr.mxu0 0.0
    %2086 = vmatpush1.msra.mxu0 0.0
    %2087 = vmatprep.subr.mxu0 0.0
    %2088 = vmatpush1.msra.mxu0 0.0
    %2089 = vmatprep.subr.mxu0 0.0
    %2090 = vmatpush1.msra.mxu0 0.0
    %2091 = vmatprep.subr.mxu0 0.0
    %2092 = vmatpush1.msra.mxu0 0.0
    %2093 = vmatprep.subr.mxu0 0.0
    %2094 = vmatpush1.msra.mxu0 0.0
    %2095 = vmatprep.subr.mxu0 0.0
    %2096 = vmatpush1.msra.mxu0 0.0
    %2097 = vmatprep.subr.mxu0 0.0
    %2098 = vmatpush1.msra.mxu0 0.0
    %2099 = vmatprep.subr.mxu0 0.0
    %2100 = vmatpush1.msra.mxu0 0.0
    %2101 = vmatprep.subr.mxu0 0.0
    %2102 = vmatpush1.msra.mxu0 0.0
    %2103 = vmatprep.subr.mxu0 0.0
    %2104 = vmatpush1.msra.mxu0 0.0
    %2105 = vmatprep.subr.mxu0 0.0
    %2106 = vmatpush1.msra.mxu0 0.0
    %2107 = vmatprep.subr.mxu0 0.0
    %2108 = vmatpush1.msra.mxu0 0.0
    %2109 = vmatprep.subr.mxu0 0.0
    %2110 = vmatpush1.msra.mxu0 0.0
    %2111 = vmatprep.subr.mxu0 0.0
    %2112 = vmatpush1.msra.mxu0 0.0
    %2113 = vmatprep.subr.mxu0 0.0
    %2114 = vmatpush1.msra.mxu0 0.0
    %2115 = vmatprep.subr.mxu0 0.0
    %2116 = vmatpush1.msra.mxu0 0.0
    %2117 = vmatprep.subr.mxu0 0.0
    %2118 = vmatpush1.msra.mxu0 0.0
    %2119 = vmatprep.subr.mxu0 0.0
    %2120 = vmatpush1.msra.mxu0 0.0
    %2121 = vmatprep.subr.mxu0 0.0
    %2122 = vmatpush1.msra.mxu0 0.0
    %2123 = vmatprep.subr.mxu0 0.0
    %2124 = vmatpush1.msra.mxu0 0.0
    %2125 = vmatprep.subr.mxu0 0.0
    %2126 = vmatpush1.msra.mxu0 0.0
    %2127 = vmatprep.subr.mxu0 0.0
    %2128 = vmatpush1.msra.mxu0 0.0
    %2129 = vmatprep.subr.mxu0 0.0
    %2130 = vmatpush1.msra.mxu0 0.0
    %2131 = vmatprep.subr.mxu0 0.0
    %2132 = vmatpush1.msra.mxu0 0.0
    %2133 = vmatprep.subr.mxu0 0.0
    %2134 = vmatpush1.msra.mxu0 0.0
    %2135 = vmatprep.subr.mxu0 0.0
    %2136 = vmatpush1.msra.mxu0 0.0
    %2137 = vmatprep.subr.mxu0 0.0
    %2138 = vmatpush1.msra.mxu0 0.0
    %2139 = vmatprep.subr.mxu0 0.0
    %2140 = vmatpush1.msra.mxu0 0.0
    %2141 = vmatprep.subr.mxu0 0.0
    %2142 = vmatpush1.msra.mxu0 0.0
    %2143 = vmatprep.subr.mxu0 0.0
    %2144 = vmatpush1.msra.mxu0 0.0
    %2145 = vmatprep.mubr.f32.mxu0 0.0
    %2146 = vmatmul.mubr.f32.gmra.mrb[0].mxu0 %v2076
    %v2147 = vpop.f32.mrb[0].mxu0
    %v2148 = vadd.f32 %v2059, %v2147
    %v2149 = vpop.f32.mrb[0].mxu0
    %2150 = vmatprep.mubr.f32.mxu0 0.0
    %2151 = vmatmul.mubr.f32.gmra.mrb[0].mxu0 %v2079
    %v2152 = vpop.f32.mrb[0].mxu0
    %v2153 = vadd.f32 %v2064, %v2152
    %v2154 = vpop.f32.mrb[0].mxu0
    %2155 = vdwg.mxu0
    %s2156 = scalar_lea.vmem [#allocation6], 2
    %v2157 = vld [vmem:[%s2156] sm:$0x1]
    %v2159 = vlaneseq
    %v2160 = vshrl.u32 %v2159, 7
    %v2161 = vsub.s32 0, %v2160
    %v2162 = vrot.slane %v2157, %v2161
    %v2164 = vmul.f32 %v1615, %v2162
    %v2165 = vmul.f32 %v1616, %v2162
    %v2167 = vsel %vm516, %v2164, 0
    %v2170 = vsel %vm516, %v2165, 0
    %2172 = vmatprep.subr.mxu0 0.0
    %2173 = vmatpush1.xpose.msra.mxu0 %v1745
    %2174 = vmatprep.subr.mxu0 0.0
    %2175 = vmatpush1.xpose.msra.mxu0 %v1747
    %2176 = vmatprep.subr.mxu0 0.0
    %2177 = vmatpush1.xpose.msra.mxu0 0.0
    %2178 = vmatprep.subr.mxu0 0.0
    %2179 = vmatpush1.xpose.msra.mxu0 0.0
    %2180 = vmatprep.subr.mxu0 0.0
    %2181 = vmatpush1.xpose.msra.mxu0 0.0
    %2182 = vmatprep.subr.mxu0 0.0
    %2183 = vmatpush1.xpose.msra.mxu0 0.0
    %2184 = vmatprep.subr.mxu0 0.0
    %2185 = vmatpush1.xpose.msra.mxu0 0.0
    %2186 = vmatprep.subr.mxu0 0.0
    %2187 = vmatpush1.xpose.msra.mxu0 0.0
    %2188 = vmatprep.subr.mxu0 0.0
    %2189 = vmatpush1.xpose.msra.mxu0 0.0
    %2190 = vmatprep.subr.mxu0 0.0
    %2191 = vmatpush1.xpose.msra.mxu0 0.0
    %2192 = vmatprep.subr.mxu0 0.0
    %2193 = vmatpush1.xpose.msra.mxu0 0.0
    %2194 = vmatprep.subr.mxu0 0.0
    %2195 = vmatpush1.xpose.msra.mxu0 0.0
    %2196 = vmatprep.subr.mxu0 0.0
    %2197 = vmatpush1.xpose.msra.mxu0 0.0
    %2198 = vmatprep.subr.mxu0 0.0
    %2199 = vmatpush1.xpose.msra.mxu0 0.0
    %2200 = vmatprep.subr.mxu0 0.0
    %2201 = vmatpush1.xpose.msra.mxu0 0.0
    %2202 = vmatprep.subr.mxu0 0.0
    %2203 = vmatpush1.xpose.msra.mxu0 0.0
    %2204 = vmatprep.subr.mxu0 0.0
    %2205 = vmatpush1.xpose.msra.mxu0 0.0
    %2206 = vmatprep.subr.mxu0 0.0
    %2207 = vmatpush1.xpose.msra.mxu0 0.0
    %2208 = vmatprep.subr.mxu0 0.0
    %2209 = vmatpush1.xpose.msra.mxu0 0.0
    %2210 = vmatprep.subr.mxu0 0.0
    %2211 = vmatpush1.xpose.msra.mxu0 0.0
    %2212 = vmatprep.subr.mxu0 0.0
    %2213 = vmatpush1.xpose.msra.mxu0 0.0
    %2214 = vmatprep.subr.mxu0 0.0
    %2215 = vmatpush1.xpose.msra.mxu0 0.0
    %2216 = vmatprep.subr.mxu0 0.0
    %2217 = vmatpush1.xpose.msra.mxu0 0.0
    %2218 = vmatprep.subr.mxu0 0.0
    %2219 = vmatpush1.xpose.msra.mxu0 0.0
    %2220 = vmatprep.subr.mxu0 0.0
    %2221 = vmatpush1.xpose.msra.mxu0 0.0
    %2222 = vmatprep.subr.mxu0 0.0
    %2223 = vmatpush1.xpose.msra.mxu0 0.0
    %2224 = vmatprep.subr.mxu0 0.0
    %2225 = vmatpush1.xpose.msra.mxu0 0.0
    %2226 = vmatprep.subr.mxu0 0.0
    %2227 = vmatpush1.xpose.msra.mxu0 0.0
    %2228 = vmatprep.subr.mxu0 0.0
    %2229 = vmatpush1.xpose.msra.mxu0 0.0
    %2230 = vmatprep.subr.mxu0 0.0
    %2231 = vmatpush1.xpose.msra.mxu0 0.0
    %2232 = vmatprep.subr.mxu0 0.0
    %2233 = vmatpush1.xpose.msra.mxu0 0.0
    %2234 = vmatprep.subr.mxu0 0.0
    %2235 = vmatpush1.xpose.msra.mxu0 0.0
    %2236 = vmatprep.mubr.f32.mxu0 0.0
    %2237 = vmatmul.mubr.f32.gmra.mrb[0].mxu0 %v2167
    %v2238 = vpop.f32.mrb[0].mxu0
    %v2239 = vadd.f32 0.0, %v2238
    %v2240 = vpop.f32.mrb[0].mxu0
    %2241 = vmatprep.mubr.f32.mxu0 0.0
    %2242 = vmatmul.mubr.f32.gmra.mrb[0].mxu0 %v2170
    %v2243 = vpop.f32.mrb[0].mxu0
    %v2244 = vadd.f32 0.0, %v2243
    %v2245 = vpop.f32.mrb[0].mxu0
    %2246 = vdwg.mxu0
    %v2247 = vmul.f32 %v2239, 0.35355338
    %v2248 = vmul.f32 %v2244, 0.35355338
    %v2249 = vadd.f32 %v2247, %v405
    %v2250 = vadd.f32 %v2248, %v406
    %v2251 = vsel %vm1828, %v2249, -inf
    %2252 = vmax.xlane.f32.xlu0 %v2251
    %v2253 = vpop.xlane.xlu0 %2252
    %v2254 = vsel %vm1828, %v2250, -inf
    %2255 = vmax.xlane.f32.xlu0 %v2254
    %v2256 = vpop.xlane.xlu0 %2255
    %v2257 = vsub.f32 %v2249, %v2253
    %v2258 = vsub.f32 %v2250, %v2256
    %v2259 = vmul.f32 %v2257, 1.442695
    %v2260 = vpow.pop %v2259
    %v2261 = vmul.f32 %v2258, 1.442695
    %v2262 = vpow.pop %v2261
    %v2263 = vsel %vm1828, %v2260, 0.0
    %2264 = vadd.xlane.f32.xlu0 %v2263
    %v2265 = vpop.xlane.xlu0 %2264
    %v2266 = vsel %vm1828, %v2262, 0.0
    %2267 = vadd.xlane.f32.xlu0 %v2266
    %v2268 = vpop.xlane.xlu0 %2267
    %v2269 = vrcp.pop %v2265
    %v2270 = vrcp.pop %v2268
    %v2271 = vmul.f32 %v2260, %v2269
    %v2272 = vmul.f32 %v2262, %v2270
    %2273 = vrot.lane.b32.xlu0 %v2162, 64
    %v2274 = vpop.permute.xlu0 %2273
    %v2276 = vmul.f32 %v1112, %v2274
    %v2277 = vmul.f32 %v1117, %v2274
    %2280 = vrot.lane.b32.xlu0 %v2276, 64
    %v2281 = vpop.permute.xlu0 %2280
    %2282 = vrot.lane.b32.xlu0 %v2277, 64
    %v2283 = vpop.permute.xlu0 %2282
    %v2287 = vsel %vm1828, %v2271, 0
    %v2290 = vsel %vm1828, %v2272, 0
    %2292 = vmatprep.subr.mxu0 0.0
    %2293 = vmatpush1.msra.mxu0 %v2281
    %2294 = vmatprep.subr.mxu0 0.0
    %2295 = vmatpush1.msra.mxu0 %v2283
    %2296 = vmatprep.subr.mxu0 0.0
    %2297 = vmatpush1.msra.mxu0 0.0
    %2298 = vmatprep.subr.mxu0 0.0
    %2299 = vmatpush1.msra.mxu0 0.0
    %2300 = vmatprep.subr.mxu0 0.0
    %2301 = vmatpush1.msra.mxu0 0.0
    %2302 = vmatprep.subr.mxu0 0.0
    %2303 = vmatpush1.msra.mxu0 0.0
    %2304 = vmatprep.subr.mxu0 0.0
    %2305 = vmatpush1.msra.mxu0 0.0
    %2306 = vmatprep.subr.mxu0 0.0
    %2307 = vmatpush1.msra.mxu0 0.0
    %2308 = vmatprep.subr.mxu0 0.0
    %2309 = vmatpush1.msra.mxu0 0.0
    %2310 = vmatprep.subr.mxu0 0.0
    %2311 = vmatpush1.msra.mxu0 0.0
    %2312 = vmatprep.subr.mxu0 0.0
    %2313 = vmatpush1.msra.mxu0 0.0
    %2314 = vmatprep.subr.mxu0 0.0
    %2315 = vmatpush1.msra.mxu0 0.0
    %2316 = vmatprep.subr.mxu0 0.0
    %2317 = vmatpush1.msra.mxu0 0.0
    %2318 = vmatprep.subr.mxu0 0.0
    %2319 = vmatpush1.msra.mxu0 0.0
    %2320 = vmatprep.subr.mxu0 0.0
    %2321 = vmatpush1.msra.mxu0 0.0
    %2322 = vmatprep.subr.mxu0 0.0
    %2323 = vmatpush1.msra.mxu0 0.0
    %2324 = vmatprep.subr.mxu0 0.0
    %2325 = vmatpush1.msra.mxu0 0.0
    %2326 = vmatprep.subr.mxu0 0.0
    %2327 = vmatpush1.msra.mxu0 0.0
    %2328 = vmatprep.subr.mxu0 0.0
    %2329 = vmatpush1.msra.mxu0 0.0
    %2330 = vmatprep.subr.mxu0 0.0
    %2331 = vmatpush1.msra.mxu0 0.0
    %2332 = vmatprep.subr.mxu0 0.0
    %2333 = vmatpush1.msra.mxu0 0.0
    %2334 = vmatprep.subr.mxu0 0.0
    %2335 = vmatpush1.msra.mxu0 0.0
    %2336 = vmatprep.subr.mxu0 0.0
    %2337 = vmatpush1.msra.mxu0 0.0
    %2338 = vmatprep.subr.mxu0 0.0
    %2339 = vmatpush1.msra.mxu0 0.0
    %2340 = vmatprep.subr.mxu0 0.0
    %2341 = vmatpush1.msra.mxu0 0.0
    %2342 = vmatprep.subr.mxu0 0.0
    %2343 = vmatpush1.msra.mxu0 0.0
    %2344 = vmatprep.subr.mxu0 0.0
    %2345 = vmatpush1.msra.mxu0 0.0
    %2346 = vmatprep.subr.mxu0 0.0
    %2347 = vmatpush1.msra.mxu0 0.0
    %2348 = vmatprep.subr.mxu0 0.0
    %2349 = vmatpush1.msra.mxu0 0.0
    %2350 = vmatprep.subr.mxu0 0.0
    %2351 = vmatpush1.msra.mxu0 0.0
    %2352 = vmatprep.subr.mxu0 0.0
    %2353 = vmatpush1.msra.mxu0 0.0
    %2354 = vmatprep.subr.mxu0 0.0
    %2355 = vmatpush1.msra.mxu0 0.0
    %2356 = vmatprep.mubr.f32.mxu0 0.0
    %2357 = vmatmul.mubr.f32.gmra.mrb[0].mxu0 %v2287
    %v2358 = vpop.f32.mrb[0].mxu0
    %v2359 = vadd.f32 0.0, %v2358
    %v2360 = vpop.f32.mrb[0].mxu0
    %2361 = vmatprep.mubr.f32.mxu0 0.0
    %2362 = vmatmul.mubr.f32.gmra.mrb[0].mxu0 %v2290
    %v2363 = vpop.f32.mrb[0].mxu0
    %v2364 = vadd.f32 0.0, %v2363
    %v2365 = vpop.f32.mrb[0].mxu0
    %2366 = vdwg.mxu0
    %v2367 = vadd.f32 %v2148, %v2359
    %v2368 = vadd.f32 %v2153, %v2364
    %s2369 = scalar_lea.vmem [#allocation6], 3
    %v2370 = vld [vmem:[%s2369] sm:$0x1]
    %v2372 = vlaneseq
    %v2373 = vshrl.u32 %v2372, 7
    %v2374 = vsub.s32 0, %v2373
    %v2375 = vrot.slane %v2370, %v2374
    %v2377 = vmul.f32 %v1615, %v2375
    %v2378 = vmul.f32 %v1616, %v2375
    %v2380 = vsel %vm516, %v2377, 0
    %v2383 = vsel %vm516, %v2378, 0
    %2385 = vmatprep.subr.mxu0 0.0
    %2386 = vmatpush1.xpose.msra.mxu0 %v1745
    %2387 = vmatprep.subr.mxu0 0.0
    %2388 = vmatpush1.xpose.msra.mxu0 %v1747
    %2389 = vmatprep.subr.mxu0 0.0
    %2390 = vmatpush1.xpose.msra.mxu0 0.0
    %2391 = vmatprep.subr.mxu0 0.0
    %2392 = vmatpush1.xpose.msra.mxu0 0.0
    %2393 = vmatprep.subr.mxu0 0.0
    %2394 = vmatpush1.xpose.msra.mxu0 0.0
    %2395 = vmatprep.subr.mxu0 0.0
    %2396 = vmatpush1.xpose.msra.mxu0 0.0
    %2397 = vmatprep.subr.mxu0 0.0
    %2398 = vmatpush1.xpose.msra.mxu0 0.0
    %2399 = vmatprep.subr.mxu0 0.0
    %2400 = vmatpush1.xpose.msra.mxu0 0.0
    %2401 = vmatprep.subr.mxu0 0.0
    %2402 = vmatpush1.xpose.msra.mxu0 0.0
    %2403 = vmatprep.subr.mxu0 0.0
    %2404 = vmatpush1.xpose.msra.mxu0 0.0
    %2405 = vmatprep.subr.mxu0 0.0
    %2406 = vmatpush1.xpose.msra.mxu0 0.0
    %2407 = vmatprep.subr.mxu0 0.0
    %2408 = vmatpush1.xpose.msra.mxu0 0.0
    %2409 = vmatprep.subr.mxu0 0.0
    %2410 = vmatpush1.xpose.msra.mxu0 0.0
    %2411 = vmatprep.subr.mxu0 0.0
    %2412 = vmatpush1.xpose.msra.mxu0 0.0
    %2413 = vmatprep.subr.mxu0 0.0
    %2414 = vmatpush1.xpose.msra.mxu0 0.0
    %2415 = vmatprep.subr.mxu0 0.0
    %2416 = vmatpush1.xpose.msra.mxu0 0.0
    %2417 = vmatprep.subr.mxu0 0.0
    %2418 = vmatpush1.xpose.msra.mxu0 0.0
    %2419 = vmatprep.subr.mxu0 0.0
    %2420 = vmatpush1.xpose.msra.mxu0 0.0
    %2421 = vmatprep.subr.mxu0 0.0
    %2422 = vmatpush1.xpose.msra.mxu0 0.0
    %2423 = vmatprep.subr.mxu0 0.0
    %2424 = vmatpush1.xpose.msra.mxu0 0.0
    %2425 = vmatprep.subr.mxu0 0.0
    %2426 = vmatpush1.xpose.msra.mxu0 0.0
    %2427 = vmatprep.subr.mxu0 0.0
    %2428 = vmatpush1.xpose.msra.mxu0 0.0
    %2429 = vmatprep.subr.mxu0 0.0
    %2430 = vmatpush1.xpose.msra.mxu0 0.0
    %2431 = vmatprep.subr.mxu0 0.0
    %2432 = vmatpush1.xpose.msra.mxu0 0.0
    %2433 = vmatprep.subr.mxu0 0.0
    %2434 = vmatpush1.xpose.msra.mxu0 0.0
    %2435 = vmatprep.subr.mxu0 0.0
    %2436 = vmatpush1.xpose.msra.mxu0 0.0
    %2437 = vmatprep.subr.mxu0 0.0
    %2438 = vmatpush1.xpose.msra.mxu0 0.0
    %2439 = vmatprep.subr.mxu0 0.0
    %2440 = vmatpush1.xpose.msra.mxu0 0.0
    %2441 = vmatprep.subr.mxu0 0.0
    %2442 = vmatpush1.xpose.msra.mxu0 0.0
    %2443 = vmatprep.subr.mxu0 0.0
    %2444 = vmatpush1.xpose.msra.mxu0 0.0
    %2445 = vmatprep.subr.mxu0 0.0
    %2446 = vmatpush1.xpose.msra.mxu0 0.0
    %2447 = vmatprep.subr.mxu0 0.0
    %2448 = vmatpush1.xpose.msra.mxu0 0.0
    %2449 = vmatprep.mubr.f32.mxu0 0.0
    %2450 = vmatmul.mubr.f32.gmra.mrb[0].mxu0 %v2380
    %v2451 = vpop.f32.mrb[0].mxu0
    %v2452 = vadd.f32 0.0, %v2451
    %v2453 = vpop.f32.mrb[0].mxu0
    %2454 = vmatprep.mubr.f32.mxu0 0.0
    %2455 = vmatmul.mubr.f32.gmra.mrb[0].mxu0 %v2383
    %v2456 = vpop.f32.mrb[0].mxu0
    %v2457 = vadd.f32 0.0, %v2456
    %v2458 = vpop.f32.mrb[0].mxu0
    %2459 = vdwg.mxu0
    %v2460 = vmul.f32 %v2452, 0.35355338
    %v2461 = vmul.f32 %v2457, 0.35355338
    %v2462 = vadd.f32 %v2460, %v405
    %v2463 = vadd.f32 %v2461, %v406
    %v2464 = vsel %vm1828, %v2462, -inf
    %2465 = vmax.xlane.f32.xlu0 %v2464
    %v2466 = vpop.xlane.xlu0 %2465
    %v2467 = vsel %vm1828, %v2463, -inf
    %2468 = vmax.xlane.f32.xlu0 %v2467
    %v2469 = vpop.xlane.xlu0 %2468
    %v2470 = vsub.f32 %v2462, %v2466
    %v2471 = vsub.f32 %v2463, %v2469
    %v2472 = vmul.f32 %v2470, 1.442695
    %v2473 = vpow.pop %v2472
    %v2474 = vmul.f32 %v2471, 1.442695
    %v2475 = vpow.pop %v2474
    %v2476 = vsel %vm1828, %v2473, 0.0
    %2477 = vadd.xlane.f32.xlu0 %v2476
    %v2478 = vpop.xlane.xlu0 %2477
    %v2479 = vsel %vm1828, %v2475, 0.0
    %2480 = vadd.xlane.f32.xlu0 %v2479
    %v2481 = vpop.xlane.xlu0 %2480
    %v2482 = vrcp.pop %v2478
    %v2483 = vrcp.pop %v2481
    %v2484 = vmul.f32 %v2473, %v2482
    %v2485 = vmul.f32 %v2475, %v2483
    %2486 = vrot.lane.b32.xlu0 %v2375, 64
    %v2487 = vpop.permute.xlu0 %2486
    %v2489 = vmul.f32 %v1112, %v2487
    %v2490 = vmul.f32 %v1117, %v2487
    %2493 = vrot.lane.b32.xlu0 %v2489, 64
    %v2494 = vpop.permute.xlu0 %2493
    %2495 = vrot.lane.b32.xlu0 %v2490, 64
    %v2496 = vpop.permute.xlu0 %2495
    %v2500 = vsel %vm1828, %v2484, 0
    %v2503 = vsel %vm1828, %v2485, 0
    %2505 = vmatprep.subr.mxu0 0.0
    %2506 = vmatpush1.msra.mxu0 %v2494
    %2507 = vmatprep.subr.mxu0 0.0
    %2508 = vmatpush1.msra.mxu0 %v2496
    %2509 = vmatprep.subr.mxu0 0.0
    %2510 = vmatpush1.msra.mxu0 0.0
    %2511 = vmatprep.subr.mxu0 0.0
    %2512 = vmatpush1.msra.mxu0 0.0
    %2513 = vmatprep.subr.mxu0 0.0
    %2514 = vmatpush1.msra.mxu0 0.0
    %2515 = vmatprep.subr.mxu0 0.0
    %2516 = vmatpush1.msra.mxu0 0.0
    %2517 = vmatprep.subr.mxu0 0.0
    %2518 = vmatpush1.msra.mxu0 0.0
    %2519 = vmatprep.subr.mxu0 0.0
    %2520 = vmatpush1.msra.mxu0 0.0
    %2521 = vmatprep.subr.mxu0 0.0
    %2522 = vmatpush1.msra.mxu0 0.0
    %2523 = vmatprep.subr.mxu0 0.0
    %2524 = vmatpush1.msra.mxu0 0.0
    %2525 = vmatprep.subr.mxu0 0.0
    %2526 = vmatpush1.msra.mxu0 0.0
    %2527 = vmatprep.subr.mxu0 0.0
    %2528 = vmatpush1.msra.mxu0 0.0
    %2529 = vmatprep.subr.mxu0 0.0
    %2530 = vmatpush1.msra.mxu0 0.0
    %2531 = vmatprep.subr.mxu0 0.0
    %2532 = vmatpush1.msra.mxu0 0.0
    %2533 = vmatprep.subr.mxu0 0.0
    %2534 = vmatpush1.msra.mxu0 0.0
    %2535 = vmatprep.subr.mxu0 0.0
    %2536 = vmatpush1.msra.mxu0 0.0
    %2537 = vmatprep.subr.mxu0 0.0
    %2538 = vmatpush1.msra.mxu0 0.0
    %2539 = vmatprep.subr.mxu0 0.0
    %2540 = vmatpush1.msra.mxu0 0.0
    %2541 = vmatprep.subr.mxu0 0.0
    %2542 = vmatpush1.msra.mxu0 0.0
    %2543 = vmatprep.subr.mxu0 0.0
    %2544 = vmatpush1.msra.mxu0 0.0
    %2545 = vmatprep.subr.mxu0 0.0
    %2546 = vmatpush1.msra.mxu0 0.0
    %2547 = vmatprep.subr.mxu0 0.0
    %2548 = vmatpush1.msra.mxu0 0.0
    %2549 = vmatprep.subr.mxu0 0.0
    %2550 = vmatpush1.msra.mxu0 0.0
    %2551 = vmatprep.subr.mxu0 0.0
    %2552 = vmatpush1.msra.mxu0 0.0
    %2553 = vmatprep.subr.mxu0 0.0
    %2554 = vmatpush1.msra.mxu0 0.0
    %2555 = vmatprep.subr.mxu0 0.0
    %2556 = vmatpush1.msra.mxu0 0.0
    %2557 = vmatprep.subr.mxu0 0.0
    %2558 = vmatpush1.msra.mxu0 0.0
    %2559 = vmatprep.subr.mxu0 0.0
    %2560 = vmatpush1.msra.mxu0 0.0
    %2561 = vmatprep.subr.mxu0 0.0
    %2562 = vmatpush1.msra.mxu0 0.0
    %2563 = vmatprep.subr.mxu0 0.0
    %2564 = vmatpush1.msra.mxu0 0.0
    %2565 = vmatprep.subr.mxu0 0.0
    %2566 = vmatpush1.msra.mxu0 0.0
    %2567 = vmatprep.subr.mxu0 0.0
    %2568 = vmatpush1.msra.mxu0 0.0
    %2569 = vmatprep.mubr.f32.mxu0 0.0
    %2570 = vmatmul.mubr.f32.gmra.mrb[0].mxu0 %v2500
    %v2571 = vpop.f32.mrb[0].mxu0
    %v2572 = vadd.f32 0.0, %v2571
    %v2573 = vpop.f32.mrb[0].mxu0
    %2574 = vmatprep.mubr.f32.mxu0 0.0
    %2575 = vmatmul.mubr.f32.gmra.mrb[0].mxu0 %v2503
    %v2576 = vpop.f32.mrb[0].mxu0
    %v2577 = vadd.f32 0.0, %v2576
    %v2578 = vpop.f32.mrb[0].mxu0
    %2579 = vdwg.mxu0
    %v2580 = vadd.f32 %v2367, %v2572
    %v2581 = vadd.f32 %v2368, %v2577
    %v2582 = vld [vmem:[%s53] sm:$0xff]
    %v2583 = vld [vmem:[%s53 + $0x8] sm:$0xff]
    %v2584 = vld [vmem:[%s53 + $0x10] sm:$0xff]
    %v2585 = vld [vmem:[%s53 + $0x18] sm:$0xff]
    %v2586 = vld [vmem:[#allocation22] sm:$0x1]
    %v2588 = vlaneseq
    %v2589 = vshrl.u32 %v2588, 7
    %v2590 = vsub.s32 0, %v2589
    %v2591 = vrot.slane %v2586, %v2590
    %v2594 = vsel %vm516, %v2580, 0
    %v2597 = vsel %vm516, %v2581, 0
    %2599 = vmatprep.subr.mxu0 0.0
    %2600 = vmatpush1.msra.mxu0 %v2582
    %2601 = vmatprep.subr.mxu0 0.0
    %2602 = vmatpush1.msra.mxu0 %v2583
    %2603 = vmatprep.subr.mxu0 0.0
    %2604 = vmatpush1.msra.mxu0 %v2584
    %2605 = vmatprep.subr.mxu0 0.0
    %2606 = vmatpush1.msra.mxu0 %v2585
    %2607 = vmatprep.subr.mxu0 0.0
    %2608 = vmatpush1.msra.mxu0 0.0
    %2609 = vmatprep.subr.mxu0 0.0
    %2610 = vmatpush1.msra.mxu0 0.0
    %2611 = vmatprep.subr.mxu0 0.0
    %2612 = vmatpush1.msra.mxu0 0.0
    %2613 = vmatprep.subr.mxu0 0.0
    %2614 = vmatpush1.msra.mxu0 0.0
    %2615 = vmatprep.subr.mxu0 0.0
    %2616 = vmatpush1.msra.mxu0 0.0
    %2617 = vmatprep.subr.mxu0 0.0
    %2618 = vmatpush1.msra.mxu0 0.0
    %2619 = vmatprep.subr.mxu0 0.0
    %2620 = vmatpush1.msra.mxu0 0.0
    %2621 = vmatprep.subr.mxu0 0.0
    %2622 = vmatpush1.msra.mxu0 0.0
    %2623 = vmatprep.subr.mxu0 0.0
    %2624 = vmatpush1.msra.mxu0 0.0
    %2625 = vmatprep.subr.mxu0 0.0
    %2626 = vmatpush1.msra.mxu0 0.0
    %2627 = vmatprep.subr.mxu0 0.0
    %2628 = vmatpush1.msra.mxu0 0.0
    %2629 = vmatprep.subr.mxu0 0.0
    %2630 = vmatpush1.msra.mxu0 0.0
    %2631 = vmatprep.subr.mxu0 0.0
    %2632 = vmatpush1.msra.mxu0 0.0
    %2633 = vmatprep.subr.mxu0 0.0
    %2634 = vmatpush1.msra.mxu0 0.0
    %2635 = vmatprep.subr.mxu0 0.0
    %2636 = vmatpush1.msra.mxu0 0.0
    %2637 = vmatprep.subr.mxu0 0.0
    %2638 = vmatpush1.msra.mxu0 0.0
    %2639 = vmatprep.subr.mxu0 0.0
    %2640 = vmatpush1.msra.mxu0 0.0
    %2641 = vmatprep.subr.mxu0 0.0
    %2642 = vmatpush1.msra.mxu0 0.0
    %2643 = vmatprep.subr.mxu0 0.0
    %2644 = vmatpush1.msra.mxu0 0.0
    %2645 = vmatprep.subr.mxu0 0.0
    %2646 = vmatpush1.msra.mxu0 0.0
    %2647 = vmatprep.subr.mxu0 0.0
    %2648 = vmatpush1.msra.mxu0 0.0
    %2649 = vmatprep.subr.mxu0 0.0
    %2650 = vmatpush1.msra.mxu0 0.0
    %2651 = vmatprep.subr.mxu0 0.0
    %2652 = vmatpush1.msra.mxu0 0.0
    %2653 = vmatprep.subr.mxu0 0.0
    %2654 = vmatpush1.msra.mxu0 0.0
    %2655 = vmatprep.subr.mxu0 0.0
    %2656 = vmatpush1.msra.mxu0 0.0
    %2657 = vmatprep.subr.mxu0 0.0
    %2658 = vmatpush1.msra.mxu0 0.0
    %2659 = vmatprep.subr.mxu0 0.0
    %2660 = vmatpush1.msra.mxu0 0.0
    %2661 = vmatprep.subr.mxu0 0.0
    %2662 = vmatpush1.msra.mxu0 0.0
    %2663 = vmatprep.mubr.f32.mxu0 0.0
    %2664 = vmatmul.mubr.f32.gmra.mrb[0].mxu0 %v2594
    %v2665 = vpop.f32.mrb[0].mxu0
    %v2666 = vadd.f32 %v2591, %v2665
    %v2667 = vpop.f32.mrb[0].mxu0
    %2668 = vmatprep.mubr.f32.mxu0 0.0
    %2669 = vmatmul.mubr.f32.gmra.mrb[0].mxu0 %v2597
    %v2670 = vpop.f32.mrb[0].mxu0
    %v2671 = vadd.f32 %v2591, %v2670
    %v2672 = vpop.f32.mrb[0].mxu0
    %2673 = vdwg.mxu0
    %v2674 = vmul.f32 %v977, %v2666
    %v2675 = vmul.f32 %v983, %v2671
    %v2676 = vadd.f32 %v496, %v2674
    %v2677 = vadd.f32 %v501, %v2675
    %v2678 = vsel %vm516, %v2676, 0.0
    %2679 = vadd.xlane.f32.xlu0 %v2678
    %v2680 = vpop.xlane.xlu0 %2679
    %v2681 = vsel %vm516, %v2677, 0.0
    %2682 = vadd.xlane.f32.xlu0 %v2681
    %v2683 = vpop.xlane.xlu0 %2682
    %v2684 = vmul.f32 %v2680, %v993
    %v2685 = vmul.f32 %v2683, %v993
    %v2686 = vsub.f32 %v2676, %v2684
    %v2687 = vsub.f32 %v2677, %v2685
    %v2688 = vmul.f32 %v2686, %v2686
    %v2689 = vmul.f32 %v2687, %v2687
    %v2690 = vsel %vm516, %v2688, 0.0
    %2691 = vadd.xlane.f32.xlu0 %v2690
    %v2692 = vpop.xlane.xlu0 %2691
    %v2693 = vsel %vm516, %v2689, 0.0
    %2694 = vadd.xlane.f32.xlu0 %v2693
    %v2695 = vpop.xlane.xlu0 %2694
    %v2696 = vmul.f32 %v2692, %v993
    %v2697 = vmul.f32 %v2695, %v993
    %v2698 = vadd.f32 %v2696, 1e-06
    %v2699 = vadd.f32 %v2697, 1e-06
    %v2700 = vrsqrt.pop %v2698
    %v2701 = vrsqrt.pop %v2699
    %v2702 = vmul.f32 %v2686, %v2700
    %v2703 = vmul.f32 %v2687, %v2701
    %2704 = vrot.lane.b32.xlu0 %v1014, 32
    %v2705 = vpop.permute.xlu0 %2704
    %2706 = vrot.lane.b32.xlu0 %v1015, 32
    %v2707 = vpop.permute.xlu0 %2706
    %v2710 = vmul.f32 %v2702, %v2705
    %v2711 = vmul.f32 %v2703, %v2707
    %2714 = vrot.lane.b32.xlu0 %v979, 96
    %v2715 = vpop.permute.xlu0 %2714
    %2716 = vrot.lane.b32.xlu0 %v985, 96
    %v2717 = vpop.permute.xlu0 %2716
    %v2720 = vadd.f32 %v2710, %v2715
    %v2721 = vadd.f32 %v2711, %v2717
    %v2722 = vld [vmem:[%s57] sm:$0xff]
    %v2723 = vld [vmem:[%s57 + $0x8] sm:$0xff]
    %v2724 = vld [vmem:[%s57 + $0x10] sm:$0xff]
    %v2725 = vld [vmem:[%s57 + $0x18] sm:$0xff]
    %v2726 = vld [vmem:[#allocation24] sm:$0x1]
    %v2728 = vlaneseq
    %v2729 = vshrl.u32 %v2728, 7
    %v2730 = vsub.s32 0, %v2729
    %v2731 = vrot.slane %v2726, %v2730
    %v2734 = vsel %vm516, %v2720, 0
    %v2737 = vsel %vm516, %v2721, 0
    %2739 = vmatprep.subr.mxu0 0.0
    %2740 = vmatpush1.msra.mxu0 %v2722
    %2741 = vmatprep.subr.mxu0 0.0
    %2742 = vmatpush1.msra.mxu0 %v2723
    %2743 = vmatprep.subr.mxu0 0.0
    %2744 = vmatpush1.msra.mxu0 %v2724
    %2745 = vmatprep.subr.mxu0 0.0
    %2746 = vmatpush1.msra.mxu0 %v2725
    %2747 = vmatprep.subr.mxu0 0.0
    %2748 = vmatpush1.msra.mxu0 0.0
    %2749 = vmatprep.subr.mxu0 0.0
    %2750 = vmatpush1.msra.mxu0 0.0
    %2751 = vmatprep.subr.mxu0 0.0
    %2752 = vmatpush1.msra.mxu0 0.0
    %2753 = vmatprep.subr.mxu0 0.0
    %2754 = vmatpush1.msra.mxu0 0.0
    %2755 = vmatprep.subr.mxu0 0.0
    %2756 = vmatpush1.msra.mxu0 0.0
    %2757 = vmatprep.subr.mxu0 0.0
    %2758 = vmatpush1.msra.mxu0 0.0
    %2759 = vmatprep.subr.mxu0 0.0
    %2760 = vmatpush1.msra.mxu0 0.0
    %2761 = vmatprep.subr.mxu0 0.0
    %2762 = vmatpush1.msra.mxu0 0.0
    %2763 = vmatprep.subr.mxu0 0.0
    %2764 = vmatpush1.msra.mxu0 0.0
    %2765 = vmatprep.subr.mxu0 0.0
    %2766 = vmatpush1.msra.mxu0 0.0
    %2767 = vmatprep.subr.mxu0 0.0
    %2768 = vmatpush1.msra.mxu0 0.0
    %2769 = vmatprep.subr.mxu0 0.0
    %2770 = vmatpush1.msra.mxu0 0.0
    %2771 = vmatprep.subr.mxu0 0.0
    %2772 = vmatpush1.msra.mxu0 0.0
    %2773 = vmatprep.subr.mxu0 0.0
    %2774 = vmatpush1.msra.mxu0 0.0
    %2775 = vmatprep.subr.mxu0 0.0
    %2776 = vmatpush1.msra.mxu0 0.0
    %2777 = vmatprep.subr.mxu0 0.0
    %2778 = vmatpush1.msra.mxu0 0.0
    %2779 = vmatprep.subr.mxu0 0.0
    %2780 = vmatpush1.msra.mxu0 0.0
    %2781 = vmatprep.subr.mxu0 0.0
    %2782 = vmatpush1.msra.mxu0 0.0
    %2783 = vmatprep.subr.mxu0 0.0
    %2784 = vmatpush1.msra.mxu0 0.0
    %2785 = vmatprep.subr.mxu0 0.0
    %2786 = vmatpush1.msra.mxu0 0.0
    %2787 = vmatprep.subr.mxu0 0.0
    %2788 = vmatpush1.msra.mxu0 0.0
    %2789 = vmatprep.subr.mxu0 0.0
    %2790 = vmatpush1.msra.mxu0 0.0
    %2791 = vmatprep.subr.mxu0 0.0
    %2792 = vmatpush1.msra.mxu0 0.0
    %2793 = vmatprep.subr.mxu0 0.0
    %2794 = vmatpush1.msra.mxu0 0.0
    %2795 = vmatprep.subr.mxu0 0.0
    %2796 = vmatpush1.msra.mxu0 0.0
    %2797 = vmatprep.subr.mxu0 0.0
    %2798 = vmatpush1.msra.mxu0 0.0
    %2799 = vmatprep.subr.mxu0 0.0
    %2800 = vmatpush1.msra.mxu0 0.0
    %2801 = vmatprep.subr.mxu0 0.0
    %2802 = vmatpush1.msra.mxu0 0.0
    %2803 = vmatprep.mubr.f32.mxu0 0.0
    %2804 = vmatmul.mubr.f32.gmra.mrb[0].mxu0 %v2734
    %v2805 = vpop.f32.mrb[0].mxu0
    %v2806 = vadd.f32 %v2731, %v2805
    %v2807 = vpop.f32.mrb[0].mxu0
    %2808 = vmatprep.mubr.f32.mxu0 0.0
    %2809 = vmatmul.mubr.f32.gmra.mrb[0].mxu0 %v2737
    %v2810 = vpop.f32.mrb[0].mxu0
    %v2811 = vadd.f32 %v2731, %v2810
    %v2812 = vpop.f32.mrb[0].mxu0
    %2813 = vdwg.mxu0
    %v2814 = vmul.f32 %v2806, 0.5
    %v2815 = vmul.f32 %v2811, 0.5
    %v2816 = vmul.f32 %v2806, 0.044715
    %v2817 = vmul.f32 %v2811, 0.044715
    %v2818 = vmul.f32 %v2816, %v2806
    %v2819 = vmul.f32 %v2817, %v2811
    %v2820 = vmul.f32 %v2818, %v2806
    %v2821 = vmul.f32 %v2819, %v2811
    %v2822 = vadd.f32 %v2806, %v2820
    %v2823 = vadd.f32 %v2811, %v2821
    %v2824 = vmul.f32 %v2822, 0.7978846
    %v2825 = vmul.f32 %v2823, 0.7978846
    %v2826 = vtanh.pop %v2824
    %v2827 = vtanh.pop %v2825
    %v2828 = vadd.f32 %v2826, 1.0
    %v2829 = vadd.f32 %v2827, 1.0
    %v2830 = vmul.f32 %v2814, %v2828
    %v2831 = vmul.f32 %v2815, %v2829
    %v2832 = vld [vmem:[%s61] sm:$0xff]
    %v2833 = vld [vmem:[%s61 + $0x8] sm:$0xff]
    %v2834 = vld [vmem:[%s61 + $0x10] sm:$0xff]
    %v2835 = vld [vmem:[%s61 + $0x18] sm:$0xff]
    %v2836 = vld [vmem:[%s61 + $0x20] sm:$0xff]
    %v2837 = vld [vmem:[%s61 + $0x28] sm:$0xff]
    %v2838 = vld [vmem:[%s61 + $0x30] sm:$0xff]
    %v2839 = vld [vmem:[%s61 + $0x38] sm:$0xff]
    %v2840 = vld [vmem:[%s61 + $0x40] sm:$0xff]
    %v2841 = vld [vmem:[%s61 + $0x48] sm:$0xff]
    %v2842 = vld [vmem:[%s61 + $0x50] sm:$0xff]
    %v2843 = vld [vmem:[%s61 + $0x58] sm:$0xff]
    %v2844 = vld [vmem:[%s61 + $0x60] sm:$0xff]
    %v2845 = vld [vmem:[%s61 + $0x68] sm:$0xff]
    %v2846 = vld [vmem:[%s61 + $0x70] sm:$0xff]
    %v2847 = vld [vmem:[%s61 + $0x78] sm:$0xff]
    %v2848 = vld [vmem:[#allocation25] sm:$0x1]
    %v2850 = vlaneseq
    %v2851 = vshrl.u32 %v2850, 7
    %v2852 = vsub.s32 0, %v2851
    %v2853 = vrot.slane %v2848, %v2852
    %2855 = vmatprep.subr.mxu0 0.0
    %2856 = vmatpush1.msra.mxu0 %v2832
    %2857 = vmatprep.subr.mxu0 0.0
    %2858 = vmatpush1.msra.mxu0 %v2833
    %2859 = vmatprep.subr.mxu0 0.0
    %2860 = vmatpush1.msra.mxu0 %v2834
    %2861 = vmatprep.subr.mxu0 0.0
    %2862 = vmatpush1.msra.mxu0 %v2835
    %2863 = vmatprep.subr.mxu0 0.0
    %2864 = vmatpush1.msra.mxu0 %v2836
    %2865 = vmatprep.subr.mxu0 0.0
    %2866 = vmatpush1.msra.mxu0 %v2837
    %2867 = vmatprep.subr.mxu0 0.0
    %2868 = vmatpush1.msra.mxu0 %v2838
    %2869 = vmatprep.subr.mxu0 0.0
    %2870 = vmatpush1.msra.mxu0 %v2839
    %2871 = vmatprep.subr.mxu0 0.0
    %2872 = vmatpush1.msra.mxu0 %v2840
    %2873 = vmatprep.subr.mxu0 0.0
    %2874 = vmatpush1.msra.mxu0 %v2841
    %2875 = vmatprep.subr.mxu0 0.0
    %2876 = vmatpush1.msra.mxu0 %v2842
    %2877 = vmatprep.subr.mxu0 0.0
    %2878 = vmatpush1.msra.mxu0 %v2843
    %2879 = vmatprep.subr.mxu0 0.0
    %2880 = vmatpush1.msra.mxu0 %v2844
    %2881 = vmatprep.subr.mxu0 0.0
    %2882 = vmatpush1.msra.mxu0 %v2845
    %2883 = vmatprep.subr.mxu0 0.0
    %2884 = vmatpush1.msra.mxu0 %v2846
    %2885 = vmatprep.subr.mxu0 0.0
    %2886 = vmatpush1.msra.mxu0 %v2847
    %2887 = vmatprep.subr.mxu0 0.0
    %2888 = vmatpush1.msra.mxu0 0.0
    %2889 = vmatprep.subr.mxu0 0.0
    %2890 = vmatpush1.msra.mxu0 0.0
    %2891 = vmatprep.subr.mxu0 0.0
    %2892 = vmatpush1.msra.mxu0 0.0
    %2893 = vmatprep.subr.mxu0 0.0
    %2894 = vmatpush1.msra.mxu0 0.0
    %2895 = vmatprep.subr.mxu0 0.0
    %2896 = vmatpush1.msra.mxu0 0.0
    %2897 = vmatprep.subr.mxu0 0.0
    %2898 = vmatpush1.msra.mxu0 0.0
    %2899 = vmatprep.subr.mxu0 0.0
    %2900 = vmatpush1.msra.mxu0 0.0
    %2901 = vmatprep.subr.mxu0 0.0
    %2902 = vmatpush1.msra.mxu0 0.0
    %2903 = vmatprep.subr.mxu0 0.0
    %2904 = vmatpush1.msra.mxu0 0.0
    %2905 = vmatprep.subr.mxu0 0.0
    %2906 = vmatpush1.msra.mxu0 0.0
    %2907 = vmatprep.subr.mxu0 0.0
    %2908 = vmatpush1.msra.mxu0 0.0
    %2909 = vmatprep.subr.mxu0 0.0
    %2910 = vmatpush1.msra.mxu0 0.0
    %2911 = vmatprep.subr.mxu0 0.0
    %2912 = vmatpush1.msra.mxu0 0.0
    %2913 = vmatprep.subr.mxu0 0.0
    %2914 = vmatpush1.msra.mxu0 0.0
    %2915 = vmatprep.subr.mxu0 0.0
    %2916 = vmatpush1.msra.mxu0 0.0
    %2917 = vmatprep.subr.mxu0 0.0
    %2918 = vmatpush1.msra.mxu0 0.0
    %2919 = vmatprep.mubr.f32.mxu0 0.0
    %2920 = vmatmul.mubr.f32.gmra.mrb[0].mxu0 %v2830
    %v2921 = vpop.f32.mrb[0].mxu0
    %v2922 = vadd.f32 %v2853, %v2921
    %v2923 = vpop.f32.mrb[0].mxu0
    %2924 = vmatprep.mubr.f32.mxu0 0.0
    %2925 = vmatmul.mubr.f32.gmra.mrb[0].mxu0 %v2831
    %v2926 = vpop.f32.mrb[0].mxu0
    %v2927 = vadd.f32 %v2853, %v2926
    %v2928 = vpop.f32.mrb[0].mxu0
    %2929 = vdwg.mxu0
    %2932 = vrot.lane.b32.xlu0 %v2922, 32
    %v2933 = vpop.permute.xlu0 %2932
    %2934 = vrot.lane.b32.xlu0 %v2927, 32
    %v2935 = vpop.permute.xlu0 %2934
    %v2938 = vmul.f32 %v977, %v2933
    %v2939 = vmul.f32 %v983, %v2935
    %2942 = vrot.lane.b32.xlu0 %v2938, 96
    %v2943 = vpop.permute.xlu0 %2942
    %2944 = vrot.lane.b32.xlu0 %v2939, 96
    %v2945 = vpop.permute.xlu0 %2944
    %v2948 = vadd.f32 %v2676, %v2943
    %v2949 = vadd.f32 %v2677, %v2945
    %s2950 = scalar_lea.vmem %s37, 64
    %v2951 = vld [vmem:[%s2950] sm:$0xff]
    %v2952 = vld [vmem:[%s2950 + $0x8] sm:$0xff]
    %v2953 = vld [vmem:[%s2950 + $0x10] sm:$0xff]
    %v2954 = vld [vmem:[%s2950 + $0x18] sm:$0xff]
    %v2955 = vld [vmem:[%s2950 + $0x20] sm:$0xff]
    %v2956 = vld [vmem:[%s2950 + $0x28] sm:$0xff]
    %v2957 = vld [vmem:[%s2950 + $0x30] sm:$0xff]
    %v2958 = vld [vmem:[%s2950 + $0x38] sm:$0xff]
    %s2959 = scalar_lea.vmem [#allocation13], 2
    %v2960 = vld [vmem:[%s2959] sm:$0x3]
    %v2962 = vlaneseq
    %v2963 = vshrl.u32 %v2962, 7
    %v2964 = vsub.s32 0, %v2963
    %v2965 = vrot.slane %v2960, %v2964
    %v2966 = vlaneseq
    %v2967 = vshrl.u32 %v2966, 7
    %v2968 = vsub.s32 1, %v2967
    %v2969 = vrot.slane %v2960, %v2968
    %2972 = vmatprep.subr.mxu0 %v2952
    %2973 = vmatpush1.msra.mxu0 %v2951
    %2974 = vmatprep.subr.mxu0 %v2954
    %2975 = vmatpush1.msra.mxu0 %v2953
    %2976 = vmatprep.subr.mxu0 %v2956
    %2977 = vmatpush1.msra.mxu0 %v2955
    %2978 = vmatprep.subr.mxu0 %v2958
    %2979 = vmatpush1.msra.mxu0 %v2957
    %2980 = vmatprep.subr.mxu0 0.0
    %2981 = vmatpush1.msra.mxu0 0.0
    %2982 = vmatprep.subr.mxu0 0.0
    %2983 = vmatpush1.msra.mxu0 0.0
    %2984 = vmatprep.subr.mxu0 0.0
    %2985 = vmatpush1.msra.mxu0 0.0
    %2986 = vmatprep.subr.mxu0 0.0
    %2987 = vmatpush1.msra.mxu0 0.0
    %2988 = vmatprep.subr.mxu0 0.0
    %2989 = vmatpush1.msra.mxu0 0.0
    %2990 = vmatprep.subr.mxu0 0.0
    %2991 = vmatpush1.msra.mxu0 0.0
    %2992 = vmatprep.subr.mxu0 0.0
    %2993 = vmatpush1.msra.mxu0 0.0
    %2994 = vmatprep.subr.mxu0 0.0
    %2995 = vmatpush1.msra.mxu0 0.0
    %2996 = vmatprep.subr.mxu0 0.0
    %2997 = vmatpush1.msra.mxu0 0.0
    %2998 = vmatprep.subr.mxu0 0.0
    %2999 = vmatpush1.msra.mxu0 0.0
    %3000 = vmatprep.subr.mxu0 0.0
    %3001 = vmatpush1.msra.mxu0 0.0
    %3002 = vmatprep.subr.mxu0 0.0
    %3003 = vmatpush1.msra.mxu0 0.0
    %3004 = vmatprep.subr.mxu0 0.0
    %3005 = vmatpush1.msra.mxu0 0.0
    %3006 = vmatprep.subr.mxu0 0.0
    %3007 = vmatpush1.msra.mxu0 0.0
    %3008 = vmatprep.subr.mxu0 0.0
    %3009 = vmatpush1.msra.mxu0 0.0
    %3010 = vmatprep.subr.mxu0 0.0
    %3011 = vmatpush1.msra.mxu0 0.0
    %3012 = vmatprep.subr.mxu0 0.0
    %3013 = vmatpush1.msra.mxu0 0.0
    %3014 = vmatprep.subr.mxu0 0.0
    %3015 = vmatpush1.msra.mxu0 0.0
    %3016 = vmatprep.subr.mxu0 0.0
    %3017 = vmatpush1.msra.mxu0 0.0
    %3018 = vmatprep.subr.mxu0 0.0
    %3019 = vmatpush1.msra.mxu0 0.0
    %3020 = vmatprep.subr.mxu0 0.0
    %3021 = vmatpush1.msra.mxu0 0.0
    %3022 = vmatprep.subr.mxu0 0.0
    %3023 = vmatpush1.msra.mxu0 0.0
    %3024 = vmatprep.subr.mxu0 0.0
    %3025 = vmatpush1.msra.mxu0 0.0
    %3026 = vmatprep.subr.mxu0 0.0
    %3027 = vmatpush1.msra.mxu0 0.0
    %3028 = vmatprep.subr.mxu0 0.0
    %3029 = vmatpush1.msra.mxu0 0.0
    %3030 = vmatprep.subr.mxu0 0.0
    %3031 = vmatpush1.msra.mxu0 0.0
    %3032 = vmatprep.subr.mxu0 0.0
    %3033 = vmatpush1.msra.mxu0 0.0
    %3034 = vmatprep.subr.mxu0 0.0
    %3035 = vmatpush1.msra.mxu0 0.0
    %3036 = vmatprep.mubr.f32.mxu0 0.0
    %3037 = vmatmul.mubr.f32.gmra.mrb[0].mxu0 %v905
    %v3038 = vpop.f32.mrb[0].mxu0
    %v3039 = vadd.f32 %v2965, %v3038
    %v3040 = vpop.f32.mrb[0].mxu0
    %v3041 = vadd.f32 %v2969, %v3040
    %3042 = vmatprep.mubr.f32.mxu0 0.0
    %3043 = vmatmul.mubr.f32.gmra.mrb[0].mxu0 %v908
    %v3044 = vpop.f32.mrb[0].mxu0
    %v3045 = vadd.f32 %v2965, %v3044
    %v3046 = vpop.f32.mrb[0].mxu0
    %v3047 = vadd.f32 %v2969, %v3046
    %3048 = vdwg.mxu0
    %v3049 = vsel %vm516, %v2948, 0.0
    %3050 = vadd.xlane.f32.xlu0 %v3049
    %v3051 = vpop.xlane.xlu0 %3050
    %v3052 = vsel %vm516, %v2949, 0.0
    %3053 = vadd.xlane.f32.xlu0 %v3052
    %v3054 = vpop.xlane.xlu0 %3053
    %v3055 = vmul.f32 %v3051, %v993
    %v3056 = vmul.f32 %v3054, %v993
    %v3057 = vsub.f32 %v2948, %v3055
    %v3058 = vsub.f32 %v2949, %v3056
    %v3059 = vmul.f32 %v3057, %v3057
    %v3060 = vmul.f32 %v3058, %v3058
    %v3061 = vsel %vm516, %v3059, 0.0
    %3062 = vadd.xlane.f32.xlu0 %v3061
    %v3063 = vpop.xlane.xlu0 %3062
    %v3064 = vsel %vm516, %v3060, 0.0
    %3065 = vadd.xlane.f32.xlu0 %v3064
    %v3066 = vpop.xlane.xlu0 %3065
    %v3067 = vmul.f32 %v3063, %v993
    %v3068 = vmul.f32 %v3066, %v993
    %v3069 = vadd.f32 %v3067, 1e-06
    %v3070 = vadd.f32 %v3068, 1e-06
    %v3071 = vrsqrt.pop %v3069
    %v3072 = vrsqrt.pop %v3070
    %v3073 = vmul.f32 %v3057, %v3071
    %v3074 = vmul.f32 %v3058, %v3072
    %v3075 = vadd.f32 %v3039, 1.0
    %v3076 = vadd.f32 %v3045, 1.0
    %3079 = vrot.lane.b32.xlu0 %v3075, 64
    %v3080 = vpop.permute.xlu0 %3079
    %3081 = vrot.lane.b32.xlu0 %v3076, 64
    %v3082 = vpop.permute.xlu0 %3081
    %v3085 = vmul.f32 %v3073, %v3080
    %v3086 = vmul.f32 %v3074, %v3082
    %v3087 = vadd.f32 %v3085, %v3041
    %v3088 = vadd.f32 %v3086, %v3047
    %s3089 = scalar_lea.vmem %s41, 32
    %v3090 = vld [vmem:[%s3089] sm:$0xff]
    %v3091 = vld [vmem:[%s3089 + $0x8] sm:$0xff]
    %v3092 = vld [vmem:[%s3089 + $0x10] sm:$0xff]
    %v3093 = vld [vmem:[%s3089 + $0x18] sm:$0xff]
    %s3094 = scalar_lea.vmem [#allocation15], 1
    %v3095 = vld [vmem:[%s3094] sm:$0x1]
    %v3097 = vlaneseq
    %v3098 = vshrl.u32 %v3097, 7
    %v3099 = vsub.s32 0, %v3098
    %v3100 = vrot.slane %v3095, %v3099
    %v3103 = vsel %vm516, %v3087, 0
    %v3106 = vsel %vm516, %v3088, 0
    %3108 = vmatprep.subr.mxu0 0.0
    %3109 = vmatpush1.msra.mxu0 %v3090
    %3110 = vmatprep.subr.mxu0 0.0
    %3111 = vmatpush1.msra.mxu0 %v3091
    %3112 = vmatprep.subr.mxu0 0.0
    %3113 = vmatpush1.msra.mxu0 %v3092
    %3114 = vmatprep.subr.mxu0 0.0
    %3115 = vmatpush1.msra.mxu0 %v3093
    %3116 = vmatprep.subr.mxu0 0.0
    %3117 = vmatpush1.msra.mxu0 0.0
    %3118 = vmatprep.subr.mxu0 0.0
    %3119 = vmatpush1.msra.mxu0 0.0
    %3120 = vmatprep.subr.mxu0 0.0
    %3121 = vmatpush1.msra.mxu0 0.0
    %3122 = vmatprep.subr.mxu0 0.0
    %3123 = vmatpush1.msra.mxu0 0.0
    %3124 = vmatprep.subr.mxu0 0.0
    %3125 = vmatpush1.msra.mxu0 0.0
    %3126 = vmatprep.subr.mxu0 0.0
    %3127 = vmatpush1.msra.mxu0 0.0
    %3128 = vmatprep.subr.mxu0 0.0
    %3129 = vmatpush1.msra.mxu0 0.0
    %3130 = vmatprep.subr.mxu0 0.0
    %3131 = vmatpush1.msra.mxu0 0.0
    %3132 = vmatprep.subr.mxu0 0.0
    %3133 = vmatpush1.msra.mxu0 0.0
    %3134 = vmatprep.subr.mxu0 0.0
    %3135 = vmatpush1.msra.mxu0 0.0
    %3136 = vmatprep.subr.mxu0 0.0
    %3137 = vmatpush1.msra.mxu0 0.0
    %3138 = vmatprep.subr.mxu0 0.0
    %3139 = vmatpush1.msra.mxu0 0.0
    %3140 = vmatprep.subr.mxu0 0.0
    %3141 = vmatpush1.msra.mxu0 0.0
    %3142 = vmatprep.subr.mxu0 0.0
    %3143 = vmatpush1.msra.mxu0 0.0
    %3144 = vmatprep.subr.mxu0 0.0
    %3145 = vmatpush1.msra.mxu0 0.0
    %3146 = vmatprep.subr.mxu0 0.0
    %3147 = vmatpush1.msra.mxu0 0.0
    %3148 = vmatprep.subr.mxu0 0.0
    %3149 = vmatpush1.msra.mxu0 0.0
    %3150 = vmatprep.subr.mxu0 0.0
    %3151 = vmatpush1.msra.mxu0 0.0
    %3152 = vmatprep.subr.mxu0 0.0
    %3153 = vmatpush1.msra.mxu0 0.0
    %3154 = vmatprep.subr.mxu0 0.0
    %3155 = vmatpush1.msra.mxu0 0.0
    %3156 = vmatprep.subr.mxu0 0.0
    %3157 = vmatpush1.msra.mxu0 0.0
    %3158 = vmatprep.subr.mxu0 0.0
    %3159 = vmatpush1.msra.mxu0 0.0
    %3160 = vmatprep.subr.mxu0 0.0
    %3161 = vmatpush1.msra.mxu0 0.0
    %3162 = vmatprep.subr.mxu0 0.0
    %3163 = vmatpush1.msra.mxu0 0.0
    %3164 = vmatprep.subr.mxu0 0.0
    %3165 = vmatpush1.msra.mxu0 0.0
    %3166 = vmatprep.subr.mxu0 0.0
    %3167 = vmatpush1.msra.mxu0 0.0
    %3168 = vmatprep.subr.mxu0 0.0
    %3169 = vmatpush1.msra.mxu0 0.0
    %3170 = vmatprep.subr.mxu0 0.0
    %3171 = vmatpush1.msra.mxu0 0.0
    %3172 = vmatprep.mubr.f32.mxu0 0.0
    %3173 = vmatmul.mubr.f32.gmra.mrb[0].mxu0 %v3103
    %v3174 = vpop.f32.mrb[0].mxu0
    %v3175 = vadd.f32 %v3100, %v3174
    %v3176 = vpop.f32.mrb[0].mxu0
    %3177 = vmatprep.mubr.f32.mxu0 0.0
    %3178 = vmatmul.mubr.f32.gmra.mrb[0].mxu0 %v3106
    %v3179 = vpop.f32.mrb[0].mxu0
    %v3180 = vadd.f32 %v3100, %v3179
    %v3181 = vpop.f32.mrb[0].mxu0
    %3182 = vdwg.mxu0
    %v3184 = vsel %vm516, %v3175, 0
    %v3187 = vsel %vm516, %v3180, 0
    %3189 = vmatprep.subr.mxu0 0.0
    %3190 = vmatpush1.msra.mxu0 %v393
    %3191 = vmatprep.subr.mxu0 0.0
    %3192 = vmatpush1.msra.mxu0 %v394
    %3193 = vmatprep.subr.mxu0 0.0
    %3194 = vmatpush1.msra.mxu0 %v395
    %3195 = vmatprep.subr.mxu0 0.0
    %3196 = vmatpush1.msra.mxu0 %v396
    %3197 = vmatprep.subr.mxu0 0.0
    %3198 = vmatpush1.msra.mxu0 0.0
    %3199 = vmatprep.subr.mxu0 0.0
    %3200 = vmatpush1.msra.mxu0 0.0
    %3201 = vmatprep.subr.mxu0 0.0
    %3202 = vmatpush1.msra.mxu0 0.0
    %3203 = vmatprep.subr.mxu0 0.0
    %3204 = vmatpush1.msra.mxu0 0.0
    %3205 = vmatprep.subr.mxu0 0.0
    %3206 = vmatpush1.msra.mxu0 0.0
    %3207 = vmatprep.subr.mxu0 0.0
    %3208 = vmatpush1.msra.mxu0 0.0
    %3209 = vmatprep.subr.mxu0 0.0
    %3210 = vmatpush1.msra.mxu0 0.0
    %3211 = vmatprep.subr.mxu0 0.0
    %3212 = vmatpush1.msra.mxu0 0.0
    %3213 = vmatprep.subr.mxu0 0.0
    %3214 = vmatpush1.msra.mxu0 0.0
    %3215 = vmatprep.subr.mxu0 0.0
    %3216 = vmatpush1.msra.mxu0 0.0
    %3217 = vmatprep.subr.mxu0 0.0
    %3218 = vmatpush1.msra.mxu0 0.0
    %3219 = vmatprep.subr.mxu0 0.0
    %3220 = vmatpush1.msra.mxu0 0.0
    %3221 = vmatprep.subr.mxu0 0.0
    %3222 = vmatpush1.msra.mxu0 0.0
    %3223 = vmatprep.subr.mxu0 0.0
    %3224 = vmatpush1.msra.mxu0 0.0
    %3225 = vmatprep.subr.mxu0 0.0
    %3226 = vmatpush1.msra.mxu0 0.0
    %3227 = vmatprep.subr.mxu0 0.0
    %3228 = vmatpush1.msra.mxu0 0.0
    %3229 = vmatprep.subr.mxu0 0.0
    %3230 = vmatpush1.msra.mxu0 0.0
    %3231 = vmatprep.subr.mxu0 0.0
    %3232 = vmatpush1.msra.mxu0 0.0
    %3233 = vmatprep.subr.mxu0 0.0
    %3234 = vmatpush1.msra.mxu0 0.0
    %3235 = vmatprep.subr.mxu0 0.0
    %3236 = vmatpush1.msra.mxu0 0.0
    %3237 = vmatprep.subr.mxu0 0.0
    %3238 = vmatpush1.msra.mxu0 0.0
    %3239 = vmatprep.subr.mxu0 0.0
    %3240 = vmatpush1.msra.mxu0 0.0
    %3241 = vmatprep.subr.mxu0 0.0
    %3242 = vmatpush1.msra.mxu0 0.0
    %3243 = vmatprep.subr.mxu0 0.0
    %3244 = vmatpush1.msra.mxu0 0.0
    %3245 = vmatprep.subr.mxu0 0.0
    %3246 = vmatpush1.msra.mxu0 0.0
    %3247 = vmatprep.subr.mxu0 0.0
    %3248 = vmatpush1.msra.mxu0 0.0
    %3249 = vmatprep.subr.mxu0 0.0
    %3250 = vmatpush1.msra.mxu0 0.0
    %3251 = vmatprep.subr.mxu0 0.0
    %3252 = vmatpush1.msra.mxu0 0.0
    %3253 = vmatprep.mubr.f32.mxu0 0.0
    %3254 = vmatmul.mubr.f32.gmra.mrb[0].mxu0 %v3184
    %v3255 = vpop.f32.mrb[0].mxu0
    %v3256 = vadd.f32 0.0, %v3255
    %v3257 = vpop.f32.mrb[0].mxu0
    %3258 = vmatprep.mubr.f32.mxu0 0.0
    %3259 = vmatmul.mubr.f32.gmra.mrb[0].mxu0 %v3187
    %v3260 = vpop.f32.mrb[0].mxu0
    %v3261 = vadd.f32 0.0, %v3260
    %v3262 = vpop.f32.mrb[0].mxu0
    %3263 = vdwg.mxu0
    %v3264 = vmul.f32 %v3175, %v3175
    %v3265 = vmul.f32 %v3180, %v3180
    %v3267 = vsel %vm516, %v3264, 0
    %v3270 = vsel %vm516, %v3265, 0
    %3272 = vmatprep.subr.mxu0 0.0
    %3273 = vmatpush1.msra.mxu0 %v393
    %3274 = vmatprep.subr.mxu0 0.0
    %3275 = vmatpush1.msra.mxu0 %v394
    %3276 = vmatprep.subr.mxu0 0.0
    %3277 = vmatpush1.msra.mxu0 %v395
    %3278 = vmatprep.subr.mxu0 0.0
    %3279 = vmatpush1.msra.mxu0 %v396
    %3280 = vmatprep.subr.mxu0 0.0
    %3281 = vmatpush1.msra.mxu0 0.0
    %3282 = vmatprep.subr.mxu0 0.0
    %3283 = vmatpush1.msra.mxu0 0.0
    %3284 = vmatprep.subr.mxu0 0.0
    %3285 = vmatpush1.msra.mxu0 0.0
    %3286 = vmatprep.subr.mxu0 0.0
    %3287 = vmatpush1.msra.mxu0 0.0
    %3288 = vmatprep.subr.mxu0 0.0
    %3289 = vmatpush1.msra.mxu0 0.0
    %3290 = vmatprep.subr.mxu0 0.0
    %3291 = vmatpush1.msra.mxu0 0.0
    %3292 = vmatprep.subr.mxu0 0.0
    %3293 = vmatpush1.msra.mxu0 0.0
    %3294 = vmatprep.subr.mxu0 0.0
    %3295 = vmatpush1.msra.mxu0 0.0
    %3296 = vmatprep.subr.mxu0 0.0
    %3297 = vmatpush1.msra.mxu0 0.0
    %3298 = vmatprep.subr.mxu0 0.0
    %3299 = vmatpush1.msra.mxu0 0.0
    %3300 = vmatprep.subr.mxu0 0.0
    %3301 = vmatpush1.msra.mxu0 0.0
    %3302 = vmatprep.subr.mxu0 0.0
    %3303 = vmatpush1.msra.mxu0 0.0
    %3304 = vmatprep.subr.mxu0 0.0
    %3305 = vmatpush1.msra.mxu0 0.0
    %3306 = vmatprep.subr.mxu0 0.0
    %3307 = vmatpush1.msra.mxu0 0.0
    %3308 = vmatprep.subr.mxu0 0.0
    %3309 = vmatpush1.msra.mxu0 0.0
    %3310 = vmatprep.subr.mxu0 0.0
    %3311 = vmatpush1.msra.mxu0 0.0
    %3312 = vmatprep.subr.mxu0 0.0
    %3313 = vmatpush1.msra.mxu0 0.0
    %3314 = vmatprep.subr.mxu0 0.0
    %3315 = vmatpush1.msra.mxu0 0.0
    %3316 = vmatprep.subr.mxu0 0.0
    %3317 = vmatpush1.msra.mxu0 0.0
    %3318 = vmatprep.subr.mxu0 0.0
    %3319 = vmatpush1.msra.mxu0 0.0
    %3320 = vmatprep.subr.mxu0 0.0
    %3321 = vmatpush1.msra.mxu0 0.0
    %3322 = vmatprep.subr.mxu0 0.0
    %3323 = vmatpush1.msra.mxu0 0.0
    %3324 = vmatprep.subr.mxu0 0.0
    %3325 = vmatpush1.msra.mxu0 0.0
    %3326 = vmatprep.subr.mxu0 0.0
    %3327 = vmatpush1.msra.mxu0 0.0
    %3328 = vmatprep.subr.mxu0 0.0
    %3329 = vmatpush1.msra.mxu0 0.0
    %3330 = vmatprep.subr.mxu0 0.0
    %3331 = vmatpush1.msra.mxu0 0.0
    %3332 = vmatprep.subr.mxu0 0.0
    %3333 = vmatpush1.msra.mxu0 0.0
    %3334 = vmatprep.subr.mxu0 0.0
    %3335 = vmatpush1.msra.mxu0 0.0
    %3336 = vmatprep.mubr.f32.mxu0 0.0
    %3337 = vmatmul.mubr.f32.gmra.mrb[0].mxu0 %v3267
    %v3338 = vpop.f32.mrb[0].mxu0
    %v3339 = vadd.f32 0.0, %v3338
    %v3340 = vpop.f32.mrb[0].mxu0
    %3341 = vmatprep.mubr.f32.mxu0 0.0
    %3342 = vmatmul.mubr.f32.gmra.mrb[0].mxu0 %v3270
    %v3343 = vpop.f32.mrb[0].mxu0
    %v3344 = vadd.f32 0.0, %v3343
    %v3345 = vpop.f32.mrb[0].mxu0
    %3346 = vdwg.mxu0
    %v3347 = vmul.f32 %v3256, %v3256
    %v3348 = vmul.f32 %v3261, %v3261
    %v3349 = vsub.f32 %v3339, %v3347
    %v3350 = vsub.f32 %v3344, %v3348
    %v3351 = vsub.f32 %v3175, %v3256
    %v3352 = vsub.f32 %v3180, %v3261
    %v3353 = vadd.f32 %v3349, 1e-05
    %v3354 = vadd.f32 %v3350, 1e-05
    %v3355 = vrsqrt.pop %v3353
    %v3356 = vrsqrt.pop %v3354
    %v3357 = vmul.f32 %v3351, %v3355
    %v3358 = vmul.f32 %v3352, %v3356
    %s3359 = scalar_lea.vmem [#allocation16], 1
    %v3360 = vld [vmem:[%s3359] sm:$0x1]
    %v3362 = vlaneseq
    %v3363 = vshrl.u32 %v3362, 7
    %v3364 = vsub.s32 0, %v3363
    %v3365 = vrot.slane %v3360, %v3364
    %v3367 = vmul.f32 %v3357, %v3365
    %v3368 = vmul.f32 %v3358, %v3365
    %s3369 = scalar_lea.vmem [#allocation18], 1
    %v3370 = vld [vmem:[%s3369] sm:$0x1]
    %v3372 = vlaneseq
    %v3373 = vshrl.u32 %v3372, 7
    %v3374 = vsub.s32 0, %v3373
    %v3375 = vrot.slane %v3370, %v3374
    %v3377 = vadd.f32 %v3367, %v3375
    %v3378 = vadd.f32 %v3368, %v3375
    %3379 = vrot.lane.b32.xlu0 %v3175, 96
    %v3380 = vpop.permute.xlu0 %3379
    %3381 = vrot.lane.b32.xlu0 %v3180, 96
    %v3382 = vpop.permute.xlu0 %3381
    %v3383 = vsel %vm516, %v3380, 0
    %v3385 = vsel %vm516, %v3382, 0
    %3387 = vmatprep.subr.mxu0 0.0
    %3388 = vmatpush1.msra.mxu0 %v393
    %3389 = vmatprep.subr.mxu0 0.0
    %3390 = vmatpush1.msra.mxu0 %v394
    %3391 = vmatprep.subr.mxu0 0.0
    %3392 = vmatpush1.msra.mxu0 %v395
    %3393 = vmatprep.subr.mxu0 0.0
    %3394 = vmatpush1.msra.mxu0 %v396
    %3395 = vmatprep.subr.mxu0 0.0
    %3396 = vmatpush1.msra.mxu0 0.0
    %3397 = vmatprep.subr.mxu0 0.0
    %3398 = vmatpush1.msra.mxu0 0.0
    %3399 = vmatprep.subr.mxu0 0.0
    %3400 = vmatpush1.msra.mxu0 0.0
    %3401 = vmatprep.subr.mxu0 0.0
    %3402 = vmatpush1.msra.mxu0 0.0
    %3403 = vmatprep.subr.mxu0 0.0
    %3404 = vmatpush1.msra.mxu0 0.0
    %3405 = vmatprep.subr.mxu0 0.0
    %3406 = vmatpush1.msra.mxu0 0.0
    %3407 = vmatprep.subr.mxu0 0.0
    %3408 = vmatpush1.msra.mxu0 0.0
    %3409 = vmatprep.subr.mxu0 0.0
    %3410 = vmatpush1.msra.mxu0 0.0
    %3411 = vmatprep.subr.mxu0 0.0
    %3412 = vmatpush1.msra.mxu0 0.0
    %3413 = vmatprep.subr.mxu0 0.0
    %3414 = vmatpush1.msra.mxu0 0.0
    %3415 = vmatprep.subr.mxu0 0.0
    %3416 = vmatpush1.msra.mxu0 0.0
    %3417 = vmatprep.subr.mxu0 0.0
    %3418 = vmatpush1.msra.mxu0 0.0
    %3419 = vmatprep.subr.mxu0 0.0
    %3420 = vmatpush1.msra.mxu0 0.0
    %3421 = vmatprep.subr.mxu0 0.0
    %3422 = vmatpush1.msra.mxu0 0.0
    %3423 = vmatprep.subr.mxu0 0.0
    %3424 = vmatpush1.msra.mxu0 0.0
    %3425 = vmatprep.subr.mxu0 0.0
    %3426 = vmatpush1.msra.mxu0 0.0
    %3427 = vmatprep.subr.mxu0 0.0
    %3428 = vmatpush1.msra.mxu0 0.0
    %3429 = vmatprep.subr.mxu0 0.0
    %3430 = vmatpush1.msra.mxu0 0.0
    %3431 = vmatprep.subr.mxu0 0.0
    %3432 = vmatpush1.msra.mxu0 0.0
    %3433 = vmatprep.subr.mxu0 0.0
    %3434 = vmatpush1.msra.mxu0 0.0
    %3435 = vmatprep.subr.mxu0 0.0
    %3436 = vmatpush1.msra.mxu0 0.0
    %3437 = vmatprep.subr.mxu0 0.0
    %3438 = vmatpush1.msra.mxu0 0.0
    %3439 = vmatprep.subr.mxu0 0.0
    %3440 = vmatpush1.msra.mxu0 0.0
    %3441 = vmatprep.subr.mxu0 0.0
    %3442 = vmatpush1.msra.mxu0 0.0
    %3443 = vmatprep.subr.mxu0 0.0
    %3444 = vmatpush1.msra.mxu0 0.0
    %3445 = vmatprep.subr.mxu0 0.0
    %3446 = vmatpush1.msra.mxu0 0.0
    %3447 = vmatprep.subr.mxu0 0.0
    %3448 = vmatpush1.msra.mxu0 0.0
    %3449 = vmatprep.subr.mxu0 0.0
    %3450 = vmatpush1.msra.mxu0 0.0
    %3451 = vmatprep.mubr.f32.mxu0 0.0
    %3452 = vmatmul.mubr.f32.gmra.mrb[0].mxu0 %v3383
    %v3453 = vpop.f32.mrb[0].mxu0
    %v3454 = vadd.f32 0.0, %v3453
    %v3455 = vpop.f32.mrb[0].mxu0
    %3456 = vmatprep.mubr.f32.mxu0 0.0
    %3457 = vmatmul.mubr.f32.gmra.mrb[0].mxu0 %v3385
    %v3458 = vpop.f32.mrb[0].mxu0
    %v3459 = vadd.f32 0.0, %v3458
    %v3460 = vpop.f32.mrb[0].mxu0
    %3461 = vdwg.mxu0
    %3462 = vrot.lane.b32.xlu0 %v3264, 96
    %v3463 = vpop.permute.xlu0 %3462
    %3464 = vrot.lane.b32.xlu0 %v3265, 96
    %v3465 = vpop.permute.xlu0 %3464
    %v3466 = vsel %vm516, %v3463, 0
    %v3468 = vsel %vm516, %v3465, 0
    %3470 = vmatprep.subr.mxu0 0.0
    %3471 = vmatpush1.msra.mxu0 %v393
    %3472 = vmatprep.subr.mxu0 0.0
    %3473 = vmatpush1.msra.mxu0 %v394
    %3474 = vmatprep.subr.mxu0 0.0
    %3475 = vmatpush1.msra.mxu0 %v395
    %3476 = vmatprep.subr.mxu0 0.0
    %3477 = vmatpush1.msra.mxu0 %v396
    %3478 = vmatprep.subr.mxu0 0.0
    %3479 = vmatpush1.msra.mxu0 0.0
    %3480 = vmatprep.subr.mxu0 0.0
    %3481 = vmatpush1.msra.mxu0 0.0
    %3482 = vmatprep.subr.mxu0 0.0
    %3483 = vmatpush1.msra.mxu0 0.0
    %3484 = vmatprep.subr.mxu0 0.0
    %3485 = vmatpush1.msra.mxu0 0.0
    %3486 = vmatprep.subr.mxu0 0.0
    %3487 = vmatpush1.msra.mxu0 0.0
    %3488 = vmatprep.subr.mxu0 0.0
    %3489 = vmatpush1.msra.mxu0 0.0
    %3490 = vmatprep.subr.mxu0 0.0
    %3491 = vmatpush1.msra.mxu0 0.0
    %3492 = vmatprep.subr.mxu0 0.0
    %3493 = vmatpush1.msra.mxu0 0.0
    %3494 = vmatprep.subr.mxu0 0.0
    %3495 = vmatpush1.msra.mxu0 0.0
    %3496 = vmatprep.subr.mxu0 0.0
    %3497 = vmatpush1.msra.mxu0 0.0
    %3498 = vmatprep.subr.mxu0 0.0
    %3499 = vmatpush1.msra.mxu0 0.0
    %3500 = vmatprep.subr.mxu0 0.0
    %3501 = vmatpush1.msra.mxu0 0.0
    %3502 = vmatprep.subr.mxu0 0.0
    %3503 = vmatpush1.msra.mxu0 0.0
    %3504 = vmatprep.subr.mxu0 0.0
    %3505 = vmatpush1.msra.mxu0 0.0
    %3506 = vmatprep.subr.mxu0 0.0
    %3507 = vmatpush1.msra.mxu0 0.0
    %3508 = vmatprep.subr.mxu0 0.0
    %3509 = vmatpush1.msra.mxu0 0.0
    %3510 = vmatprep.subr.mxu0 0.0
    %3511 = vmatpush1.msra.mxu0 0.0
    %3512 = vmatprep.subr.mxu0 0.0
    %3513 = vmatpush1.msra.mxu0 0.0
    %3514 = vmatprep.subr.mxu0 0.0
    %3515 = vmatpush1.msra.mxu0 0.0
    %3516 = vmatprep.subr.mxu0 0.0
    %3517 = vmatpush1.msra.mxu0 0.0
    %3518 = vmatprep.subr.mxu0 0.0
    %3519 = vmatpush1.msra.mxu0 0.0
    %3520 = vmatprep.subr.mxu0 0.0
    %3521 = vmatpush1.msra.mxu0 0.0
    %3522 = vmatprep.subr.mxu0 0.0
    %3523 = vmatpush1.msra.mxu0 0.0
    %3524 = vmatprep.subr.mxu0 0.0
    %3525 = vmatpush1.msra.mxu0 0.0
    %3526 = vmatprep.subr.mxu0 0.0
    %3527 = vmatpush1.msra.mxu0 0.0
    %3528 = vmatprep.subr.mxu0 0.0
    %3529 = vmatpush1.msra.mxu0 0.0
    %3530 = vmatprep.subr.mxu0 0.0
    %3531 = vmatpush1.msra.mxu0 0.0
    %3532 = vmatprep.subr.mxu0 0.0
    %3533 = vmatpush1.msra.mxu0 0.0
    %3534 = vmatprep.mubr.f32.mxu0 0.0
    %3535 = vmatmul.mubr.f32.gmra.mrb[0].mxu0 %v3466
    %v3536 = vpop.f32.mrb[0].mxu0
    %v3537 = vadd.f32 0.0, %v3536
    %v3538 = vpop.f32.mrb[0].mxu0
    %3539 = vmatprep.mubr.f32.mxu0 0.0
    %3540 = vmatmul.mubr.f32.gmra.mrb[0].mxu0 %v3468
    %v3541 = vpop.f32.mrb[0].mxu0
    %v3542 = vadd.f32 0.0, %v3541
    %v3543 = vpop.f32.mrb[0].mxu0
    %3544 = vdwg.mxu0
    %v3545 = vmul.f32 %v3454, %v3454
    %v3546 = vmul.f32 %v3459, %v3459
    %v3547 = vsub.f32 %v3537, %v3545
    %v3548 = vsub.f32 %v3542, %v3546
    %3551 = vrot.lane.b32.xlu0 %v3454, 32
    %v3552 = vpop.permute.xlu0 %3551
    %3553 = vrot.lane.b32.xlu0 %v3459, 32
    %v3554 = vpop.permute.xlu0 %3553
    %v3557 = vsub.f32 %v3175, %v3552
    %v3558 = vsub.f32 %v3180, %v3554
    %v3559 = vadd.f32 %v3547, 1e-05
    %v3560 = vadd.f32 %v3548, 1e-05
    %v3561 = vrsqrt.pop %v3559
    %v3562 = vrsqrt.pop %v3560
    %3565 = vrot.lane.b32.xlu0 %v3561, 32
    %v3566 = vpop.permute.xlu0 %3565
    %3567 = vrot.lane.b32.xlu0 %v3562, 32
    %v3568 = vpop.permute.xlu0 %3567
    %v3571 = vmul.f32 %v3557, %v3566
    %v3572 = vmul.f32 %v3558, %v3568
    %s3573 = scalar_lea.vmem [#allocation19], 1
    %v3574 = vld [vmem:[%s3573] sm:$0x1]
    %v3576 = vlaneseq
    %v3577 = vshrl.u32 %v3576, 7
    %v3578 = vsub.s32 0, %v3577
    %v3579 = vrot.slane %v3574, %v3578
    %3580 = vrot.lane.b32.xlu0 %v3579, 32
    %v3581 = vpop.permute.xlu0 %3580
    %v3583 = vmul.f32 %v3571, %v3581
    %v3584 = vmul.f32 %v3572, %v3581
    %s3585 = scalar_lea.vmem [#allocation21], 1
    %v3586 = vld [vmem:[%s3585] sm:$0x1]
    %v3588 = vlaneseq
    %v3589 = vshrl.u32 %v3588, 7
    %v3590 = vsub.s32 0, %v3589
    %v3591 = vrot.slane %v3586, %v3590
    %3592 = vrot.lane.b32.xlu0 %v3591, 32
    %v3593 = vpop.permute.xlu0 %3592
    %v3595 = vadd.f32 %v3583, %v3593
    %v3596 = vadd.f32 %v3584, %v3593
    %v3597 = vmul.f32 %v3377, %v401
    %v3598 = vmul.f32 %v3378, %v402
    %v3600 = vsel %vm516, %v3377, 0
    %v3603 = vsel %vm516, %v3378, 0
    %3605 = vmatprep.subr.mxu0 0.0
    %3606 = vmatpush1.msra.mxu0 %v397
    %3607 = vmatprep.subr.mxu0 0.0
    %3608 = vmatpush1.msra.mxu0 %v398
    %3609 = vmatprep.subr.mxu0 0.0
    %3610 = vmatpush1.msra.mxu0 %v399
    %3611 = vmatprep.subr.mxu0 0.0
    %3612 = vmatpush1.msra.mxu0 %v400
    %3613 = vmatprep.subr.mxu0 0.0
    %3614 = vmatpush1.msra.mxu0 0.0
    %3615 = vmatprep.subr.mxu0 0.0
    %3616 = vmatpush1.msra.mxu0 0.0
    %3617 = vmatprep.subr.mxu0 0.0
    %3618 = vmatpush1.msra.mxu0 0.0
    %3619 = vmatprep.subr.mxu0 0.0
    %3620 = vmatpush1.msra.mxu0 0.0
    %3621 = vmatprep.subr.mxu0 0.0
    %3622 = vmatpush1.msra.mxu0 0.0
    %3623 = vmatprep.subr.mxu0 0.0
    %3624 = vmatpush1.msra.mxu0 0.0
    %3625 = vmatprep.subr.mxu0 0.0
    %3626 = vmatpush1.msra.mxu0 0.0
    %3627 = vmatprep.subr.mxu0 0.0
    %3628 = vmatpush1.msra.mxu0 0.0
    %3629 = vmatprep.subr.mxu0 0.0
    %3630 = vmatpush1.msra.mxu0 0.0
    %3631 = vmatprep.subr.mxu0 0.0
    %3632 = vmatpush1.msra.mxu0 0.0
    %3633 = vmatprep.subr.mxu0 0.0
    %3634 = vmatpush1.msra.mxu0 0.0
    %3635 = vmatprep.subr.mxu0 0.0
    %3636 = vmatpush1.msra.mxu0 0.0
    %3637 = vmatprep.subr.mxu0 0.0
    %3638 = vmatpush1.msra.mxu0 0.0
    %3639 = vmatprep.subr.mxu0 0.0
    %3640 = vmatpush1.msra.mxu0 0.0
    %3641 = vmatprep.subr.mxu0 0.0
    %3642 = vmatpush1.msra.mxu0 0.0
    %3643 = vmatprep.subr.mxu0 0.0
    %3644 = vmatpush1.msra.mxu0 0.0
    %3645 = vmatprep.subr.mxu0 0.0
    %3646 = vmatpush1.msra.mxu0 0.0
    %3647 = vmatprep.subr.mxu0 0.0
    %3648 = vmatpush1.msra.mxu0 0.0
    %3649 = vmatprep.subr.mxu0 0.0
    %3650 = vmatpush1.msra.mxu0 0.0
    %3651 = vmatprep.subr.mxu0 0.0
    %3652 = vmatpush1.msra.mxu0 0.0
    %3653 = vmatprep.subr.mxu0 0.0
    %3654 = vmatpush1.msra.mxu0 0.0
    %3655 = vmatprep.subr.mxu0 0.0
    %3656 = vmatpush1.msra.mxu0 0.0
    %3657 = vmatprep.subr.mxu0 0.0
    %3658 = vmatpush1.msra.mxu0 0.0
    %3659 = vmatprep.subr.mxu0 0.0
    %3660 = vmatpush1.msra.mxu0 0.0
    %3661 = vmatprep.subr.mxu0 0.0
    %3662 = vmatpush1.msra.mxu0 0.0
    %3663 = vmatprep.subr.mxu0 0.0
    %3664 = vmatpush1.msra.mxu0 0.0
    %3665 = vmatprep.subr.mxu0 0.0
    %3666 = vmatpush1.msra.mxu0 0.0
    %3667 = vmatprep.subr.mxu0 0.0
    %3668 = vmatpush1.msra.mxu0 0.0
    %3669 = vmatprep.mubr.f32.mxu0 0.0
    %3670 = vmatmul.mubr.f32.gmra.mrb[0].mxu0 %v3600
    %v3671 = vpop.f32.mrb[0].mxu0
    %v3672 = vadd.f32 0.0, %v3671
    %v3673 = vpop.f32.mrb[0].mxu0
    %3674 = vmatprep.mubr.f32.mxu0 0.0
    %3675 = vmatmul.mubr.f32.gmra.mrb[0].mxu0 %v3603
    %v3676 = vpop.f32.mrb[0].mxu0
    %v3677 = vadd.f32 0.0, %v3676
    %v3678 = vpop.f32.mrb[0].mxu0
    %3679 = vdwg.mxu0
    %v3680 = vmul.f32 %v3672, %v403
    %v3681 = vmul.f32 %v3677, %v404
    %v3682 = vadd.f32 %v3597, %v3680
    %v3683 = vadd.f32 %v3598, %v3681
    %v3684 = vmul.f32 %v3595, %v1620
    %v3685 = vmul.f32 %v3596, %v1622
    %3688 = vrot.lane.b32.xlu0 %v3595, 96
    %v3689 = vpop.permute.xlu0 %3688
    %3690 = vrot.lane.b32.xlu0 %v3596, 96
    %v3691 = vpop.permute.xlu0 %3690
    %v3692 = vsel %vm516, %v3689, 0
    %v3694 = vsel %vm516, %v3691, 0
    %3696 = vmatprep.subr.mxu0 0.0
    %3697 = vmatpush1.msra.mxu0 %v397
    %3698 = vmatprep.subr.mxu0 0.0
    %3699 = vmatpush1.msra.mxu0 %v398
    %3700 = vmatprep.subr.mxu0 0.0
    %3701 = vmatpush1.msra.mxu0 %v399
    %3702 = vmatprep.subr.mxu0 0.0
    %3703 = vmatpush1.msra.mxu0 %v400
    %3704 = vmatprep.subr.mxu0 0.0
    %3705 = vmatpush1.msra.mxu0 0.0
    %3706 = vmatprep.subr.mxu0 0.0
    %3707 = vmatpush1.msra.mxu0 0.0
    %3708 = vmatprep.subr.mxu0 0.0
    %3709 = vmatpush1.msra.mxu0 0.0
    %3710 = vmatprep.subr.mxu0 0.0
    %3711 = vmatpush1.msra.mxu0 0.0
    %3712 = vmatprep.subr.mxu0 0.0
    %3713 = vmatpush1.msra.mxu0 0.0
    %3714 = vmatprep.subr.mxu0 0.0
    %3715 = vmatpush1.msra.mxu0 0.0
    %3716 = vmatprep.subr.mxu0 0.0
    %3717 = vmatpush1.msra.mxu0 0.0
    %3718 = vmatprep.subr.mxu0 0.0
    %3719 = vmatpush1.msra.mxu0 0.0
    %3720 = vmatprep.subr.mxu0 0.0
    %3721 = vmatpush1.msra.mxu0 0.0
    %3722 = vmatprep.subr.mxu0 0.0
    %3723 = vmatpush1.msra.mxu0 0.0
    %3724 = vmatprep.subr.mxu0 0.0
    %3725 = vmatpush1.msra.mxu0 0.0
    %3726 = vmatprep.subr.mxu0 0.0
    %3727 = vmatpush1.msra.mxu0 0.0
    %3728 = vmatprep.subr.mxu0 0.0
    %3729 = vmatpush1.msra.mxu0 0.0
    %3730 = vmatprep.subr.mxu0 0.0
    %3731 = vmatpush1.msra.mxu0 0.0
    %3732 = vmatprep.subr.mxu0 0.0
    %3733 = vmatpush1.msra.mxu0 0.0
    %3734 = vmatprep.subr.mxu0 0.0
    %3735 = vmatpush1.msra.mxu0 0.0
    %3736 = vmatprep.subr.mxu0 0.0
    %3737 = vmatpush1.msra.mxu0 0.0
    %3738 = vmatprep.subr.mxu0 0.0
    %3739 = vmatpush1.msra.mxu0 0.0
    %3740 = vmatprep.subr.mxu0 0.0
    %3741 = vmatpush1.msra.mxu0 0.0
    %3742 = vmatprep.subr.mxu0 0.0
    %3743 = vmatpush1.msra.mxu0 0.0
    %3744 = vmatprep.subr.mxu0 0.0
    %3745 = vmatpush1.msra.mxu0 0.0
    %3746 = vmatprep.subr.mxu0 0.0
    %3747 = vmatpush1.msra.mxu0 0.0
    %3748 = vmatprep.subr.mxu0 0.0
    %3749 = vmatpush1.msra.mxu0 0.0
    %3750 = vmatprep.subr.mxu0 0.0
    %3751 = vmatpush1.msra.mxu0 0.0
    %3752 = vmatprep.subr.mxu0 0.0
    %3753 = vmatpush1.msra.mxu0 0.0
    %3754 = vmatprep.subr.mxu0 0.0
    %3755 = vmatpush1.msra.mxu0 0.0
    %3756 = vmatprep.subr.mxu0 0.0
    %3757 = vmatpush1.msra.mxu0 0.0
    %3758 = vmatprep.subr.mxu0 0.0
    %3759 = vmatpush1.msra.mxu0 0.0
    %3760 = vmatprep.mubr.f32.mxu0 0.0
    %3761 = vmatmul.mubr.f32.gmra.mrb[0].mxu0 %v3692
    %v3762 = vpop.f32.mrb[0].mxu0
    %v3763 = vadd.f32 0.0, %v3762
    %v3764 = vpop.f32.mrb[0].mxu0
    %3765 = vmatprep.mubr.f32.mxu0 0.0
    %3766 = vmatmul.mubr.f32.gmra.mrb[0].mxu0 %v3694
    %v3767 = vpop.f32.mrb[0].mxu0
    %v3768 = vadd.f32 0.0, %v3767
    %v3769 = vpop.f32.mrb[0].mxu0
    %3770 = vdwg.mxu0
    %v3771 = vmul.f32 %v3763, %v403
    %v3772 = vmul.f32 %v3768, %v404
    %3775 = vrot.lane.b32.xlu0 %v3771, 32
    %v3776 = vpop.permute.xlu0 %3775
    %3777 = vrot.lane.b32.xlu0 %v3772, 32
    %v3778 = vpop.permute.xlu0 %3777
    %v3781 = vadd.f32 %v3684, %v3776
    %v3782 = vadd.f32 %v3685, %v3778
    %v3783 = vmul.f32 %v3682, %v1729
    %v3784 = vmul.f32 %v3683, %v1729
    %3787 = vrot.lane.b32.xlu0 %v3781, 96
    %v3788 = vpop.permute.xlu0 %3787
    %3789 = vrot.lane.b32.xlu0 %v3782, 96
    %v3790 = vpop.permute.xlu0 %3789
    %v3792 = vsel %vm516, %v3783, 0
    %v3795 = vsel %vm516, %v3784, 0
    %v3797 = vsel %vm516, %v3788, 0
    %v3799 = vsel %vm516, %v3790, 0
    %3801 = vmatprep.subr.mxu0 0.0
    %3802 = vmatpush1.xpose.msra.mxu0 %v3797
    %3803 = vmatprep.subr.mxu0 0.0
    %3804 = vmatpush1.xpose.msra.mxu0 %v3799
    %3805 = vmatprep.subr.mxu0 0.0
    %3806 = vmatpush1.xpose.msra.mxu0 0.0
    %3807 = vmatprep.subr.mxu0 0.0
    %3808 = vmatpush1.xpose.msra.mxu0 0.0
    %3809 = vmatprep.subr.mxu0 0.0
    %3810 = vmatpush1.xpose.msra.mxu0 0.0
    %3811 = vmatprep.subr.mxu0 0.0
    %3812 = vmatpush1.xpose.msra.mxu0 0.0
    %3813 = vmatprep.subr.mxu0 0.0
    %3814 = vmatpush1.xpose.msra.mxu0 0.0
    %3815 = vmatprep.subr.mxu0 0.0
    %3816 = vmatpush1.xpose.msra.mxu0 0.0
    %3817 = vmatprep.subr.mxu0 0.0
    %3818 = vmatpush1.xpose.msra.mxu0 0.0
    %3819 = vmatprep.subr.mxu0 0.0
    %3820 = vmatpush1.xpose.msra.mxu0 0.0
    %3821 = vmatprep.subr.mxu0 0.0
    %3822 = vmatpush1.xpose.msra.mxu0 0.0
    %3823 = vmatprep.subr.mxu0 0.0
    %3824 = vmatpush1.xpose.msra.mxu0 0.0
    %3825 = vmatprep.subr.mxu0 0.0
    %3826 = vmatpush1.xpose.msra.mxu0 0.0
    %3827 = vmatprep.subr.mxu0 0.0
    %3828 = vmatpush1.xpose.msra.mxu0 0.0
    %3829 = vmatprep.subr.mxu0 0.0
    %3830 = vmatpush1.xpose.msra.mxu0 0.0
    %3831 = vmatprep.subr.mxu0 0.0
    %3832 = vmatpush1.xpose.msra.mxu0 0.0
    %3833 = vmatprep.subr.mxu0 0.0
    %3834 = vmatpush1.xpose.msra.mxu0 0.0
    %3835 = vmatprep.subr.mxu0 0.0
    %3836 = vmatpush1.xpose.msra.mxu0 0.0
    %3837 = vmatprep.subr.mxu0 0.0
    %3838 = vmatpush1.xpose.msra.mxu0 0.0
    %3839 = vmatprep.subr.mxu0 0.0
    %3840 = vmatpush1.xpose.msra.mxu0 0.0
    %3841 = vmatprep.subr.mxu0 0.0
    %3842 = vmatpush1.xpose.msra.mxu0 0.0
    %3843 = vmatprep.subr.mxu0 0.0
    %3844 = vmatpush1.xpose.msra.mxu0 0.0
    %3845 = vmatprep.subr.mxu0 0.0
    %3846 = vmatpush1.xpose.msra.mxu0 0.0
    %3847 = vmatprep.subr.mxu0 0.0
    %3848 = vmatpush1.xpose.msra.mxu0 0.0
    %3849 = vmatprep.subr.mxu0 0.0
    %3850 = vmatpush1.xpose.msra.mxu0 0.0
    %3851 = vmatprep.subr.mxu0 0.0
    %3852 = vmatpush1.xpose.msra.mxu0 0.0
    %3853 = vmatprep.subr.mxu0 0.0
    %3854 = vmatpush1.xpose.msra.mxu0 0.0
    %3855 = vmatprep.subr.mxu0 0.0
    %3856 = vmatpush1.xpose.msra.mxu0 0.0
    %3857 = vmatprep.subr.mxu0 0.0
    %3858 = vmatpush1.xpose.msra.mxu0 0.0
    %3859 = vmatprep.subr.mxu0 0.0
    %3860 = vmatpush1.xpose.msra.mxu0 0.0
    %3861 = vmatprep.subr.mxu0 0.0
    %3862 = vmatpush1.xpose.msra.mxu0 0.0
    %3863 = vmatprep.subr.mxu0 0.0
    %3864 = vmatpush1.xpose.msra.mxu0 0.0
    %3865 = vmatprep.mubr.f32.mxu0 0.0
    %3866 = vmatmul.mubr.f32.gmra.mrb[0].mxu0 %v3792
    %v3867 = vpop.f32.mrb[0].mxu0
    %v3868 = vadd.f32 0.0, %v3867
    %v3869 = vpop.f32.mrb[0].mxu0
    %3870 = vmatprep.mubr.f32.mxu0 0.0
    %3871 = vmatmul.mubr.f32.gmra.mrb[0].mxu0 %v3795
    %v3872 = vpop.f32.mrb[0].mxu0
    %v3873 = vadd.f32 0.0, %v3872
    %v3874 = vpop.f32.mrb[0].mxu0
    %3875 = vdwg.mxu0
    %v3876 = vmul.f32 %v3868, 0.35355338
    %v3877 = vmul.f32 %v3873, 0.35355338
    %v3878 = vadd.f32 %v3876, %v405
    %v3879 = vadd.f32 %v3877, %v406
    %v3880 = vsel %vm1828, %v3878, -inf
    %3881 = vmax.xlane.f32.xlu0 %v3880
    %v3882 = vpop.xlane.xlu0 %3881
    %v3883 = vsel %vm1828, %v3879, -inf
    %3884 = vmax.xlane.f32.xlu0 %v3883
    %v3885 = vpop.xlane.xlu0 %3884
    %v3886 = vsub.f32 %v3878, %v3882
    %v3887 = vsub.f32 %v3879, %v3885
    %v3888 = vmul.f32 %v3886, 1.442695
    %v3889 = vpow.pop %v3888
    %v3890 = vmul.f32 %v3887, 1.442695
    %v3891 = vpow.pop %v3890
    %v3892 = vsel %vm1828, %v3889, 0.0
    %3893 = vadd.xlane.f32.xlu0 %v3892
    %v3894 = vpop.xlane.xlu0 %3893
    %v3895 = vsel %vm1828, %v3891, 0.0
    %3896 = vadd.xlane.f32.xlu0 %v3895
    %v3897 = vpop.xlane.xlu0 %3896
    %v3898 = vrcp.pop %v3894
    %v3899 = vrcp.pop %v3897
    %v3900 = vmul.f32 %v3889, %v3898
    %v3901 = vmul.f32 %v3891, %v3899
    %v3902 = vmul.f32 %v3175, %v1852
    %v3903 = vmul.f32 %v3180, %v1852
    %v3904 = vmul.f32 %v3682, %v1862
    %v3905 = vmul.f32 %v3683, %v1862
    %v3907 = vsel %vm516, %v3904, 0
    %v3910 = vsel %vm516, %v3905, 0
    %3912 = vmatprep.subr.mxu0 0.0
    %3913 = vmatpush1.xpose.msra.mxu0 %v3797
    %3914 = vmatprep.subr.mxu0 0.0
    %3915 = vmatpush1.xpose.msra.mxu0 %v3799
    %3916 = vmatprep.subr.mxu0 0.0
    %3917 = vmatpush1.xpose.msra.mxu0 0.0
    %3918 = vmatprep.subr.mxu0 0.0
    %3919 = vmatpush1.xpose.msra.mxu0 0.0
    %3920 = vmatprep.subr.mxu0 0.0
    %3921 = vmatpush1.xpose.msra.mxu0 0.0
    %3922 = vmatprep.subr.mxu0 0.0
    %3923 = vmatpush1.xpose.msra.mxu0 0.0
    %3924 = vmatprep.subr.mxu0 0.0
    %3925 = vmatpush1.xpose.msra.mxu0 0.0
    %3926 = vmatprep.subr.mxu0 0.0
    %3927 = vmatpush1.xpose.msra.mxu0 0.0
    %3928 = vmatprep.subr.mxu0 0.0
    %3929 = vmatpush1.xpose.msra.mxu0 0.0
    %3930 = vmatprep.subr.mxu0 0.0
    %3931 = vmatpush1.xpose.msra.mxu0 0.0
    %3932 = vmatprep.subr.mxu0 0.0
    %3933 = vmatpush1.xpose.msra.mxu0 0.0
    %3934 = vmatprep.subr.mxu0 0.0
    %3935 = vmatpush1.xpose.msra.mxu0 0.0
    %3936 = vmatprep.subr.mxu0 0.0
    %3937 = vmatpush1.xpose.msra.mxu0 0.0
    %3938 = vmatprep.subr.mxu0 0.0
    %3939 = vmatpush1.xpose.msra.mxu0 0.0
    %3940 = vmatprep.subr.mxu0 0.0
    %3941 = vmatpush1.xpose.msra.mxu0 0.0
    %3942 = vmatprep.subr.mxu0 0.0
    %3943 = vmatpush1.xpose.msra.mxu0 0.0
    %3944 = vmatprep.subr.mxu0 0.0
    %3945 = vmatpush1.xpose.msra.mxu0 0.0
    %3946 = vmatprep.subr.mxu0 0.0
    %3947 = vmatpush1.xpose.msra.mxu0 0.0
    %3948 = vmatprep.subr.mxu0 0.0
    %3949 = vmatpush1.xpose.msra.mxu0 0.0
    %3950 = vmatprep.subr.mxu0 0.0
    %3951 = vmatpush1.xpose.msra.mxu0 0.0
    %3952 = vmatprep.subr.mxu0 0.0
    %3953 = vmatpush1.xpose.msra.mxu0 0.0
    %3954 = vmatprep.subr.mxu0 0.0
    %3955 = vmatpush1.xpose.msra.mxu0 0.0
    %3956 = vmatprep.subr.mxu0 0.0
    %3957 = vmatpush1.xpose.msra.mxu0 0.0
    %3958 = vmatprep.subr.mxu0 0.0
    %3959 = vmatpush1.xpose.msra.mxu0 0.0
    %3960 = vmatprep.subr.mxu0 0.0
    %3961 = vmatpush1.xpose.msra.mxu0 0.0
    %3962 = vmatprep.subr.mxu0 0.0
    %3963 = vmatpush1.xpose.msra.mxu0 0.0
    %3964 = vmatprep.subr.mxu0 0.0
    %3965 = vmatpush1.xpose.msra.mxu0 0.0
    %3966 = vmatprep.subr.mxu0 0.0
    %3967 = vmatpush1.xpose.msra.mxu0 0.0
    %3968 = vmatprep.subr.mxu0 0.0
    %3969 = vmatpush1.xpose.msra.mxu0 0.0
    %3970 = vmatprep.subr.mxu0 0.0
    %3971 = vmatpush1.xpose.msra.mxu0 0.0
    %3972 = vmatprep.subr.mxu0 0.0
    %3973 = vmatpush1.xpose.msra.mxu0 0.0
    %3974 = vmatprep.subr.mxu0 0.0
    %3975 = vmatpush1.xpose.msra.mxu0 0.0
    %3976 = vmatprep.mubr.f32.mxu0 0.0
    %3977 = vmatmul.mubr.f32.gmra.mrb[0].mxu0 %v3907
    %v3978 = vpop.f32.mrb[0].mxu0
    %v3979 = vadd.f32 0.0, %v3978
    %v3980 = vpop.f32.mrb[0].mxu0
    %3981 = vmatprep.mubr.f32.mxu0 0.0
    %3982 = vmatmul.mubr.f32.gmra.mrb[0].mxu0 %v3910
    %v3983 = vpop.f32.mrb[0].mxu0
    %v3984 = vadd.f32 0.0, %v3983
    %v3985 = vpop.f32.mrb[0].mxu0
    %3986 = vdwg.mxu0
    %v3987 = vmul.f32 %v3979, 0.35355338
    %v3988 = vmul.f32 %v3984, 0.35355338
    %v3989 = vadd.f32 %v3987, %v405
    %v3990 = vadd.f32 %v3988, %v406
    %v3991 = vsel %vm1828, %v3989, -inf
    %3992 = vmax.xlane.f32.xlu0 %v3991
    %v3993 = vpop.xlane.xlu0 %3992
    %v3994 = vsel %vm1828, %v3990, -inf
    %3995 = vmax.xlane.f32.xlu0 %v3994
    %v3996 = vpop.xlane.xlu0 %3995
    %v3997 = vsub.f32 %v3989, %v3993
    %v3998 = vsub.f32 %v3990, %v3996
    %v3999 = vmul.f32 %v3997, 1.442695
    %v4000 = vpow.pop %v3999
    %v4001 = vmul.f32 %v3998, 1.442695
    %v4002 = vpow.pop %v4001
    %v4003 = vsel %vm1828, %v4000, 0.0
    %4004 = vadd.xlane.f32.xlu0 %v4003
    %v4005 = vpop.xlane.xlu0 %4004
    %v4006 = vsel %vm1828, %v4002, 0.0
    %4007 = vadd.xlane.f32.xlu0 %v4006
    %v4008 = vpop.xlane.xlu0 %4007
    %v4009 = vrcp.pop %v4005
    %v4010 = vrcp.pop %v4008
    %v4011 = vmul.f32 %v4000, %v4009
    %v4012 = vmul.f32 %v4002, %v4010
    %v4013 = vmul.f32 %v3175, %v1974
    %v4014 = vmul.f32 %v3180, %v1974
    %4017 = vrot.lane.b32.xlu0 %v4013, 64
    %v4018 = vpop.permute.xlu0 %4017
    %4019 = vrot.lane.b32.xlu0 %v4014, 64
    %v4020 = vpop.permute.xlu0 %4019
    %v4024 = vsel %vm1828, %v4011, 0
    %v4027 = vsel %vm1828, %v4012, 0
    %4029 = vmatprep.subr.mxu0 0.0
    %4030 = vmatpush1.msra.mxu0 %v4018
    %4031 = vmatprep.subr.mxu0 0.0
    %4032 = vmatpush1.msra.mxu0 %v4020
    %4033 = vmatprep.subr.mxu0 0.0
    %4034 = vmatpush1.msra.mxu0 0.0
    %4035 = vmatprep.subr.mxu0 0.0
    %4036 = vmatpush1.msra.mxu0 0.0
    %4037 = vmatprep.subr.mxu0 0.0
    %4038 = vmatpush1.msra.mxu0 0.0
    %4039 = vmatprep.subr.mxu0 0.0
    %4040 = vmatpush1.msra.mxu0 0.0
    %4041 = vmatprep.subr.mxu0 0.0
    %4042 = vmatpush1.msra.mxu0 0.0
    %4043 = vmatprep.subr.mxu0 0.0
    %4044 = vmatpush1.msra.mxu0 0.0
    %4045 = vmatprep.subr.mxu0 0.0
    %4046 = vmatpush1.msra.mxu0 0.0
    %4047 = vmatprep.subr.mxu0 0.0
    %4048 = vmatpush1.msra.mxu0 0.0
    %4049 = vmatprep.subr.mxu0 0.0
    %4050 = vmatpush1.msra.mxu0 0.0
    %4051 = vmatprep.subr.mxu0 0.0
    %4052 = vmatpush1.msra.mxu0 0.0
    %4053 = vmatprep.subr.mxu0 0.0
    %4054 = vmatpush1.msra.mxu0 0.0
    %4055 = vmatprep.subr.mxu0 0.0
    %4056 = vmatpush1.msra.mxu0 0.0
    %4057 = vmatprep.subr.mxu0 0.0
    %4058 = vmatpush1.msra.mxu0 0.0
    %4059 = vmatprep.subr.mxu0 0.0
    %4060 = vmatpush1.msra.mxu0 0.0
    %4061 = vmatprep.subr.mxu0 0.0
    %4062 = vmatpush1.msra.mxu0 0.0
    %4063 = vmatprep.subr.mxu0 0.0
    %4064 = vmatpush1.msra.mxu0 0.0
    %4065 = vmatprep.subr.mxu0 0.0
    %4066 = vmatpush1.msra.mxu0 0.0
    %4067 = vmatprep.subr.mxu0 0.0
    %4068 = vmatpush1.msra.mxu0 0.0
    %4069 = vmatprep.subr.mxu0 0.0
    %4070 = vmatpush1.msra.mxu0 0.0
    %4071 = vmatprep.subr.mxu0 0.0
    %4072 = vmatpush1.msra.mxu0 0.0
    %4073 = vmatprep.subr.mxu0 0.0
    %4074 = vmatpush1.msra.mxu0 0.0
    %4075 = vmatprep.subr.mxu0 0.0
    %4076 = vmatpush1.msra.mxu0 0.0
    %4077 = vmatprep.subr.mxu0 0.0
    %4078 = vmatpush1.msra.mxu0 0.0
    %4079 = vmatprep.subr.mxu0 0.0
    %4080 = vmatpush1.msra.mxu0 0.0
    %4081 = vmatprep.subr.mxu0 0.0
    %4082 = vmatpush1.msra.mxu0 0.0
    %4083 = vmatprep.subr.mxu0 0.0
    %4084 = vmatpush1.msra.mxu0 0.0
    %4085 = vmatprep.subr.mxu0 0.0
    %4086 = vmatpush1.msra.mxu0 0.0
    %4087 = vmatprep.subr.mxu0 0.0
    %4088 = vmatpush1.msra.mxu0 0.0
    %4089 = vmatprep.subr.mxu0 0.0
    %4090 = vmatpush1.msra.mxu0 0.0
    %4091 = vmatprep.subr.mxu0 0.0
    %4092 = vmatpush1.msra.mxu0 0.0
    %4093 = vmatprep.mubr.f32.mxu0 0.0
    %4094 = vmatmul.mubr.f32.gmra.mrb[0].mxu0 %v4024
    %v4095 = vpop.f32.mrb[0].mxu0
    %v4096 = vadd.f32 0.0, %v4095
    %v4097 = vpop.f32.mrb[0].mxu0
    %4098 = vmatprep.mubr.f32.mxu0 0.0
    %4099 = vmatmul.mubr.f32.gmra.mrb[0].mxu0 %v4027
    %v4100 = vpop.f32.mrb[0].mxu0
    %v4101 = vadd.f32 0.0, %v4100
    %v4102 = vpop.f32.mrb[0].mxu0
    %4103 = vdwg.mxu0
    %4106 = vrot.lane.b32.xlu0 %v3902, 64
    %v4107 = vpop.permute.xlu0 %4106
    %4108 = vrot.lane.b32.xlu0 %v3903, 64
    %v4109 = vpop.permute.xlu0 %4108
    %v4113 = vsel %vm1828, %v3900, 0
    %v4116 = vsel %vm1828, %v3901, 0
    %4118 = vmatprep.subr.mxu0 0.0
    %4119 = vmatpush1.msra.mxu0 %v4107
    %4120 = vmatprep.subr.mxu0 0.0
    %4121 = vmatpush1.msra.mxu0 %v4109
    %4122 = vmatprep.subr.mxu0 0.0
    %4123 = vmatpush1.msra.mxu0 0.0
    %4124 = vmatprep.subr.mxu0 0.0
    %4125 = vmatpush1.msra.mxu0 0.0
    %4126 = vmatprep.subr.mxu0 0.0
    %4127 = vmatpush1.msra.mxu0 0.0
    %4128 = vmatprep.subr.mxu0 0.0
    %4129 = vmatpush1.msra.mxu0 0.0
    %4130 = vmatprep.subr.mxu0 0.0
    %4131 = vmatpush1.msra.mxu0 0.0
    %4132 = vmatprep.subr.mxu0 0.0
    %4133 = vmatpush1.msra.mxu0 0.0
    %4134 = vmatprep.subr.mxu0 0.0
    %4135 = vmatpush1.msra.mxu0 0.0
    %4136 = vmatprep.subr.mxu0 0.0
    %4137 = vmatpush1.msra.mxu0 0.0
    %4138 = vmatprep.subr.mxu0 0.0
    %4139 = vmatpush1.msra.mxu0 0.0
    %4140 = vmatprep.subr.mxu0 0.0
    %4141 = vmatpush1.msra.mxu0 0.0
    %4142 = vmatprep.subr.mxu0 0.0
    %4143 = vmatpush1.msra.mxu0 0.0
    %4144 = vmatprep.subr.mxu0 0.0
    %4145 = vmatpush1.msra.mxu0 0.0
    %4146 = vmatprep.subr.mxu0 0.0
    %4147 = vmatpush1.msra.mxu0 0.0
    %4148 = vmatprep.subr.mxu0 0.0
    %4149 = vmatpush1.msra.mxu0 0.0
    %4150 = vmatprep.subr.mxu0 0.0
    %4151 = vmatpush1.msra.mxu0 0.0
    %4152 = vmatprep.subr.mxu0 0.0
    %4153 = vmatpush1.msra.mxu0 0.0
    %4154 = vmatprep.subr.mxu0 0.0
    %4155 = vmatpush1.msra.mxu0 0.0
    %4156 = vmatprep.subr.mxu0 0.0
    %4157 = vmatpush1.msra.mxu0 0.0
    %4158 = vmatprep.subr.mxu0 0.0
    %4159 = vmatpush1.msra.mxu0 0.0
    %4160 = vmatprep.subr.mxu0 0.0
    %4161 = vmatpush1.msra.mxu0 0.0
    %4162 = vmatprep.subr.mxu0 0.0
    %4163 = vmatpush1.msra.mxu0 0.0
    %4164 = vmatprep.subr.mxu0 0.0
    %4165 = vmatpush1.msra.mxu0 0.0
    %4166 = vmatprep.subr.mxu0 0.0
    %4167 = vmatpush1.msra.mxu0 0.0
    %4168 = vmatprep.subr.mxu0 0.0
    %4169 = vmatpush1.msra.mxu0 0.0
    %4170 = vmatprep.subr.mxu0 0.0
    %4171 = vmatpush1.msra.mxu0 0.0
    %4172 = vmatprep.subr.mxu0 0.0
    %4173 = vmatpush1.msra.mxu0 0.0
    %4174 = vmatprep.subr.mxu0 0.0
    %4175 = vmatpush1.msra.mxu0 0.0
    %4176 = vmatprep.subr.mxu0 0.0
    %4177 = vmatpush1.msra.mxu0 0.0
    %4178 = vmatprep.subr.mxu0 0.0
    %4179 = vmatpush1.msra.mxu0 0.0
    %4180 = vmatprep.subr.mxu0 0.0
    %4181 = vmatpush1.msra.mxu0 0.0
    %4182 = vmatprep.mubr.f32.mxu0 0.0
    %4183 = vmatmul.mubr.f32.gmra.mrb[0].mxu0 %v4113
    %v4184 = vpop.f32.mrb[0].mxu0
    %v4185 = vadd.f32 %v4096, %v4184
    %v4186 = vpop.f32.mrb[0].mxu0
    %4187 = vmatprep.mubr.f32.mxu0 0.0
    %4188 = vmatmul.mubr.f32.gmra.mrb[0].mxu0 %v4116
    %v4189 = vpop.f32.mrb[0].mxu0
    %v4190 = vadd.f32 %v4101, %v4189
    %v4191 = vpop.f32.mrb[0].mxu0
    %4192 = vdwg.mxu0
    %v4193 = vmul.f32 %v3682, %v2162
    %v4194 = vmul.f32 %v3683, %v2162
    %v4196 = vsel %vm516, %v4193, 0
    %v4199 = vsel %vm516, %v4194, 0
    %4201 = vmatprep.subr.mxu0 0.0
    %4202 = vmatpush1.xpose.msra.mxu0 %v3797
    %4203 = vmatprep.subr.mxu0 0.0
    %4204 = vmatpush1.xpose.msra.mxu0 %v3799
    %4205 = vmatprep.subr.mxu0 0.0
    %4206 = vmatpush1.xpose.msra.mxu0 0.0
    %4207 = vmatprep.subr.mxu0 0.0
    %4208 = vmatpush1.xpose.msra.mxu0 0.0
    %4209 = vmatprep.subr.mxu0 0.0
    %4210 = vmatpush1.xpose.msra.mxu0 0.0
    %4211 = vmatprep.subr.mxu0 0.0
    %4212 = vmatpush1.xpose.msra.mxu0 0.0
    %4213 = vmatprep.subr.mxu0 0.0
    %4214 = vmatpush1.xpose.msra.mxu0 0.0
    %4215 = vmatprep.subr.mxu0 0.0
    %4216 = vmatpush1.xpose.msra.mxu0 0.0
    %4217 = vmatprep.subr.mxu0 0.0
    %4218 = vmatpush1.xpose.msra.mxu0 0.0
    %4219 = vmatprep.subr.mxu0 0.0
    %4220 = vmatpush1.xpose.msra.mxu0 0.0
    %4221 = vmatprep.subr.mxu0 0.0
    %4222 = vmatpush1.xpose.msra.mxu0 0.0
    %4223 = vmatprep.subr.mxu0 0.0
    %4224 = vmatpush1.xpose.msra.mxu0 0.0
    %4225 = vmatprep.subr.mxu0 0.0
    %4226 = vmatpush1.xpose.msra.mxu0 0.0
    %4227 = vmatprep.subr.mxu0 0.0
    %4228 = vmatpush1.xpose.msra.mxu0 0.0
    %4229 = vmatprep.subr.mxu0 0.0
    %4230 = vmatpush1.xpose.msra.mxu0 0.0
    %4231 = vmatprep.subr.mxu0 0.0
    %4232 = vmatpush1.xpose.msra.mxu0 0.0
    %4233 = vmatprep.subr.mxu0 0.0
    %4234 = vmatpush1.xpose.msra.mxu0 0.0
    %4235 = vmatprep.subr.mxu0 0.0
    %4236 = vmatpush1.xpose.msra.mxu0 0.0
    %4237 = vmatprep.subr.mxu0 0.0
    %4238 = vmatpush1.xpose.msra.mxu0 0.0
    %4239 = vmatprep.subr.mxu0 0.0
    %4240 = vmatpush1.xpose.msra.mxu0 0.0
    %4241 = vmatprep.subr.mxu0 0.0
    %4242 = vmatpush1.xpose.msra.mxu0 0.0
    %4243 = vmatprep.subr.mxu0 0.0
    %4244 = vmatpush1.xpose.msra.mxu0 0.0
    %4245 = vmatprep.subr.mxu0 0.0
    %4246 = vmatpush1.xpose.msra.mxu0 0.0
    %4247 = vmatprep.subr.mxu0 0.0
    %4248 = vmatpush1.xpose.msra.mxu0 0.0
    %4249 = vmatprep.subr.mxu0 0.0
    %4250 = vmatpush1.xpose.msra.mxu0 0.0
    %4251 = vmatprep.subr.mxu0 0.0
    %4252 = vmatpush1.xpose.msra.mxu0 0.0
    %4253 = vmatprep.subr.mxu0 0.0
    %4254 = vmatpush1.xpose.msra.mxu0 0.0
    %4255 = vmatprep.subr.mxu0 0.0
    %4256 = vmatpush1.xpose.msra.mxu0 0.0
    %4257 = vmatprep.subr.mxu0 0.0
    %4258 = vmatpush1.xpose.msra.mxu0 0.0
    %4259 = vmatprep.subr.mxu0 0.0
    %4260 = vmatpush1.xpose.msra.mxu0 0.0
    %4261 = vmatprep.subr.mxu0 0.0
    %4262 = vmatpush1.xpose.msra.mxu0 0.0
    %4263 = vmatprep.subr.mxu0 0.0
    %4264 = vmatpush1.xpose.msra.mxu0 0.0
    %4265 = vmatprep.mubr.f32.mxu0 0.0
    %4266 = vmatmul.mubr.f32.gmra.mrb[0].mxu0 %v4196
    %v4267 = vpop.f32.mrb[0].mxu0
    %v4268 = vadd.f32 0.0, %v4267
    %v4269 = vpop.f32.mrb[0].mxu0
    %4270 = vmatprep.mubr.f32.mxu0 0.0
    %4271 = vmatmul.mubr.f32.gmra.mrb[0].mxu0 %v4199
    %v4272 = vpop.f32.mrb[0].mxu0
    %v4273 = vadd.f32 0.0, %v4272
    %v4274 = vpop.f32.mrb[0].mxu0
    %4275 = vdwg.mxu0
    %v4276 = vmul.f32 %v4268, 0.35355338
    %v4277 = vmul.f32 %v4273, 0.35355338
    %v4278 = vadd.f32 %v4276, %v405
    %v4279 = vadd.f32 %v4277, %v406
    %v4280 = vsel %vm1828, %v4278, -inf
    %4281 = vmax.xlane.f32.xlu0 %v4280
    %v4282 = vpop.xlane.xlu0 %4281
    %v4283 = vsel %vm1828, %v4279, -inf
    %4284 = vmax.xlane.f32.xlu0 %v4283
    %v4285 = vpop.xlane.xlu0 %4284
    %v4286 = vsub.f32 %v4278, %v4282
    %v4287 = vsub.f32 %v4279, %v4285
    %v4288 = vmul.f32 %v4286, 1.442695
    %v4289 = vpow.pop %v4288
    %v4290 = vmul.f32 %v4287, 1.442695
    %v4291 = vpow.pop %v4290
    %v4292 = vsel %vm1828, %v4289, 0.0
    %4293 = vadd.xlane.f32.xlu0 %v4292
    %v4294 = vpop.xlane.xlu0 %4293
    %v4295 = vsel %vm1828, %v4291, 0.0
    %4296 = vadd.xlane.f32.xlu0 %v4295
    %v4297 = vpop.xlane.xlu0 %4296
    %v4298 = vrcp.pop %v4294
    %v4299 = vrcp.pop %v4297
    %v4300 = vmul.f32 %v4289, %v4298
    %v4301 = vmul.f32 %v4291, %v4299
    %v4302 = vmul.f32 %v3175, %v2274
    %v4303 = vmul.f32 %v3180, %v2274
    %4306 = vrot.lane.b32.xlu0 %v4302, 64
    %v4307 = vpop.permute.xlu0 %4306
    %4308 = vrot.lane.b32.xlu0 %v4303, 64
    %v4309 = vpop.permute.xlu0 %4308
    %v4313 = vsel %vm1828, %v4300, 0
    %v4316 = vsel %vm1828, %v4301, 0
    %4318 = vmatprep.subr.mxu0 0.0
    %4319 = vmatpush1.msra.mxu0 %v4307
    %4320 = vmatprep.subr.mxu0 0.0
    %4321 = vmatpush1.msra.mxu0 %v4309
    %4322 = vmatprep.subr.mxu0 0.0
    %4323 = vmatpush1.msra.mxu0 0.0
    %4324 = vmatprep.subr.mxu0 0.0
    %4325 = vmatpush1.msra.mxu0 0.0
    %4326 = vmatprep.subr.mxu0 0.0
    %4327 = vmatpush1.msra.mxu0 0.0
    %4328 = vmatprep.subr.mxu0 0.0
    %4329 = vmatpush1.msra.mxu0 0.0
    %4330 = vmatprep.subr.mxu0 0.0
    %4331 = vmatpush1.msra.mxu0 0.0
    %4332 = vmatprep.subr.mxu0 0.0
    %4333 = vmatpush1.msra.mxu0 0.0
    %4334 = vmatprep.subr.mxu0 0.0
    %4335 = vmatpush1.msra.mxu0 0.0
    %4336 = vmatprep.subr.mxu0 0.0
    %4337 = vmatpush1.msra.mxu0 0.0
    %4338 = vmatprep.subr.mxu0 0.0
    %4339 = vmatpush1.msra.mxu0 0.0
    %4340 = vmatprep.subr.mxu0 0.0
    %4341 = vmatpush1.msra.mxu0 0.0
    %4342 = vmatprep.subr.mxu0 0.0
    %4343 = vmatpush1.msra.mxu0 0.0
    %4344 = vmatprep.subr.mxu0 0.0
    %4345 = vmatpush1.msra.mxu0 0.0
    %4346 = vmatprep.subr.mxu0 0.0
    %4347 = vmatpush1.msra.mxu0 0.0
    %4348 = vmatprep.subr.mxu0 0.0
    %4349 = vmatpush1.msra.mxu0 0.0
    %4350 = vmatprep.subr.mxu0 0.0
    %4351 = vmatpush1.msra.mxu0 0.0
    %4352 = vmatprep.subr.mxu0 0.0
    %4353 = vmatpush1.msra.mxu0 0.0
    %4354 = vmatprep.subr.mxu0 0.0
    %4355 = vmatpush1.msra.mxu0 0.0
    %4356 = vmatprep.subr.mxu0 0.0
    %4357 = vmatpush1.msra.mxu0 0.0
    %4358 = vmatprep.subr.mxu0 0.0
    %4359 = vmatpush1.msra.mxu0 0.0
    %4360 = vmatprep.subr.mxu0 0.0
    %4361 = vmatpush1.msra.mxu0 0.0
    %4362 = vmatprep.subr.mxu0 0.0
    %4363 = vmatpush1.msra.mxu0 0.0
    %4364 = vmatprep.subr.mxu0 0.0
    %4365 = vmatpush1.msra.mxu0 0.0
    %4366 = vmatprep.subr.mxu0 0.0
    %4367 = vmatpush1.msra.mxu0 0.0
    %4368 = vmatprep.subr.mxu0 0.0
    %4369 = vmatpush1.msra.mxu0 0.0
    %4370 = vmatprep.subr.mxu0 0.0
    %4371 = vmatpush1.msra.mxu0 0.0
    %4372 = vmatprep.subr.mxu0 0.0
    %4373 = vmatpush1.msra.mxu0 0.0
    %4374 = vmatprep.subr.mxu0 0.0
    %4375 = vmatpush1.msra.mxu0 0.0
    %4376 = vmatprep.subr.mxu0 0.0
    %4377 = vmatpush1.msra.mxu0 0.0
    %4378 = vmatprep.subr.mxu0 0.0
    %4379 = vmatpush1.msra.mxu0 0.0
    %4380 = vmatprep.subr.mxu0 0.0
    %4381 = vmatpush1.msra.mxu0 0.0
    %4382 = vmatprep.mubr.f32.mxu0 0.0
    %4383 = vmatmul.mubr.f32.gmra.mrb[0].mxu0 %v4313
    %v4384 = vpop.f32.mrb[0].mxu0
    %v4385 = vadd.f32 0.0, %v4384
    %v4386 = vpop.f32.mrb[0].mxu0
    %4387 = vmatprep.mubr.f32.mxu0 0.0
    %4388 = vmatmul.mubr.f32.gmra.mrb[0].mxu0 %v4316
    %v4389 = vpop.f32.mrb[0].mxu0
    %v4390 = vadd.f32 0.0, %v4389
    %v4391 = vpop.f32.mrb[0].mxu0
    %4392 = vdwg.mxu0
    %v4393 = vadd.f32 %v4185, %v4385
    %v4394 = vadd.f32 %v4190, %v4390
    %v4395 = vmul.f32 %v3682, %v2375
    %v4396 = vmul.f32 %v3683, %v2375
    %v4398 = vsel %vm516, %v4395, 0
    %v4401 = vsel %vm516, %v4396, 0
    %4403 = vmatprep.subr.mxu0 0.0
    %4404 = vmatpush1.xpose.msra.mxu0 %v3797
    %4405 = vmatprep.subr.mxu0 0.0
    %4406 = vmatpush1.xpose.msra.mxu0 %v3799
    %4407 = vmatprep.subr.mxu0 0.0
    %4408 = vmatpush1.xpose.msra.mxu0 0.0
    %4409 = vmatprep.subr.mxu0 0.0
    %4410 = vmatpush1.xpose.msra.mxu0 0.0
    %4411 = vmatprep.subr.mxu0 0.0
    %4412 = vmatpush1.xpose.msra.mxu0 0.0
    %4413 = vmatprep.subr.mxu0 0.0
    %4414 = vmatpush1.xpose.msra.mxu0 0.0
    %4415 = vmatprep.subr.mxu0 0.0
    %4416 = vmatpush1.xpose.msra.mxu0 0.0
    %4417 = vmatprep.subr.mxu0 0.0
    %4418 = vmatpush1.xpose.msra.mxu0 0.0
    %4419 = vmatprep.subr.mxu0 0.0
    %4420 = vmatpush1.xpose.msra.mxu0 0.0
    %4421 = vmatprep.subr.mxu0 0.0
    %4422 = vmatpush1.xpose.msra.mxu0 0.0
    %4423 = vmatprep.subr.mxu0 0.0
    %4424 = vmatpush1.xpose.msra.mxu0 0.0
    %4425 = vmatprep.subr.mxu0 0.0
    %4426 = vmatpush1.xpose.msra.mxu0 0.0
    %4427 = vmatprep.subr.mxu0 0.0
    %4428 = vmatpush1.xpose.msra.mxu0 0.0
    %4429 = vmatprep.subr.mxu0 0.0
    %4430 = vmatpush1.xpose.msra.mxu0 0.0
    %4431 = vmatprep.subr.mxu0 0.0
    %4432 = vmatpush1.xpose.msra.mxu0 0.0
    %4433 = vmatprep.subr.mxu0 0.0
    %4434 = vmatpush1.xpose.msra.mxu0 0.0
    %4435 = vmatprep.subr.mxu0 0.0
    %4436 = vmatpush1.xpose.msra.mxu0 0.0
    %4437 = vmatprep.subr.mxu0 0.0
    %4438 = vmatpush1.xpose.msra.mxu0 0.0
    %4439 = vmatprep.subr.mxu0 0.0
    %4440 = vmatpush1.xpose.msra.mxu0 0.0
    %4441 = vmatprep.subr.mxu0 0.0
    %4442 = vmatpush1.xpose.msra.mxu0 0.0
    %4443 = vmatprep.subr.mxu0 0.0
    %4444 = vmatpush1.xpose.msra.mxu0 0.0
    %4445 = vmatprep.subr.mxu0 0.0
    %4446 = vmatpush1.xpose.msra.mxu0 0.0
    %4447 = vmatprep.subr.mxu0 0.0
    %4448 = vmatpush1.xpose.msra.mxu0 0.0
    %4449 = vmatprep.subr.mxu0 0.0
    %4450 = vmatpush1.xpose.msra.mxu0 0.0
    %4451 = vmatprep.subr.mxu0 0.0
    %4452 = vmatpush1.xpose.msra.mxu0 0.0
    %4453 = vmatprep.subr.mxu0 0.0
    %4454 = vmatpush1.xpose.msra.mxu0 0.0
    %4455 = vmatprep.subr.mxu0 0.0
    %4456 = vmatpush1.xpose.msra.mxu0 0.0
    %4457 = vmatprep.subr.mxu0 0.0
    %4458 = vmatpush1.xpose.msra.mxu0 0.0
    %4459 = vmatprep.subr.mxu0 0.0
    %4460 = vmatpush1.xpose.msra.mxu0 0.0
    %4461 = vmatprep.subr.mxu0 0.0
    %4462 = vmatpush1.xpose.msra.mxu0 0.0
    %4463 = vmatprep.subr.mxu0 0.0
    %4464 = vmatpush1.xpose.msra.mxu0 0.0
    %4465 = vmatprep.subr.mxu0 0.0
    %4466 = vmatpush1.xpose.msra.mxu0 0.0
    %4467 = vmatprep.mubr.f32.mxu0 0.0
    %4468 = vmatmul.mubr.f32.gmra.mrb[0].mxu0 %v4398
    %v4469 = vpop.f32.mrb[0].mxu0
    %v4470 = vadd.f32 0.0, %v4469
    %v4471 = vpop.f32.mrb[0].mxu0
    %4472 = vmatprep.mubr.f32.mxu0 0.0
    %4473 = vmatmul.mubr.f32.gmra.mrb[0].mxu0 %v4401
    %v4474 = vpop.f32.mrb[0].mxu0
    %v4475 = vadd.f32 0.0, %v4474
    %v4476 = vpop.f32.mrb[0].mxu0
    %4477 = vdwg.mxu0
    %v4478 = vmul.f32 %v4470, 0.35355338
    %v4479 = vmul.f32 %v4475, 0.35355338
    %v4480 = vadd.f32 %v4478, %v405
    %v4481 = vadd.f32 %v4479, %v406
    %v4482 = vsel %vm1828, %v4480, -inf
    %4483 = vmax.xlane.f32.xlu0 %v4482
    %v4484 = vpop.xlane.xlu0 %4483
    %v4485 = vsel %vm1828, %v4481, -inf
    %4486 = vmax.xlane.f32.xlu0 %v4485
    %v4487 = vpop.xlane.xlu0 %4486
    %v4488 = vsub.f32 %v4480, %v4484
    %v4489 = vsub.f32 %v4481, %v4487
    %v4490 = vmul.f32 %v4488, 1.442695
    %v4491 = vpow.pop %v4490
    %v4492 = vmul.f32 %v4489, 1.442695
    %v4493 = vpow.pop %v4492
    %v4494 = vsel %vm1828, %v4491, 0.0
    %4495 = vadd.xlane.f32.xlu0 %v4494
    %v4496 = vpop.xlane.xlu0 %4495
    %v4497 = vsel %vm1828, %v4493, 0.0
    %4498 = vadd.xlane.f32.xlu0 %v4497
    %v4499 = vpop.xlane.xlu0 %4498
    %v4500 = vrcp.pop %v4496
    %v4501 = vrcp.pop %v4499
    %v4502 = vmul.f32 %v4491, %v4500
    %v4503 = vmul.f32 %v4493, %v4501
    %v4504 = vmul.f32 %v3175, %v2487
    %v4505 = vmul.f32 %v3180, %v2487
    %4508 = vrot.lane.b32.xlu0 %v4504, 64
    %v4509 = vpop.permute.xlu0 %4508
    %4510 = vrot.lane.b32.xlu0 %v4505, 64
    %v4511 = vpop.permute.xlu0 %4510
    %v4515 = vsel %vm1828, %v4502, 0
    %v4518 = vsel %vm1828, %v4503, 0
    %4520 = vmatprep.subr.mxu0 0.0
    %4521 = vmatpush1.msra.mxu0 %v4509
    %4522 = vmatprep.subr.mxu0 0.0
    %4523 = vmatpush1.msra.mxu0 %v4511
    %4524 = vmatprep.subr.mxu0 0.0
    %4525 = vmatpush1.msra.mxu0 0.0
    %4526 = vmatprep.subr.mxu0 0.0
    %4527 = vmatpush1.msra.mxu0 0.0
    %4528 = vmatprep.subr.mxu0 0.0
    %4529 = vmatpush1.msra.mxu0 0.0
    %4530 = vmatprep.subr.mxu0 0.0
    %4531 = vmatpush1.msra.mxu0 0.0
    %4532 = vmatprep.subr.mxu0 0.0
    %4533 = vmatpush1.msra.mxu0 0.0
    %4534 = vmatprep.subr.mxu0 0.0
    %4535 = vmatpush1.msra.mxu0 0.0
    %4536 = vmatprep.subr.mxu0 0.0
    %4537 = vmatpush1.msra.mxu0 0.0
    %4538 = vmatprep.subr.mxu0 0.0
    %4539 = vmatpush1.msra.mxu0 0.0
    %4540 = vmatprep.subr.mxu0 0.0
    %4541 = vmatpush1.msra.mxu0 0.0
    %4542 = vmatprep.subr.mxu0 0.0
    %4543 = vmatpush1.msra.mxu0 0.0
    %4544 = vmatprep.subr.mxu0 0.0
    %4545 = vmatpush1.msra.mxu0 0.0
    %4546 = vmatprep.subr.mxu0 0.0
    %4547 = vmatpush1.msra.mxu0 0.0
    %4548 = vmatprep.subr.mxu0 0.0
    %4549 = vmatpush1.msra.mxu0 0.0
    %4550 = vmatprep.subr.mxu0 0.0
    %4551 = vmatpush1.msra.mxu0 0.0
    %4552 = vmatprep.subr.mxu0 0.0
    %4553 = vmatpush1.msra.mxu0 0.0
    %4554 = vmatprep.subr.mxu0 0.0
    %4555 = vmatpush1.msra.mxu0 0.0
    %4556 = vmatprep.subr.mxu0 0.0
    %4557 = vmatpush1.msra.mxu0 0.0
    %4558 = vmatprep.subr.mxu0 0.0
    %4559 = vmatpush1.msra.mxu0 0.0
    %4560 = vmatprep.subr.mxu0 0.0
    %4561 = vmatpush1.msra.mxu0 0.0
    %4562 = vmatprep.subr.mxu0 0.0
    %4563 = vmatpush1.msra.mxu0 0.0
    %4564 = vmatprep.subr.mxu0 0.0
    %4565 = vmatpush1.msra.mxu0 0.0
    %4566 = vmatprep.subr.mxu0 0.0
    %4567 = vmatpush1.msra.mxu0 0.0
    %4568 = vmatprep.subr.mxu0 0.0
    %4569 = vmatpush1.msra.mxu0 0.0
    %4570 = vmatprep.subr.mxu0 0.0
    %4571 = vmatpush1.msra.mxu0 0.0
    %4572 = vmatprep.subr.mxu0 0.0
    %4573 = vmatpush1.msra.mxu0 0.0
    %4574 = vmatprep.subr.mxu0 0.0
    %4575 = vmatpush1.msra.mxu0 0.0
    %4576 = vmatprep.subr.mxu0 0.0
    %4577 = vmatpush1.msra.mxu0 0.0
    %4578 = vmatprep.subr.mxu0 0.0
    %4579 = vmatpush1.msra.mxu0 0.0
    %4580 = vmatprep.subr.mxu0 0.0
    %4581 = vmatpush1.msra.mxu0 0.0
    %4582 = vmatprep.subr.mxu0 0.0
    %4583 = vmatpush1.msra.mxu0 0.0
    %4584 = vmatprep.mubr.f32.mxu0 0.0
    %4585 = vmatmul.mubr.f32.gmra.mrb[0].mxu0 %v4515
    %v4586 = vpop.f32.mrb[0].mxu0
    %v4587 = vadd.f32 0.0, %v4586
    %v4588 = vpop.f32.mrb[0].mxu0
    %4589 = vmatprep.mubr.f32.mxu0 0.0
    %4590 = vmatmul.mubr.f32.gmra.mrb[0].mxu0 %v4518
    %v4591 = vpop.f32.mrb[0].mxu0
    %v4592 = vadd.f32 0.0, %v4591
    %v4593 = vpop.f32.mrb[0].mxu0
    %4594 = vdwg.mxu0
    %v4595 = vadd.f32 %v4393, %v4587
    %v4596 = vadd.f32 %v4394, %v4592
    %s4597 = scalar_lea.vmem %s53, 32
    %v4598 = vld [vmem:[%s4597] sm:$0xff]
    %v4599 = vld [vmem:[%s4597 + $0x8] sm:$0xff]
    %v4600 = vld [vmem:[%s4597 + $0x10] sm:$0xff]
    %v4601 = vld [vmem:[%s4597 + $0x18] sm:$0xff]
    %s4602 = scalar_lea.vmem [#allocation22], 1
    %v4603 = vld [vmem:[%s4602] sm:$0x1]
    %v4605 = vlaneseq
    %v4606 = vshrl.u32 %v4605, 7
    %v4607 = vsub.s32 0, %v4606
    %v4608 = vrot.slane %v4603, %v4607
    %v4611 = vsel %vm516, %v4595, 0
    %v4614 = vsel %vm516, %v4596, 0
    %4616 = vmatprep.subr.mxu0 0.0
    %4617 = vmatpush1.msra.mxu0 %v4598
    %4618 = vmatprep.subr.mxu0 0.0
    %4619 = vmatpush1.msra.mxu0 %v4599
    %4620 = vmatprep.subr.mxu0 0.0
    %4621 = vmatpush1.msra.mxu0 %v4600
    %4622 = vmatprep.subr.mxu0 0.0
    %4623 = vmatpush1.msra.mxu0 %v4601
    %4624 = vmatprep.subr.mxu0 0.0
    %4625 = vmatpush1.msra.mxu0 0.0
    %4626 = vmatprep.subr.mxu0 0.0
    %4627 = vmatpush1.msra.mxu0 0.0
    %4628 = vmatprep.subr.mxu0 0.0
    %4629 = vmatpush1.msra.mxu0 0.0
    %4630 = vmatprep.subr.mxu0 0.0
    %4631 = vmatpush1.msra.mxu0 0.0
    %4632 = vmatprep.subr.mxu0 0.0
    %4633 = vmatpush1.msra.mxu0 0.0
    %4634 = vmatprep.subr.mxu0 0.0
    %4635 = vmatpush1.msra.mxu0 0.0
    %4636 = vmatprep.subr.mxu0 0.0
    %4637 = vmatpush1.msra.mxu0 0.0
    %4638 = vmatprep.subr.mxu0 0.0
    %4639 = vmatpush1.msra.mxu0 0.0
    %4640 = vmatprep.subr.mxu0 0.0
    %4641 = vmatpush1.msra.mxu0 0.0
    %4642 = vmatprep.subr.mxu0 0.0
    %4643 = vmatpush1.msra.mxu0 0.0
    %4644 = vmatprep.subr.mxu0 0.0
    %4645 = vmatpush1.msra.mxu0 0.0
    %4646 = vmatprep.subr.mxu0 0.0
    %4647 = vmatpush1.msra.mxu0 0.0
    %4648 = vmatprep.subr.mxu0 0.0
    %4649 = vmatpush1.msra.mxu0 0.0
    %4650 = vmatprep.subr.mxu0 0.0
    %4651 = vmatpush1.msra.mxu0 0.0
    %4652 = vmatprep.subr.mxu0 0.0
    %4653 = vmatpush1.msra.mxu0 0.0
    %4654 = vmatprep.subr.mxu0 0.0
    %4655 = vmatpush1.msra.mxu0 0.0
    %4656 = vmatprep.subr.mxu0 0.0
    %4657 = vmatpush1.msra.mxu0 0.0
    %4658 = vmatprep.subr.mxu0 0.0
    %4659 = vmatpush1.msra.mxu0 0.0
    %4660 = vmatprep.subr.mxu0 0.0
    %4661 = vmatpush1.msra.mxu0 0.0
    %4662 = vmatprep.subr.mxu0 0.0
    %4663 = vmatpush1.msra.mxu0 0.0
    %4664 = vmatprep.subr.mxu0 0.0
    %4665 = vmatpush1.msra.mxu0 0.0
    %4666 = vmatprep.subr.mxu0 0.0
    %4667 = vmatpush1.msra.mxu0 0.0
    %4668 = vmatprep.subr.mxu0 0.0
    %4669 = vmatpush1.msra.mxu0 0.0
    %4670 = vmatprep.subr.mxu0 0.0
    %4671 = vmatpush1.msra.mxu0 0.0
    %4672 = vmatprep.subr.mxu0 0.0
    %4673 = vmatpush1.msra.mxu0 0.0
    %4674 = vmatprep.subr.mxu0 0.0
    %4675 = vmatpush1.msra.mxu0 0.0
    %4676 = vmatprep.subr.mxu0 0.0
    %4677 = vmatpush1.msra.mxu0 0.0
    %4678 = vmatprep.subr.mxu0 0.0
    %4679 = vmatpush1.msra.mxu0 0.0
    %4680 = vmatprep.mubr.f32.mxu0 0.0
    %4681 = vmatmul.mubr.f32.gmra.mrb[0].mxu0 %v4611
    %v4682 = vpop.f32.mrb[0].mxu0
    %v4683 = vadd.f32 %v4608, %v4682
    %v4684 = vpop.f32.mrb[0].mxu0
    %4685 = vmatprep.mubr.f32.mxu0 0.0
    %4686 = vmatmul.mubr.f32.gmra.mrb[0].mxu0 %v4614
    %v4687 = vpop.f32.mrb[0].mxu0
    %v4688 = vadd.f32 %v4608, %v4687
    %v4689 = vpop.f32.mrb[0].mxu0
    %4690 = vdwg.mxu0
    %v4691 = vmul.f32 %v3039, %v4683
    %v4692 = vmul.f32 %v3045, %v4688
    %v4693 = vadd.f32 %v2948, %v4691
    %v4694 = vadd.f32 %v2949, %v4692
    %v4695 = vsel %vm516, %v4693, 0.0
    %4696 = vadd.xlane.f32.xlu0 %v4695
    %v4697 = vpop.xlane.xlu0 %4696
    %v4698 = vsel %vm516, %v4694, 0.0
    %4699 = vadd.xlane.f32.xlu0 %v4698
    %v4700 = vpop.xlane.xlu0 %4699
    %v4701 = vmul.f32 %v4697, %v993
    %v4702 = vmul.f32 %v4700, %v993
    %v4703 = vsub.f32 %v4693, %v4701
    %v4704 = vsub.f32 %v4694, %v4702
    %v4705 = vmul.f32 %v4703, %v4703
    %v4706 = vmul.f32 %v4704, %v4704
    %v4707 = vsel %vm516, %v4705, 0.0
    %4708 = vadd.xlane.f32.xlu0 %v4707
    %v4709 = vpop.xlane.xlu0 %4708
    %v4710 = vsel %vm516, %v4706, 0.0
    %4711 = vadd.xlane.f32.xlu0 %v4710
    %v4712 = vpop.xlane.xlu0 %4711
    %v4713 = vmul.f32 %v4709, %v993
    %v4714 = vmul.f32 %v4712, %v993
    %v4715 = vadd.f32 %v4713, 1e-06
    %v4716 = vadd.f32 %v4714, 1e-06
    %v4717 = vrsqrt.pop %v4715
    %v4718 = vrsqrt.pop %v4716
    %v4719 = vmul.f32 %v4703, %v4717
    %v4720 = vmul.f32 %v4704, %v4718
    %4721 = vrot.lane.b32.xlu0 %v3075, 32
    %v4722 = vpop.permute.xlu0 %4721
    %4723 = vrot.lane.b32.xlu0 %v3076, 32
    %v4724 = vpop.permute.xlu0 %4723
    %v4727 = vmul.f32 %v4719, %v4722
    %v4728 = vmul.f32 %v4720, %v4724
    %4731 = vrot.lane.b32.xlu0 %v3041, 96
    %v4732 = vpop.permute.xlu0 %4731
    %4733 = vrot.lane.b32.xlu0 %v3047, 96
    %v4734 = vpop.permute.xlu0 %4733
    %v4737 = vadd.f32 %v4727, %v4732
    %v4738 = vadd.f32 %v4728, %v4734
    %s4739 = scalar_lea.vmem %s57, 32
    %v4740 = vld [vmem:[%s4739] sm:$0xff]
    %v4741 = vld [vmem:[%s4739 + $0x8] sm:$0xff]
    %v4742 = vld [vmem:[%s4739 + $0x10] sm:$0xff]
    %v4743 = vld [vmem:[%s4739 + $0x18] sm:$0xff]
    %s4744 = scalar_lea.vmem [#allocation24], 1
    %v4745 = vld [vmem:[%s4744] sm:$0x1]
    %v4747 = vlaneseq
    %v4748 = vshrl.u32 %v4747, 7
    %v4749 = vsub.s32 0, %v4748
    %v4750 = vrot.slane %v4745, %v4749
    %v4753 = vsel %vm516, %v4737, 0
    %v4756 = vsel %vm516, %v4738, 0
    %4758 = vmatprep.subr.mxu0 0.0
    %4759 = vmatpush1.msra.mxu0 %v4740
    %4760 = vmatprep.subr.mxu0 0.0
    %4761 = vmatpush1.msra.mxu0 %v4741
    %4762 = vmatprep.subr.mxu0 0.0
    %4763 = vmatpush1.msra.mxu0 %v4742
    %4764 = vmatprep.subr.mxu0 0.0
    %4765 = vmatpush1.msra.mxu0 %v4743
    %4766 = vmatprep.subr.mxu0 0.0
    %4767 = vmatpush1.msra.mxu0 0.0
    %4768 = vmatprep.subr.mxu0 0.0
    %4769 = vmatpush1.msra.mxu0 0.0
    %4770 = vmatprep.subr.mxu0 0.0
    %4771 = vmatpush1.msra.mxu0 0.0
    %4772 = vmatprep.subr.mxu0 0.0
    %4773 = vmatpush1.msra.mxu0 0.0
    %4774 = vmatprep.subr.mxu0 0.0
    %4775 = vmatpush1.msra.mxu0 0.0
    %4776 = vmatprep.subr.mxu0 0.0
    %4777 = vmatpush1.msra.mxu0 0.0
    %4778 = vmatprep.subr.mxu0 0.0
    %4779 = vmatpush1.msra.mxu0 0.0
    %4780 = vmatprep.subr.mxu0 0.0
    %4781 = vmatpush1.msra.mxu0 0.0
    %4782 = vmatprep.subr.mxu0 0.0
    %4783 = vmatpush1.msra.mxu0 0.0
    %4784 = vmatprep.subr.mxu0 0.0
    %4785 = vmatpush1.msra.mxu0 0.0
    %4786 = vmatprep.subr.mxu0 0.0
    %4787 = vmatpush1.msra.mxu0 0.0
    %4788 = vmatprep.subr.mxu0 0.0
    %4789 = vmatpush1.msra.mxu0 0.0
    %4790 = vmatprep.subr.mxu0 0.0
    %4791 = vmatpush1.msra.mxu0 0.0
    %4792 = vmatprep.subr.mxu0 0.0
    %4793 = vmatpush1.msra.mxu0 0.0
    %4794 = vmatprep.subr.mxu0 0.0
    %4795 = vmatpush1.msra.mxu0 0.0
    %4796 = vmatprep.subr.mxu0 0.0
    %4797 = vmatpush1.msra.mxu0 0.0
    %4798 = vmatprep.subr.mxu0 0.0
    %4799 = vmatpush1.msra.mxu0 0.0
    %4800 = vmatprep.subr.mxu0 0.0
    %4801 = vmatpush1.msra.mxu0 0.0
    %4802 = vmatprep.subr.mxu0 0.0
    %4803 = vmatpush1.msra.mxu0 0.0
    %4804 = vmatprep.subr.mxu0 0.0
    %4805 = vmatpush1.msra.mxu0 0.0
    %4806 = vmatprep.subr.mxu0 0.0
    %4807 = vmatpush1.msra.mxu0 0.0
    %4808 = vmatprep.subr.mxu0 0.0
    %4809 = vmatpush1.msra.mxu0 0.0
    %4810 = vmatprep.subr.mxu0 0.0
    %4811 = vmatpush1.msra.mxu0 0.0
    %4812 = vmatprep.subr.mxu0 0.0
    %4813 = vmatpush1.msra.mxu0 0.0
    %4814 = vmatprep.subr.mxu0 0.0
    %4815 = vmatpush1.msra.mxu0 0.0
    %4816 = vmatprep.subr.mxu0 0.0
    %4817 = vmatpush1.msra.mxu0 0.0
    %4818 = vmatprep.subr.mxu0 0.0
    %4819 = vmatpush1.msra.mxu0 0.0
    %4820 = vmatprep.subr.mxu0 0.0
    %4821 = vmatpush1.msra.mxu0 0.0
    %4822 = vmatprep.mubr.f32.mxu0 0.0
    %4823 = vmatmul.mubr.f32.gmra.mrb[0].mxu0 %v4753
    %v4824 = vpop.f32.mrb[0].mxu0
    %v4825 = vadd.f32 %v4750, %v4824
    %v4826 = vpop.f32.mrb[0].mxu0
    %4827 = vmatprep.mubr.f32.mxu0 0.0
    %4828 = vmatmul.mubr.f32.gmra.mrb[0].mxu0 %v4756
    %v4829 = vpop.f32.mrb[0].mxu0
    %v4830 = vadd.f32 %v4750, %v4829
    %v4831 = vpop.f32.mrb[0].mxu0
    %4832 = vdwg.mxu0
    %v4833 = vmul.f32 %v4825, 0.5
    %v4834 = vmul.f32 %v4830, 0.5
    %v4835 = vmul.f32 %v4825, 0.044715
    %v4836 = vmul.f32 %v4830, 0.044715
    %v4837 = vmul.f32 %v4835, %v4825
    %v4838 = vmul.f32 %v4836, %v4830
    %v4839 = vmul.f32 %v4837, %v4825
    %v4840 = vmul.f32 %v4838, %v4830
    %v4841 = vadd.f32 %v4825, %v4839
    %v4842 = vadd.f32 %v4830, %v4840
    %v4843 = vmul.f32 %v4841, 0.7978846
    %v4844 = vmul.f32 %v4842, 0.7978846
    %v4845 = vtanh.pop %v4843
    %v4846 = vtanh.pop %v4844
    %v4847 = vadd.f32 %v4845, 1.0
    %v4848 = vadd.f32 %v4846, 1.0
    %v4849 = vmul.f32 %v4833, %v4847
    %v4850 = vmul.f32 %v4834, %v4848
    %s4851 = scalar_lea.vmem %s61, 128
    %v4852 = vld [vmem:[%s4851] sm:$0xff]
    %v4853 = vld [vmem:[%s4851 + $0x8] sm:$0xff]
    %v4854 = vld [vmem:[%s4851 + $0x10] sm:$0xff]
    %v4855 = vld [vmem:[%s4851 + $0x18] sm:$0xff]
    %v4856 = vld [vmem:[%s4851 + $0x20] sm:$0xff]
    %v4857 = vld [vmem:[%s4851 + $0x28] sm:$0xff]
    %v4858 = vld [vmem:[%s4851 + $0x30] sm:$0xff]
    %v4859 = vld [vmem:[%s4851 + $0x38] sm:$0xff]
    %v4860 = vld [vmem:[%s4851 + $0x40] sm:$0xff]
    %v4861 = vld [vmem:[%s4851 + $0x48] sm:$0xff]
    %v4862 = vld [vmem:[%s4851 + $0x50] sm:$0xff]
    %v4863 = vld [vmem:[%s4851 + $0x58] sm:$0xff]
    %v4864 = vld [vmem:[%s4851 + $0x60] sm:$0xff]
    %v4865 = vld [vmem:[%s4851 + $0x68] sm:$0xff]
    %v4866 = vld [vmem:[%s4851 + $0x70] sm:$0xff]
    %v4867 = vld [vmem:[%s4851 + $0x78] sm:$0xff]
    %s4868 = scalar_lea.vmem [#allocation25], 1
    %v4869 = vld [vmem:[%s4868] sm:$0x1]
    %v4871 = vlaneseq
    %v4872 = vshrl.u32 %v4871, 7
    %v4873 = vsub.s32 0, %v4872
    %v4874 = vrot.slane %v4869, %v4873
    %4876 = vmatprep.subr.mxu0 0.0
    %4877 = vmatpush1.msra.mxu0 %v4852
    %4878 = vmatprep.subr.mxu0 0.0
    %4879 = vmatpush1.msra.mxu0 %v4853
    %4880 = vmatprep.subr.mxu0 0.0
    %4881 = vmatpush1.msra.mxu0 %v4854
    %4882 = vmatprep.subr.mxu0 0.0
    %4883 = vmatpush1.msra.mxu0 %v4855
    %4884 = vmatprep.subr.mxu0 0.0
    %4885 = vmatpush1.msra.mxu0 %v4856
    %4886 = vmatprep.subr.mxu0 0.0
    %4887 = vmatpush1.msra.mxu0 %v4857
    %4888 = vmatprep.subr.mxu0 0.0
    %4889 = vmatpush1.msra.mxu0 %v4858
    %4890 = vmatprep.subr.mxu0 0.0
    %4891 = vmatpush1.msra.mxu0 %v4859
    %4892 = vmatprep.subr.mxu0 0.0
    %4893 = vmatpush1.msra.mxu0 %v4860
    %4894 = vmatprep.subr.mxu0 0.0
    %4895 = vmatpush1.msra.mxu0 %v4861
    %4896 = vmatprep.subr.mxu0 0.0
    %4897 = vmatpush1.msra.mxu0 %v4862
    %4898 = vmatprep.subr.mxu0 0.0
    %4899 = vmatpush1.msra.mxu0 %v4863
    %4900 = vmatprep.subr.mxu0 0.0
    %4901 = vmatpush1.msra.mxu0 %v4864
    %4902 = vmatprep.subr.mxu0 0.0
    %4903 = vmatpush1.msra.mxu0 %v4865
    %4904 = vmatprep.subr.mxu0 0.0
    %4905 = vmatpush1.msra.mxu0 %v4866
    %4906 = vmatprep.subr.mxu0 0.0
    %4907 = vmatpush1.msra.mxu0 %v4867
    %4908 = vmatprep.subr.mxu0 0.0
    %4909 = vmatpush1.msra.mxu0 0.0
    %4910 = vmatprep.subr.mxu0 0.0
    %4911 = vmatpush1.msra.mxu0 0.0
    %4912 = vmatprep.subr.mxu0 0.0
    %4913 = vmatpush1.msra.mxu0 0.0
    %4914 = vmatprep.subr.mxu0 0.0
    %4915 = vmatpush1.msra.mxu0 0.0
    %4916 = vmatprep.subr.mxu0 0.0
    %4917 = vmatpush1.msra.mxu0 0.0
    %4918 = vmatprep.subr.mxu0 0.0
    %4919 = vmatpush1.msra.mxu0 0.0
    %4920 = vmatprep.subr.mxu0 0.0
    %4921 = vmatpush1.msra.mxu0 0.0
    %4922 = vmatprep.subr.mxu0 0.0
    %4923 = vmatpush1.msra.mxu0 0.0
    %4924 = vmatprep.subr.mxu0 0.0
    %4925 = vmatpush1.msra.mxu0 0.0
    %4926 = vmatprep.subr.mxu0 0.0
    %4927 = vmatpush1.msra.mxu0 0.0
    %4928 = vmatprep.subr.mxu0 0.0
    %4929 = vmatpush1.msra.mxu0 0.0
    %4930 = vmatprep.subr.mxu0 0.0
    %4931 = vmatpush1.msra.mxu0 0.0
    %4932 = vmatprep.subr.mxu0 0.0
    %4933 = vmatpush1.msra.mxu0 0.0
    %4934 = vmatprep.subr.mxu0 0.0
    %4935 = vmatpush1.msra.mxu0 0.0
    %4936 = vmatprep.subr.mxu0 0.0
    %4937 = vmatpush1.msra.mxu0 0.0
    %4938 = vmatprep.subr.mxu0 0.0
    %4939 = vmatpush1.msra.mxu0 0.0
    %4940 = vmatprep.mubr.f32.mxu0 0.0
    %4941 = vmatmul.mubr.f32.gmra.mrb[0].mxu0 %v4849
    %v4942 = vpop.f32.mrb[0].mxu0
    %v4943 = vadd.f32 %v4874, %v4942
    %v4944 = vpop.f32.mrb[0].mxu0
    %4945 = vmatprep.mubr.f32.mxu0 0.0
    %4946 = vmatmul.mubr.f32.gmra.mrb[0].mxu0 %v4850
    %v4947 = vpop.f32.mrb[0].mxu0
    %v4948 = vadd.f32 %v4874, %v4947
    %v4949 = vpop.f32.mrb[0].mxu0
    %4950 = vdwg.mxu0
    %4953 = vrot.lane.b32.xlu0 %v4943, 32
    %v4954 = vpop.permute.xlu0 %4953
    %4955 = vrot.lane.b32.xlu0 %v4948, 32
    %v4956 = vpop.permute.xlu0 %4955
    %v4959 = vmul.f32 %v3039, %v4954
    %v4960 = vmul.f32 %v3045, %v4956
    %4963 = vrot.lane.b32.xlu0 %v4959, 96
    %v4964 = vpop.permute.xlu0 %4963
    %4965 = vrot.lane.b32.xlu0 %v4960, 96
    %v4966 = vpop.permute.xlu0 %4965
    %v4969 = vadd.f32 %v4693, %v4964
    %v4970 = vadd.f32 %v4694, %v4966
    %v4971 = vsel %vm516, %v4969, 0.0
    %4972 = vadd.xlane.f32.xlu0 %v4971
    %v4973 = vpop.xlane.xlu0 %4972
    %v4974 = vsel %vm516, %v4970, 0.0
    %4975 = vadd.xlane.f32.xlu0 %v4974
    %v4976 = vpop.xlane.xlu0 %4975
    %v4977 = vmul.f32 %v4973, %v993
    %v4978 = vmul.f32 %v4976, %v993
    %v4979 = vsub.f32 %v4969, %v4977
    %v4980 = vsub.f32 %v4970, %v4978
    %v4981 = vmul.f32 %v4979, %v4979
    %v4982 = vmul.f32 %v4980, %v4980
    %v4983 = vsel %vm516, %v4981, 0.0
    %4984 = vadd.xlane.f32.xlu0 %v4983
    %v4985 = vpop.xlane.xlu0 %4984
    %v4986 = vsel %vm516, %v4982, 0.0
    %4987 = vadd.xlane.f32.xlu0 %v4986
    %v4988 = vpop.xlane.xlu0 %4987
    %v4989 = vmul.f32 %v4985, %v993
    %v4990 = vmul.f32 %v4988, %v993
    %v4991 = vadd.f32 %v4989, 1e-05
    %v4992 = vadd.f32 %v4990, 1e-05
    %v4993 = vrsqrt.pop %v4991
    %v4994 = vrsqrt.pop %v4992
    %v4995 = vmul.f32 %v4979, %v4993
    %v4996 = vmul.f32 %v4980, %v4994
    %v4997 = vld [vmem:[#allocation27] sm:$0x1]
    %v4999 = vlaneseq
    %v5000 = vshrl.u32 %v4999, 7
    %v5001 = vsub.s32 0, %v5000
    %v5002 = vrot.slane %v4997, %v5001
    %v5004 = vmul.f32 %v4995, %v5002
    %v5005 = vmul.f32 %v4996, %v5002
    %v5006 = vld [vmem:[#allocation28] sm:$0x1]
    %v5008 = vlaneseq
    %v5009 = vshrl.u32 %v5008, 7
    %v5010 = vsub.s32 0, %v5009
    %v5011 = vrot.slane %v5006, %v5010
    %v5013 = vadd.f32 %v5004, %v5011
    %v5014 = vadd.f32 %v5005, %v5011
    %v5015 = vld [vmem:[%s69] sm:$0xff]
    %v5016 = vld [vmem:[%s69 + $0x8] sm:$0xff]
    %v5017 = vld [vmem:[%s69 + $0x10] sm:$0xff]
    %v5018 = vld [vmem:[%s69 + $0x18] sm:$0xff]
    %v5019 = vld [vmem:[#allocation30] sm:$0x1]
    %v5021 = vlaneseq
    %v5022 = vshrl.u32 %v5021, 7
    %v5023 = vsub.s32 0, %v5022
    %v5024 = vrot.slane %v5019, %v5023
    %v5027 = vsel %vm516, %v5013, 0
    %v5030 = vsel %vm516, %v5014, 0
    %5032 = vmatprep.subr.mxu0 0.0
    %5033 = vmatpush1.msra.mxu0 %v5015
    %5034 = vmatprep.subr.mxu0 0.0
    %5035 = vmatpush1.msra.mxu0 %v5016
    %5036 = vmatprep.subr.mxu0 0.0
    %5037 = vmatpush1.msra.mxu0 %v5017
    %5038 = vmatprep.subr.mxu0 0.0
    %5039 = vmatpush1.msra.mxu0 %v5018
    %5040 = vmatprep.subr.mxu0 0.0
    %5041 = vmatpush1.msra.mxu0 0.0
    %5042 = vmatprep.subr.mxu0 0.0
    %5043 = vmatpush1.msra.mxu0 0.0
    %5044 = vmatprep.subr.mxu0 0.0
    %5045 = vmatpush1.msra.mxu0 0.0
    %5046 = vmatprep.subr.mxu0 0.0
    %5047 = vmatpush1.msra.mxu0 0.0
    %5048 = vmatprep.subr.mxu0 0.0
    %5049 = vmatpush1.msra.mxu0 0.0
    %5050 = vmatprep.subr.mxu0 0.0
    %5051 = vmatpush1.msra.mxu0 0.0
    %5052 = vmatprep.subr.mxu0 0.0
    %5053 = vmatpush1.msra.mxu0 0.0
    %5054 = vmatprep.subr.mxu0 0.0
    %5055 = vmatpush1.msra.mxu0 0.0
    %5056 = vmatprep.subr.mxu0 0.0
    %5057 = vmatpush1.msra.mxu0 0.0
    %5058 = vmatprep.subr.mxu0 0.0
    %5059 = vmatpush1.msra.mxu0 0.0
    %5060 = vmatprep.subr.mxu0 0.0
    %5061 = vmatpush1.msra.mxu0 0.0
    %5062 = vmatprep.subr.mxu0 0.0
    %5063 = vmatpush1.msra.mxu0 0.0
    %5064 = vmatprep.subr.mxu0 0.0
    %5065 = vmatpush1.msra.mxu0 0.0
    %5066 = vmatprep.subr.mxu0 0.0
    %5067 = vmatpush1.msra.mxu0 0.0
    %5068 = vmatprep.subr.mxu0 0.0
    %5069 = vmatpush1.msra.mxu0 0.0
    %5070 = vmatprep.subr.mxu0 0.0
    %5071 = vmatpush1.msra.mxu0 0.0
    %5072 = vmatprep.subr.mxu0 0.0
    %5073 = vmatpush1.msra.mxu0 0.0
    %5074 = vmatprep.subr.mxu0 0.0
    %5075 = vmatpush1.msra.mxu0 0.0
    %5076 = vmatprep.subr.mxu0 0.0
    %5077 = vmatpush1.msra.mxu0 0.0
    %5078 = vmatprep.subr.mxu0 0.0
    %5079 = vmatpush1.msra.mxu0 0.0
    %5080 = vmatprep.subr.mxu0 0.0
    %5081 = vmatpush1.msra.mxu0 0.0
    %5082 = vmatprep.subr.mxu0 0.0
    %5083 = vmatpush1.msra.mxu0 0.0
    %5084 = vmatprep.subr.mxu0 0.0
    %5085 = vmatpush1.msra.mxu0 0.0
    %5086 = vmatprep.subr.mxu0 0.0
    %5087 = vmatpush1.msra.mxu0 0.0
    %5088 = vmatprep.subr.mxu0 0.0
    %5089 = vmatpush1.msra.mxu0 0.0
    %5090 = vmatprep.subr.mxu0 0.0
    %5091 = vmatpush1.msra.mxu0 0.0
    %5092 = vmatprep.subr.mxu0 0.0
    %5093 = vmatpush1.msra.mxu0 0.0
    %5094 = vmatprep.subr.mxu0 0.0
    %5095 = vmatpush1.msra.mxu0 0.0
    %5096 = vmatprep.mubr.f32.mxu0 0.0
    %5097 = vmatmul.mubr.f32.gmra.mrb[0].mxu0 %v5027
    %v5098 = vpop.f32.mrb[0].mxu0
    %v5099 = vadd.f32 %v5024, %v5098
    %v5100 = vpop.f32.mrb[0].mxu0
    %5101 = vmatprep.mubr.f32.mxu0 0.0
    %5102 = vmatmul.mubr.f32.gmra.mrb[0].mxu0 %v5030
    %v5103 = vpop.f32.mrb[0].mxu0
    %v5104 = vadd.f32 %v5024, %v5103
    %v5105 = vpop.f32.mrb[0].mxu0
    %5106 = vdwg.mxu0
    %5107 = vst [vmem:[%s73] sm:$0xff] %v5099
    %5108 = vst [vmem:[%s73 + $0x8] sm:$0xff] %v5104
    // Predicated region
    $region222: #{diffusion_transformer_forward.1} parent=1 // pred_check
      _
    $region223: #{diffusion_transformer_forward.1} parent=1 // pred_check_branch
      %5110 = sbr.rel (0) target = $region225
    $region224: #{diffusion_transformer_forward.1} parent=1 // pred_region
      _
    $region225: #{diffusion_transformer_forward.1} parent=1 // pred_fallthru
      _
    // Predicated region
    $region226: #{diffusion_transformer_forward.1} parent=1 // pred_check
      _
    $region227: #{diffusion_transformer_forward.1} parent=1 // pred_check_branch
      %5112 = sbr.rel (0) target = $region229
    $region228: #{diffusion_transformer_forward.1} parent=1 // pred_region
      _
    $region229: #{diffusion_transformer_forward.1} parent=1 // pred_fallthru
      _
    %5113 = vsyncpa [#allocation3], 1
    %5114 = vsyncpa [#allocation5], 1
    %5115 = vsyncpa [#allocation8], 1
    %5116 = vsyncpa [#allocation11], 1
    %5117 = vsyncpa [#allocation14], 1
    %5118 = vsyncpa [#allocation17], 1
    %5119 = vsyncpa [#allocation20], 1
    %5120 = vsyncpa [#allocation23], 1
    %5121 = vsyncpa [#allocation26], 1
    %5122 = vsyncpa [#allocation29], 1

</llo_original>
